<compile_context>
chip_gen: v6e
topology: v6e:2x2x1
jax: 0.10.0
libtpu: 0.0.40
codegen_flags: <defaults>
</compile_context>

<pallas_src>
import functools

import jax
import jax.numpy as jnp
from jax import lax
from jax.experimental import pallas as pl
from jax.experimental.pallas import tpu as pltpu


# ----------------------------------------------------------------------------
# Fused SPPF kernel: cv1 -> 3x maxpool5 (roll+mask) -> concat-free cv2
# ----------------------------------------------------------------------------
def _sppf_fused_kernel(x_ref, w1_ref, s1_ref, o1_ref, w2_ref, s2_ref, o2_ref,
                       o_ref, acc_ref, *, W, pool_dtype):
    # Blocks (batch dim squeezed):
    #   x (HW, C1) bf16 | w1 (C1, c_) bf16 | s1/o1 (1, c_) f32
    #   w2 (4, c_, C2) bf16 | s2/o2 (1, C2) f32 | out (HW, C2) bf16
    #   acc (HW, C2) f32 VMEM scratch
    HW = x_ref.shape[0]

    # ---- cv1: 1x1 conv = pixels-as-rows MXU matmul + folded BN + SiLU -------
    y = jnp.dot(x_ref[...], w1_ref[...], preferred_element_type=jnp.float32)
    y = y * s1_ref[...] + o1_ref[...]                 # folded BatchNorm (eval)
    x_ = y * jax.nn.sigmoid(y)                        # SiLU, f32 (HW, c_)

    # ---- separable 5x5 / s1 / p2 max pool on the flat pixel axis ------------
    # Each tap is a static pltpu.roll (XLU) of the whole (HW, c_) slab plus a
    # boundary mask built once from an iota (wrapped pixels -> -inf).
    pix = lax.broadcasted_iota(jnp.int32, (HW, 1), 0)           # flat pixel id
    col = lax.rem(pix, jnp.full_like(pix, W))                   # w coordinate
    taps_w, taps_h = [], []
    for d in (1, 2):
        taps_w.append((HW - d, col < (W - d)))        # reads (h, w + d)
        taps_w.append((d, col >= d))                  # reads (h, w - d)
        taps_h.append((HW - d * W, pix < (HW - d * W)))   # reads (h + d, w)
        taps_h.append((d * W, pix >= d * W))              # reads (h - d, w)

    def pool5(v):
        r = v                                         # column (W) pass
        for shift, ok in taps_w:
            r = jnp.maximum(r, jnp.where(ok, pltpu.roll(v, shift, 0), -jnp.inf))
        o = r                                         # row (H) pass
        for shift, ok in taps_h:
            o = jnp.maximum(o, jnp.where(ok, pltpu.roll(r, shift, 0), -jnp.inf))
        return o

    p0 = x_.astype(pool_dtype)
    p1 = pool5(p0)
    p2 = pool5(p1)
    p3 = pool5(p2)

    # ---- cv2 over the virtual concat [x_, y1, y2, y3]: split-K accumulation -
    def tap_mm(v, j):
        return jnp.dot(v.astype(jnp.bfloat16), w2_ref[j],
                       preferred_element_type=jnp.float32)

    acc_ref[...] = tap_mm(p0, 0)
    acc_ref[...] += tap_mm(p1, 1)
    acc_ref[...] += tap_mm(p2, 2)
    acc_ref[...] += tap_mm(p3, 3)

    z = acc_ref[...] * s2_ref[...] + o2_ref[...]      # folded BatchNorm (eval)
    z = z * jax.nn.sigmoid(z)                         # SiLU
    o_ref[...] = z.astype(o_ref.dtype)


# ----------------------------------------------------------------------------
# Parameter construction (deterministic, synthetic; BN folded as eval-mode)
# ----------------------------------------------------------------------------
def _fold_bn(gamma, beta, mean, var, eps=1e-5):
    scale = gamma / jnp.sqrt(var + eps)
    bias = beta - mean * scale
    return scale[None, :], bias[None, :]


def make_sppf_params(c1, c2):
    c_ = c1 // 2
    k1, k2 = jax.random.split(jax.random.PRNGKey(1), 2)
    w1 = jax.random.normal(k1, (c1, c_), jnp.float32) * 0.1        # cv1 weight
    g1 = 1.0 + 0.10 * jnp.arange(c_, dtype=jnp.float32)
    b1 = 0.01 * jnp.arange(c_, dtype=jnp.float32)
    m1 = 0.05 * jnp.arange(c_, dtype=jnp.float32)
    v1 = 1.0 + 0.10 * jnp.arange(c_, dtype=jnp.float32)
    s1, o1 = _fold_bn(g1, b1, m1, v1)
    w2 = jax.random.normal(k2, (4 * c_, c2), jnp.float32) * 0.1    # cv2 weight
    g2 = 1.0 + 0.05 * jnp.arange(c2, dtype=jnp.float32)
    b2 = 0.02 * jnp.arange(c2, dtype=jnp.float32)
    m2 = 0.03 * jnp.arange(c2, dtype=jnp.float32)
    v2 = 1.0 + 0.05 * jnp.arange(c2, dtype=jnp.float32)
    s2, o2 = _fold_bn(g2, b2, m2, v2)
    return dict(
        w1=w1.astype(jnp.bfloat16), s1=s1, o1=o1,
        w2=w2.reshape(4, c_, c2).astype(jnp.bfloat16),  # pre-split: concat-free cv2
        s2=s2, o2=o2,
    )


# ----------------------------------------------------------------------------
# SPPF forward: channels-last fast path (no transpose / reshape HBM passes)
# ----------------------------------------------------------------------------
def sppf_forward(x_nhwc, params, *, pool_dtype=jnp.float32):
    """SPPF forward on an NHWC activation. Casts x to bf16 at the HBM boundary
    (a no-op when the producer already emits bf16). Returns bf16 NHWC."""
    B, H, W, C1 = x_nhwc.shape
    c_ = params["w1"].shape[1]
    C2 = params["w2"].shape[2]
    HW = H * W

    # Contiguous-HBM reshape: metadata-only, no data movement.
    x = x_nhwc.astype(jnp.bfloat16).reshape(B, HW, C1)

    # Explicit scoped-VMEM budget: double-buffered in/out blocks + resident
    # weights + f32 accumulator + pool intermediates, with headroom.
    per_step = (2 * HW * C1 * 2 + 2 * HW * C2 * 2
                + C1 * c_ * 2 + 4 * c_ * C2 * 2 + 8 * (c_ + C2)
                + HW * C2 * 4 + 2 * HW * c_ * 4
                + 8 * HW * c_ * jnp.dtype(pool_dtype).itemsize)
    vmem_limit = int(min(max(4 * per_step, 32 * 2**20), 100 * 2**20))

    kernel = functools.partial(_sppf_fused_kernel, W=W, pool_dtype=pool_dtype)

    out = pl.pallas_call(
        kernel,
        out_shape=jax.ShapeDtypeStruct((B, HW, C2), jnp.bfloat16),
        grid=(B,),
        in_specs=[
            pl.BlockSpec((None, HW, C1), lambda b: (b, 0, 0)),
            pl.BlockSpec((C1, c_), lambda b: (0, 0)),
            pl.BlockSpec((1, c_), lambda b: (0, 0)),
            pl.BlockSpec((1, c_), lambda b: (0, 0)),
            pl.BlockSpec((4, c_, C2), lambda b: (0, 0, 0)),
            pl.BlockSpec((1, C2), lambda b: (0, 0)),
            pl.BlockSpec((1, C2), lambda b: (0, 0)),
        ],
        out_specs=pl.BlockSpec((None, HW, C2), lambda b: (b, 0, 0)),
        scratch_shapes=[pltpu.VMEM((HW, C2), jnp.float32)],
        compiler_params=pltpu.CompilerParams(
            dimension_semantics=("parallel",),
            vmem_limit_bytes=vmem_limit),
    )(x, params["w1"], params["s1"], params["o1"],
      params["w2"], params["s2"], params["o2"])

    return out.reshape(B, H, W, C2)


def sppf_forward_nchw(x_nchw, params, **kwargs):
    """Drop-in adapter for the PyTorch (NCHW) layout. The two transposes are
    full HBM passes; prefer sppf_forward when the network runs channels-last."""
    y = sppf_forward(jnp.transpose(x_nchw, (0, 2, 3, 1)), params, **kwargs)
    return jnp.transpose(y, (0, 3, 1, 2))


# ----------------------------------------------------------------------------
# Pure-JAX reference (same bf16-at-MXU numerics) for the correctness check
# ----------------------------------------------------------------------------
def sppf_reference(x_nhwc, params):
    c_ = params["w1"].shape[1]
    C2 = params["w2"].shape[2]

    def conv_bn_silu(t, w, s, o):
        y = jnp.dot(t.reshape(-1, t.shape[-1]).astype(jnp.bfloat16), w,
                    preferred_element_type=jnp.float32)
        y = y * s + o
        y = y * jax.nn.sigmoid(y)
        return y.reshape(t.shape[:-1] + (w.shape[-1],))

    def pool(t):
        return lax.reduce_window(
            t, -jnp.inf, lax.max,
            window_dimensions=(1, 5, 5, 1), window_strides=(1, 1, 1, 1),
            padding=((0, 0), (2, 2), (2, 2), (0, 0)))

    x_ = conv_bn_silu(x_nhwc, params["w1"], params["s1"], params["o1"])
    y1 = pool(x_)
    y2 = pool(y1)
    y3 = pool(y2)
    cat = jnp.concatenate([x_, y1, y2, y3], axis=-1)
    w2_flat = params["w2"].reshape(4 * c_, C2)
    out = conv_bn_silu(cat, w2_flat, params["s2"], params["o2"])
    return out.astype(jnp.bfloat16)


if __name__ == "__main__":
    B, C1, H, W, C2 = 2, 4, 16, 16, 4
    # NOTE: toy channel counts (c_=2, C2=4) exercise masked partial stores
    # (last dim < 128); real SPPF shapes (e.g. 20x20 spatial, 256/512 channels)
    # are lane-dense, which is what this layout is designed for.
    x_nchw = jax.random.normal(jax.random.PRNGKey(0), (B, C1, H, W), jnp.float32)
    # Producer-side layout: on TPU the upstream YOLO blocks hand SPPF a
    # channels-last bf16 activation; sppf_forward itself does no transposes.
    x_nhwc = jnp.transpose(x_nchw, (0, 2, 3, 1)).astype(jnp.bfloat16)

    params = make_sppf_params(C1, C2)

    out = jax.block_until_ready(sppf_forward(x_nhwc, params))
    assert out.shape == (B, H, W, C2), out.shape
    assert out.dtype == jnp.bfloat16, out.dtype
    assert bool(jnp.all(jnp.isfinite(out.astype(jnp.float32))))

    ref = jax.block_until_ready(sppf_reference(x_nhwc, params))
    max_err = float(jnp.max(jnp.abs(out.astype(jnp.float32) - ref.astype(jnp.float32))))
    assert bool(jnp.allclose(out.astype(jnp.float32), ref.astype(jnp.float32),
                             rtol=2e-2, atol=2e-2)), max_err

    # Drop-in NCHW adapter (PyTorch layout) parity check.
    out_nchw = jax.block_until_ready(sppf_forward_nchw(x_nchw, params))
    ref_nchw = jnp.transpose(ref, (0, 3, 1, 2))
    assert bool(jnp.allclose(out_nchw.astype(jnp.float32),
                             ref_nchw.astype(jnp.float32),
                             rtol=2e-2, atol=2e-2))

    print("KERNEL_OK")
</pallas_src>

<mosaic_0001>
module attributes {stable_mosaic.version = 11 : i64} {
  func.func @_sppf_fused_kernel(%arg0: i32, %arg1: memref<1x256x4xbf16, #tpu.memory_space<vmem>>, %arg2: memref<4x2xbf16, #tpu.memory_space<vmem>>, %arg3: memref<1x2xf32, #tpu.memory_space<vmem>>, %arg4: memref<1x2xf32, #tpu.memory_space<vmem>>, %arg5: memref<4x2x4xbf16, #tpu.memory_space<vmem>>, %arg6: memref<1x4xf32, #tpu.memory_space<vmem>>, %arg7: memref<1x4xf32, #tpu.memory_space<vmem>>, %arg8: memref<1x256x4xbf16, #tpu.memory_space<vmem>>, %arg9: memref<256x4xf32, #tpu.memory_space<vmem>>) attributes {dimension_semantics = [#tpu.dimension_semantics<parallel>], iteration_bounds = array<i64: 2>, scalar_prefetch = 0 : i64, scratch_operands = 1 : i64, tpu.core_type = #tpu.core_type<tc>, window_params = [{transform_indices = @transform_0, window_bounds = array<i64: 1, 256, 4>}, {pipeline_mode = #tpu.pipeline_mode<synchronous>, transform_indices = @transform_1, window_bounds = array<i64: 4, 2>}, {pipeline_mode = #tpu.pipeline_mode<synchronous>, transform_indices = @transform_2, window_bounds = array<i64: 1, 2>}, {pipeline_mode = #tpu.pipeline_mode<synchronous>, transform_indices = @transform_3, window_bounds = array<i64: 1, 2>}, {pipeline_mode = #tpu.pipeline_mode<synchronous>, transform_indices = @transform_4, window_bounds = array<i64: 4, 2, 4>}, {pipeline_mode = #tpu.pipeline_mode<synchronous>, transform_indices = @transform_5, window_bounds = array<i64: 1, 4>}, {pipeline_mode = #tpu.pipeline_mode<synchronous>, transform_indices = @transform_6, window_bounds = array<i64: 1, 4>}, {transform_indices = @transform_7, window_bounds = array<i64: 1, 256, 4>}]} {
    %c0 = arith.constant 0 : index
    %c0_0 = arith.constant 0 : index
    %c0_1 = arith.constant 0 : index
    %0 = vector.load %arg1[%c0, %c0_0, %c0_1] : memref<1x256x4xbf16, #tpu.memory_space<vmem>>, vector<1x256x4xbf16>
    %1 = vector.shape_cast %0 : vector<1x256x4xbf16> to vector<256x4xbf16>
    %c0_2 = arith.constant 0 : index
    %c0_3 = arith.constant 0 : index
    %2 = vector.load %arg2[%c0_2, %c0_3] : memref<4x2xbf16, #tpu.memory_space<vmem>>, vector<4x2xbf16>
    %cst = arith.constant dense<0.000000e+00> : vector<256x2xf32>
    %3 = tpu.matmul %1, %2, %cst {dimension_numbers = #tpu.dot_dimension_numbers<[1], [0], [0], [1], [0, 0, 1, 1], [], []>} : vector<256x4xbf16>, vector<4x2xbf16>, vector<256x2xf32> -> vector<256x2xf32>
    %c0_4 = arith.constant 0 : index
    %c0_5 = arith.constant 0 : index
    %4 = vector.load %arg3[%c0_4, %c0_5] : memref<1x2xf32, #tpu.memory_space<vmem>>, vector<1x2xf32>
    %5 = vector.broadcast %4 : vector<1x2xf32> to vector<256x2xf32>
    %6 = arith.mulf %3, %5 : vector<256x2xf32>
    %c0_6 = arith.constant 0 : index
    %c0_7 = arith.constant 0 : index
    %7 = vector.load %arg4[%c0_6, %c0_7] : memref<1x2xf32, #tpu.memory_space<vmem>>, vector<1x2xf32>
    %8 = vector.broadcast %7 : vector<1x2xf32> to vector<256x2xf32>
    %9 = arith.addf %6, %8 : vector<256x2xf32>
    %10 = arith.negf %9 : vector<256x2xf32>
    %11 = math.exp %10 : vector<256x2xf32>
    %cst_8 = arith.constant 1.000000e+00 : f32
    %12 = vector.broadcast %cst_8 : f32 to vector<256x2xf32>
    %13 = arith.addf %12, %11 : vector<256x2xf32>
    %14 = arith.divf %12, %13 : vector<256x2xf32>
    %15 = arith.mulf %9, %14 : vector<256x2xf32>
    %16 = tpu.iota {dimensions = array<i32: 0>} : vector<256x1xi32>
    %c16_i32 = arith.constant 16 : i32
    %17 = vector.broadcast %c16_i32 : i32 to vector<256x1xi32>
    %18 = arith.remsi %16, %17 : vector<256x1xi32>
    %c15_i32 = arith.constant 15 : i32
    %19 = vector.broadcast %c15_i32 : i32 to vector<256x1xi32>
    %20 = arith.cmpi slt, %18, %19 : vector<256x1xi32>
    %c1_i32 = arith.constant 1 : i32
    %21 = vector.broadcast %c1_i32 : i32 to vector<256x1xi32>
    %22 = arith.cmpi sge, %18, %21 : vector<256x1xi32>
    %c240_i32 = arith.constant 240 : i32
    %23 = vector.broadcast %c240_i32 : i32 to vector<256x1xi32>
    %24 = arith.cmpi slt, %16, %23 : vector<256x1xi32>
    %c16_i32_9 = arith.constant 16 : i32
    %25 = vector.broadcast %c16_i32_9 : i32 to vector<256x1xi32>
    %26 = arith.cmpi sge, %16, %25 : vector<256x1xi32>
    %c14_i32 = arith.constant 14 : i32
    %27 = vector.broadcast %c14_i32 : i32 to vector<256x1xi32>
    %28 = arith.cmpi slt, %18, %27 : vector<256x1xi32>
    %c2_i32 = arith.constant 2 : i32
    %29 = vector.broadcast %c2_i32 : i32 to vector<256x1xi32>
    %30 = arith.cmpi sge, %18, %29 : vector<256x1xi32>
    %c224_i32 = arith.constant 224 : i32
    %31 = vector.broadcast %c224_i32 : i32 to vector<256x1xi32>
    %32 = arith.cmpi slt, %16, %31 : vector<256x1xi32>
    %c32_i32 = arith.constant 32 : i32
    %33 = vector.broadcast %c32_i32 : i32 to vector<256x1xi32>
    %34 = arith.cmpi sge, %16, %33 : vector<256x1xi32>
    %c255_i32 = arith.constant 255 : i32
    %35 = tpu.dynamic_rotate %15 by %c255_i32 dim 0 : vector<256x2xf32>, i32 -> vector<256x2xf32>
    %cst_10 = arith.constant 0xFF800000 : f32
    %36 = vector.shape_cast %20 : vector<256x1xi1> to vector<256x1xi1>
    %37 = vector.broadcast %36 : vector<256x1xi1> to vector<256x2xi1>
    %38 = vector.broadcast %cst_10 : f32 to vector<256x2xf32>
    %39 = arith.select %37, %35, %38 : vector<256x2xi1>, vector<256x2xf32>
    %40 = arith.maximumf %15, %39 : vector<256x2xf32>
    %c1_i32_11 = arith.constant 1 : i32
    %41 = tpu.dynamic_rotate %15 by %c1_i32_11 dim 0 : vector<256x2xf32>, i32 -> vector<256x2xf32>
    %cst_12 = arith.constant 0xFF800000 : f32
    %42 = vector.shape_cast %22 : vector<256x1xi1> to vector<256x1xi1>
    %43 = vector.broadcast %42 : vector<256x1xi1> to vector<256x2xi1>
    %44 = vector.broadcast %cst_12 : f32 to vector<256x2xf32>
    %45 = arith.select %43, %41, %44 : vector<256x2xi1>, vector<256x2xf32>
    %46 = arith.maximumf %40, %45 : vector<256x2xf32>
    %c254_i32 = arith.constant 254 : i32
    %47 = tpu.dynamic_rotate %15 by %c254_i32 dim 0 : vector<256x2xf32>, i32 -> vector<256x2xf32>
    %cst_13 = arith.constant 0xFF800000 : f32
    %48 = vector.shape_cast %28 : vector<256x1xi1> to vector<256x1xi1>
    %49 = vector.broadcast %48 : vector<256x1xi1> to vector<256x2xi1>
    %50 = vector.broadcast %cst_13 : f32 to vector<256x2xf32>
    %51 = arith.select %49, %47, %50 : vector<256x2xi1>, vector<256x2xf32>
    %52 = arith.maximumf %46, %51 : vector<256x2xf32>
    %c2_i32_14 = arith.constant 2 : i32
    %53 = tpu.dynamic_rotate %15 by %c2_i32_14 dim 0 : vector<256x2xf32>, i32 -> vector<256x2xf32>
    %cst_15 = arith.constant 0xFF800000 : f32
    %54 = vector.shape_cast %30 : vector<256x1xi1> to vector<256x1xi1>
    %55 = vector.broadcast %54 : vector<256x1xi1> to vector<256x2xi1>
    %56 = vector.broadcast %cst_15 : f32 to vector<256x2xf32>
    %57 = arith.select %55, %53, %56 : vector<256x2xi1>, vector<256x2xf32>
    %58 = arith.maximumf %52, %57 : vector<256x2xf32>
    %c240_i32_16 = arith.constant 240 : i32
    %59 = tpu.dynamic_rotate %58 by %c240_i32_16 dim 0 : vector<256x2xf32>, i32 -> vector<256x2xf32>
    %cst_17 = arith.constant 0xFF800000 : f32
    %60 = vector.shape_cast %24 : vector<256x1xi1> to vector<256x1xi1>
    %61 = vector.broadcast %60 : vector<256x1xi1> to vector<256x2xi1>
    %62 = vector.broadcast %cst_17 : f32 to vector<256x2xf32>
    %63 = arith.select %61, %59, %62 : vector<256x2xi1>, vector<256x2xf32>
    %64 = arith.maximumf %58, %63 : vector<256x2xf32>
    %c16_i32_18 = arith.constant 16 : i32
    %65 = tpu.dynamic_rotate %58 by %c16_i32_18 dim 0 : vector<256x2xf32>, i32 -> vector<256x2xf32>
    %cst_19 = arith.constant 0xFF800000 : f32
    %66 = vector.shape_cast %26 : vector<256x1xi1> to vector<256x1xi1>
    %67 = vector.broadcast %66 : vector<256x1xi1> to vector<256x2xi1>
    %68 = vector.broadcast %cst_19 : f32 to vector<256x2xf32>
    %69 = arith.select %67, %65, %68 : vector<256x2xi1>, vector<256x2xf32>
    %70 = arith.maximumf %64, %69 : vector<256x2xf32>
    %c224_i32_20 = arith.constant 224 : i32
    %71 = tpu.dynamic_rotate %58 by %c224_i32_20 dim 0 : vector<256x2xf32>, i32 -> vector<256x2xf32>
    %cst_21 = arith.constant 0xFF800000 : f32
    %72 = vector.shape_cast %32 : vector<256x1xi1> to vector<256x1xi1>
    %73 = vector.broadcast %72 : vector<256x1xi1> to vector<256x2xi1>
    %74 = vector.broadcast %cst_21 : f32 to vector<256x2xf32>
    %75 = arith.select %73, %71, %74 : vector<256x2xi1>, vector<256x2xf32>
    %76 = arith.maximumf %70, %75 : vector<256x2xf32>
    %c32_i32_22 = arith.constant 32 : i32
    %77 = tpu.dynamic_rotate %58 by %c32_i32_22 dim 0 : vector<256x2xf32>, i32 -> vector<256x2xf32>
    %cst_23 = arith.constant 0xFF800000 : f32
    %78 = vector.shape_cast %34 : vector<256x1xi1> to vector<256x1xi1>
    %79 = vector.broadcast %78 : vector<256x1xi1> to vector<256x2xi1>
    %80 = vector.broadcast %cst_23 : f32 to vector<256x2xf32>
    %81 = arith.select %79, %77, %80 : vector<256x2xi1>, vector<256x2xf32>
    %82 = arith.maximumf %76, %81 : vector<256x2xf32>
    %c255_i32_24 = arith.constant 255 : i32
    %83 = tpu.dynamic_rotate %82 by %c255_i32_24 dim 0 : vector<256x2xf32>, i32 -> vector<256x2xf32>
    %cst_25 = arith.constant 0xFF800000 : f32
    %84 = vector.shape_cast %20 : vector<256x1xi1> to vector<256x1xi1>
    %85 = vector.broadcast %84 : vector<256x1xi1> to vector<256x2xi1>
    %86 = vector.broadcast %cst_25 : f32 to vector<256x2xf32>
    %87 = arith.select %85, %83, %86 : vector<256x2xi1>, vector<256x2xf32>
    %88 = arith.maximumf %82, %87 : vector<256x2xf32>
    %c1_i32_26 = arith.constant 1 : i32
    %89 = tpu.dynamic_rotate %82 by %c1_i32_26 dim 0 : vector<256x2xf32>, i32 -> vector<256x2xf32>
    %cst_27 = arith.constant 0xFF800000 : f32
    %90 = vector.shape_cast %22 : vector<256x1xi1> to vector<256x1xi1>
    %91 = vector.broadcast %90 : vector<256x1xi1> to vector<256x2xi1>
    %92 = vector.broadcast %cst_27 : f32 to vector<256x2xf32>
    %93 = arith.select %91, %89, %92 : vector<256x2xi1>, vector<256x2xf32>
    %94 = arith.maximumf %88, %93 : vector<256x2xf32>
    %c254_i32_28 = arith.constant 254 : i32
    %95 = tpu.dynamic_rotate %82 by %c254_i32_28 dim 0 : vector<256x2xf32>, i32 -> vector<256x2xf32>
    %cst_29 = arith.constant 0xFF800000 : f32
    %96 = vector.shape_cast %28 : vector<256x1xi1> to vector<256x1xi1>
    %97 = vector.broadcast %96 : vector<256x1xi1> to vector<256x2xi1>
    %98 = vector.broadcast %cst_29 : f32 to vector<256x2xf32>
    %99 = arith.select %97, %95, %98 : vector<256x2xi1>, vector<256x2xf32>
    %100 = arith.maximumf %94, %99 : vector<256x2xf32>
    %c2_i32_30 = arith.constant 2 : i32
    %101 = tpu.dynamic_rotate %82 by %c2_i32_30 dim 0 : vector<256x2xf32>, i32 -> vector<256x2xf32>
    %cst_31 = arith.constant 0xFF800000 : f32
    %102 = vector.shape_cast %30 : vector<256x1xi1> to vector<256x1xi1>
    %103 = vector.broadcast %102 : vector<256x1xi1> to vector<256x2xi1>
    %104 = vector.broadcast %cst_31 : f32 to vector<256x2xf32>
    %105 = arith.select %103, %101, %104 : vector<256x2xi1>, vector<256x2xf32>
    %106 = arith.maximumf %100, %105 : vector<256x2xf32>
    %c240_i32_32 = arith.constant 240 : i32
    %107 = tpu.dynamic_rotate %106 by %c240_i32_32 dim 0 : vector<256x2xf32>, i32 -> vector<256x2xf32>
    %cst_33 = arith.constant 0xFF800000 : f32
    %108 = vector.shape_cast %24 : vector<256x1xi1> to vector<256x1xi1>
    %109 = vector.broadcast %108 : vector<256x1xi1> to vector<256x2xi1>
    %110 = vector.broadcast %cst_33 : f32 to vector<256x2xf32>
    %111 = arith.select %109, %107, %110 : vector<256x2xi1>, vector<256x2xf32>
    %112 = arith.maximumf %106, %111 : vector<256x2xf32>
    %c16_i32_34 = arith.constant 16 : i32
    %113 = tpu.dynamic_rotate %106 by %c16_i32_34 dim 0 : vector<256x2xf32>, i32 -> vector<256x2xf32>
    %cst_35 = arith.constant 0xFF800000 : f32
    %114 = vector.shape_cast %26 : vector<256x1xi1> to vector<256x1xi1>
    %115 = vector.broadcast %114 : vector<256x1xi1> to vector<256x2xi1>
    %116 = vector.broadcast %cst_35 : f32 to vector<256x2xf32>
    %117 = arith.select %115, %113, %116 : vector<256x2xi1>, vector<256x2xf32>
    %118 = arith.maximumf %112, %117 : vector<256x2xf32>
    %c224_i32_36 = arith.constant 224 : i32
    %119 = tpu.dynamic_rotate %106 by %c224_i32_36 dim 0 : vector<256x2xf32>, i32 -> vector<256x2xf32>
    %cst_37 = arith.constant 0xFF800000 : f32
    %120 = vector.shape_cast %32 : vector<256x1xi1> to vector<256x1xi1>
    %121 = vector.broadcast %120 : vector<256x1xi1> to vector<256x2xi1>
    %122 = vector.broadcast %cst_37 : f32 to vector<256x2xf32>
    %123 = arith.select %121, %119, %122 : vector<256x2xi1>, vector<256x2xf32>
    %124 = arith.maximumf %118, %123 : vector<256x2xf32>
    %c32_i32_38 = arith.constant 32 : i32
    %125 = tpu.dynamic_rotate %106 by %c32_i32_38 dim 0 : vector<256x2xf32>, i32 -> vector<256x2xf32>
    %cst_39 = arith.constant 0xFF800000 : f32
    %126 = vector.shape_cast %34 : vector<256x1xi1> to vector<256x1xi1>
    %127 = vector.broadcast %126 : vector<256x1xi1> to vector<256x2xi1>
    %128 = vector.broadcast %cst_39 : f32 to vector<256x2xf32>
    %129 = arith.select %127, %125, %128 : vector<256x2xi1>, vector<256x2xf32>
    %130 = arith.maximumf %124, %129 : vector<256x2xf32>
    %c255_i32_40 = arith.constant 255 : i32
    %131 = tpu.dynamic_rotate %130 by %c255_i32_40 dim 0 : vector<256x2xf32>, i32 -> vector<256x2xf32>
    %cst_41 = arith.constant 0xFF800000 : f32
    %132 = vector.shape_cast %20 : vector<256x1xi1> to vector<256x1xi1>
    %133 = vector.broadcast %132 : vector<256x1xi1> to vector<256x2xi1>
    %134 = vector.broadcast %cst_41 : f32 to vector<256x2xf32>
    %135 = arith.select %133, %131, %134 : vector<256x2xi1>, vector<256x2xf32>
    %136 = arith.maximumf %130, %135 : vector<256x2xf32>
    %c1_i32_42 = arith.constant 1 : i32
    %137 = tpu.dynamic_rotate %130 by %c1_i32_42 dim 0 : vector<256x2xf32>, i32 -> vector<256x2xf32>
    %cst_43 = arith.constant 0xFF800000 : f32
    %138 = vector.shape_cast %22 : vector<256x1xi1> to vector<256x1xi1>
    %139 = vector.broadcast %138 : vector<256x1xi1> to vector<256x2xi1>
    %140 = vector.broadcast %cst_43 : f32 to vector<256x2xf32>
    %141 = arith.select %139, %137, %140 : vector<256x2xi1>, vector<256x2xf32>
    %142 = arith.maximumf %136, %141 : vector<256x2xf32>
    %c254_i32_44 = arith.constant 254 : i32
    %143 = tpu.dynamic_rotate %130 by %c254_i32_44 dim 0 : vector<256x2xf32>, i32 -> vector<256x2xf32>
    %cst_45 = arith.constant 0xFF800000 : f32
    %144 = vector.shape_cast %28 : vector<256x1xi1> to vector<256x1xi1>
    %145 = vector.broadcast %144 : vector<256x1xi1> to vector<256x2xi1>
    %146 = vector.broadcast %cst_45 : f32 to vector<256x2xf32>
    %147 = arith.select %145, %143, %146 : vector<256x2xi1>, vector<256x2xf32>
    %148 = arith.maximumf %142, %147 : vector<256x2xf32>
    %c2_i32_46 = arith.constant 2 : i32
    %149 = tpu.dynamic_rotate %130 by %c2_i32_46 dim 0 : vector<256x2xf32>, i32 -> vector<256x2xf32>
    %cst_47 = arith.constant 0xFF800000 : f32
    %150 = vector.shape_cast %30 : vector<256x1xi1> to vector<256x1xi1>
    %151 = vector.broadcast %150 : vector<256x1xi1> to vector<256x2xi1>
    %152 = vector.broadcast %cst_47 : f32 to vector<256x2xf32>
    %153 = arith.select %151, %149, %152 : vector<256x2xi1>, vector<256x2xf32>
    %154 = arith.maximumf %148, %153 : vector<256x2xf32>
    %c240_i32_48 = arith.constant 240 : i32
    %155 = tpu.dynamic_rotate %154 by %c240_i32_48 dim 0 : vector<256x2xf32>, i32 -> vector<256x2xf32>
    %cst_49 = arith.constant 0xFF800000 : f32
    %156 = vector.shape_cast %24 : vector<256x1xi1> to vector<256x1xi1>
    %157 = vector.broadcast %156 : vector<256x1xi1> to vector<256x2xi1>
    %158 = vector.broadcast %cst_49 : f32 to vector<256x2xf32>
    %159 = arith.select %157, %155, %158 : vector<256x2xi1>, vector<256x2xf32>
    %160 = arith.maximumf %154, %159 : vector<256x2xf32>
    %c16_i32_50 = arith.constant 16 : i32
    %161 = tpu.dynamic_rotate %154 by %c16_i32_50 dim 0 : vector<256x2xf32>, i32 -> vector<256x2xf32>
    %cst_51 = arith.constant 0xFF800000 : f32
    %162 = vector.shape_cast %26 : vector<256x1xi1> to vector<256x1xi1>
    %163 = vector.broadcast %162 : vector<256x1xi1> to vector<256x2xi1>
    %164 = vector.broadcast %cst_51 : f32 to vector<256x2xf32>
    %165 = arith.select %163, %161, %164 : vector<256x2xi1>, vector<256x2xf32>
    %166 = arith.maximumf %160, %165 : vector<256x2xf32>
    %c224_i32_52 = arith.constant 224 : i32
    %167 = tpu.dynamic_rotate %154 by %c224_i32_52 dim 0 : vector<256x2xf32>, i32 -> vector<256x2xf32>
    %cst_53 = arith.constant 0xFF800000 : f32
    %168 = vector.shape_cast %32 : vector<256x1xi1> to vector<256x1xi1>
    %169 = vector.broadcast %168 : vector<256x1xi1> to vector<256x2xi1>
    %170 = vector.broadcast %cst_53 : f32 to vector<256x2xf32>
    %171 = arith.select %169, %167, %170 : vector<256x2xi1>, vector<256x2xf32>
    %172 = arith.maximumf %166, %171 : vector<256x2xf32>
    %c32_i32_54 = arith.constant 32 : i32
    %173 = tpu.dynamic_rotate %154 by %c32_i32_54 dim 0 : vector<256x2xf32>, i32 -> vector<256x2xf32>
    %cst_55 = arith.constant 0xFF800000 : f32
    %174 = vector.shape_cast %34 : vector<256x1xi1> to vector<256x1xi1>
    %175 = vector.broadcast %174 : vector<256x1xi1> to vector<256x2xi1>
    %176 = vector.broadcast %cst_55 : f32 to vector<256x2xf32>
    %177 = arith.select %175, %173, %176 : vector<256x2xi1>, vector<256x2xf32>
    %178 = arith.maximumf %172, %177 : vector<256x2xf32>
    %179 = arith.truncf %15 : vector<256x2xf32> to vector<256x2xbf16>
    %c0_56 = arith.constant 0 : index
    %c0_57 = arith.constant 0 : index
    %c0_58 = arith.constant 0 : index
    %180 = vector.load %arg5[%c0_56, %c0_57, %c0_58] : memref<4x2x4xbf16, #tpu.memory_space<vmem>>, vector<1x2x4xbf16>
    %181 = vector.shape_cast %180 : vector<1x2x4xbf16> to vector<2x4xbf16>
    %cst_59 = arith.constant dense<0.000000e+00> : vector<256x4xf32>
    %182 = tpu.matmul %179, %181, %cst_59 {dimension_numbers = #tpu.dot_dimension_numbers<[1], [0], [0], [1], [0, 0, 1, 1], [], []>} : vector<256x2xbf16>, vector<2x4xbf16>, vector<256x4xf32> -> vector<256x4xf32>
    %c0_60 = arith.constant 0 : index
    %c0_61 = arith.constant 0 : index
    %183 = vector.load %arg9[%c0_60, %c0_61] : memref<256x4xf32, #tpu.memory_space<vmem>>, vector<256x4xf32>
    tpu.vector_store %arg9[%c0_60, %c0_61], %182 {strides = array<i32>} : memref<256x4xf32, #tpu.memory_space<vmem>>, vector<256x4xf32>,
    %c0_62 = arith.constant 0 : index
    %c0_63 = arith.constant 0 : index
    %184 = vector.load %arg9[%c0_62, %c0_63] : memref<256x4xf32, #tpu.memory_space<vmem>>, vector<256x4xf32>
    %185 = arith.truncf %82 : vector<256x2xf32> to vector<256x2xbf16>
    %c1 = arith.constant 1 : index
    %c0_64 = arith.constant 0 : index
    %c0_65 = arith.constant 0 : index
    %186 = vector.load %arg5[%c1, %c0_64, %c0_65] : memref<4x2x4xbf16, #tpu.memory_space<vmem>>, vector<1x2x4xbf16>
    %187 = vector.shape_cast %186 : vector<1x2x4xbf16> to vector<2x4xbf16>
    %cst_66 = arith.constant dense<0.000000e+00> : vector<256x4xf32>
    %188 = tpu.matmul %185, %187, %cst_66 {dimension_numbers = #tpu.dot_dimension_numbers<[1], [0], [0], [1], [0, 0, 1, 1], [], []>} : vector<256x2xbf16>, vector<2x4xbf16>, vector<256x4xf32> -> vector<256x4xf32>
    %189 = arith.addf %184, %188 : vector<256x4xf32>
    %c0_67 = arith.constant 0 : index
    %c0_68 = arith.constant 0 : index
    %190 = vector.load %arg9[%c0_67, %c0_68] : memref<256x4xf32, #tpu.memory_space<vmem>>, vector<256x4xf32>
    tpu.vector_store %arg9[%c0_67, %c0_68], %189 {strides = array<i32>} : memref<256x4xf32, #tpu.memory_space<vmem>>, vector<256x4xf32>,
    %c0_69 = arith.constant 0 : index
    %c0_70 = arith.constant 0 : index
    %191 = vector.load %arg9[%c0_69, %c0_70] : memref<256x4xf32, #tpu.memory_space<vmem>>, vector<256x4xf32>
    %192 = arith.truncf %130 : vector<256x2xf32> to vector<256x2xbf16>
    %c2 = arith.constant 2 : index
    %c0_71 = arith.constant 0 : index
    %c0_72 = arith.constant 0 : index
    %193 = vector.load %arg5[%c2, %c0_71, %c0_72] : memref<4x2x4xbf16, #tpu.memory_space<vmem>>, vector<1x2x4xbf16>
    %194 = vector.shape_cast %193 : vector<1x2x4xbf16> to vector<2x4xbf16>
    %cst_73 = arith.constant dense<0.000000e+00> : vector<256x4xf32>
    %195 = tpu.matmul %192, %194, %cst_73 {dimension_numbers = #tpu.dot_dimension_numbers<[1], [0], [0], [1], [0, 0, 1, 1], [], []>} : vector<256x2xbf16>, vector<2x4xbf16>, vector<256x4xf32> -> vector<256x4xf32>
    %196 = arith.addf %191, %195 : vector<256x4xf32>
    %c0_74 = arith.constant 0 : index
    %c0_75 = arith.constant 0 : index
    %197 = vector.load %arg9[%c0_74, %c0_75] : memref<256x4xf32, #tpu.memory_space<vmem>>, vector<256x4xf32>
    tpu.vector_store %arg9[%c0_74, %c0_75], %196 {strides = array<i32>} : memref<256x4xf32, #tpu.memory_space<vmem>>, vector<256x4xf32>,
    %c0_76 = arith.constant 0 : index
    %c0_77 = arith.constant 0 : index
    %198 = vector.load %arg9[%c0_76, %c0_77] : memref<256x4xf32, #tpu.memory_space<vmem>>, vector<256x4xf32>
    %199 = arith.truncf %178 : vector<256x2xf32> to vector<256x2xbf16>
    %c3 = arith.constant 3 : index
    %c0_78 = arith.constant 0 : index
    %c0_79 = arith.constant 0 : index
    %200 = vector.load %arg5[%c3, %c0_78, %c0_79] : memref<4x2x4xbf16, #tpu.memory_space<vmem>>, vector<1x2x4xbf16>
    %201 = vector.shape_cast %200 : vector<1x2x4xbf16> to vector<2x4xbf16>
    %cst_80 = arith.constant dense<0.000000e+00> : vector<256x4xf32>
    %202 = tpu.matmul %199, %201, %cst_80 {dimension_numbers = #tpu.dot_dimension_numbers<[1], [0], [0], [1], [0, 0, 1, 1], [], []>} : vector<256x2xbf16>, vector<2x4xbf16>, vector<256x4xf32> -> vector<256x4xf32>
    %203 = arith.addf %198, %202 : vector<256x4xf32>
    %c0_81 = arith.constant 0 : index
    %c0_82 = arith.constant 0 : index
    %204 = vector.load %arg9[%c0_81, %c0_82] : memref<256x4xf32, #tpu.memory_space<vmem>>, vector<256x4xf32>
    tpu.vector_store %arg9[%c0_81, %c0_82], %203 {strides = array<i32>} : memref<256x4xf32, #tpu.memory_space<vmem>>, vector<256x4xf32>,
    %c0_83 = arith.constant 0 : index
    %c0_84 = arith.constant 0 : index
    %205 = vector.load %arg9[%c0_83, %c0_84] : memref<256x4xf32, #tpu.memory_space<vmem>>, vector<256x4xf32>
    %c0_85 = arith.constant 0 : index
    %c0_86 = arith.constant 0 : index
    %206 = vector.load %arg6[%c0_85, %c0_86] : memref<1x4xf32, #tpu.memory_space<vmem>>, vector<1x4xf32>
    %207 = vector.broadcast %206 : vector<1x4xf32> to vector<256x4xf32>
    %208 = arith.mulf %205, %207 : vector<256x4xf32>
    %c0_87 = arith.constant 0 : index
    %c0_88 = arith.constant 0 : index
    %209 = vector.load %arg7[%c0_87, %c0_88] : memref<1x4xf32, #tpu.memory_space<vmem>>, vector<1x4xf32>
    %210 = vector.broadcast %209 : vector<1x4xf32> to vector<256x4xf32>
    %211 = arith.addf %208, %210 : vector<256x4xf32>
    %212 = arith.negf %211 : vector<256x4xf32>
    %213 = math.exp %212 : vector<256x4xf32>
    %cst_89 = arith.constant 1.000000e+00 : f32
    %214 = vector.broadcast %cst_89 : f32 to vector<256x4xf32>
    %215 = arith.addf %214, %213 : vector<256x4xf32>
    %216 = arith.divf %214, %215 : vector<256x4xf32>
    %217 = arith.mulf %211, %216 : vector<256x4xf32>
    %218 = arith.truncf %217 : vector<256x4xf32> to vector<256x4xbf16>
    %c0_90 = arith.constant 0 : index
    %c0_91 = arith.constant 0 : index
    %c0_92 = arith.constant 0 : index
    %219 = vector.load %arg8[%c0_90, %c0_91, %c0_92] : memref<1x256x4xbf16, #tpu.memory_space<vmem>>, vector<1x256x4xbf16>
    %220 = vector.shape_cast %219 : vector<1x256x4xbf16> to vector<256x4xbf16>
    %221 = vector.shape_cast %218 : vector<256x4xbf16> to vector<1x256x4xbf16>
    tpu.vector_store %arg8[%c0_90, %c0_91, %c0_92], %221 {strides = array<i32>} : memref<1x256x4xbf16, #tpu.memory_space<vmem>>, vector<1x256x4xbf16>,
    return
  }
  func.func @transform_0(%arg0: i32) -> (i32, i32, i32) {
    %c0_i32 = arith.constant 0 : i32
    %c0_i32_0 = arith.constant 0 : i32
    %c0_i32_1 = arith.constant 0 : i32
    return %arg0, %c0_i32, %c0_i32_0 : i32, i32, i32
  }
  func.func @transform_1(%arg0: i32) -> (i32, i32) {
    %c0_i32 = arith.constant 0 : i32
    %c0_i32_0 = arith.constant 0 : i32
    %c0_i32_1 = arith.constant 0 : i32
    return %c0_i32, %c0_i32_0 : i32, i32
  }
  func.func @transform_2(%arg0: i32) -> (i32, i32) {
    %c0_i32 = arith.constant 0 : i32
    %c0_i32_0 = arith.constant 0 : i32
    %c0_i32_1 = arith.constant 0 : i32
    return %c0_i32, %c0_i32_0 : i32, i32
  }
  func.func @transform_3(%arg0: i32) -> (i32, i32) {
    %c0_i32 = arith.constant 0 : i32
    %c0_i32_0 = arith.constant 0 : i32
    %c0_i32_1 = arith.constant 0 : i32
    return %c0_i32, %c0_i32_0 : i32, i32
  }
  func.func @transform_4(%arg0: i32) -> (i32, i32, i32) {
    %c0_i32 = arith.constant 0 : i32
    %c0_i32_0 = arith.constant 0 : i32
    %c0_i32_1 = arith.constant 0 : i32
    %c0_i32_2 = arith.constant 0 : i32
    return %c0_i32, %c0_i32_0, %c0_i32_1 : i32, i32, i32
  }
  func.func @transform_5(%arg0: i32) -> (i32, i32) {
    %c0_i32 = arith.constant 0 : i32
    %c0_i32_0 = arith.constant 0 : i32
    %c0_i32_1 = arith.constant 0 : i32
    return %c0_i32, %c0_i32_0 : i32, i32
  }
  func.func @transform_6(%arg0: i32) -> (i32, i32) {
    %c0_i32 = arith.constant 0 : i32
    %c0_i32_0 = arith.constant 0 : i32
    %c0_i32_1 = arith.constant 0 : i32
    return %c0_i32, %c0_i32_0 : i32, i32
  }
  func.func @transform_7(%arg0: i32) -> (i32, i32, i32) {
    %c0_i32 = arith.constant 0 : i32
    %c0_i32_0 = arith.constant 0 : i32
    %c0_i32_1 = arith.constant 0 : i32
    return %arg0, %c0_i32, %c0_i32_0 : i32, i32, i32
  }
}

</mosaic_0001>

<llo_original>
// kernel: tpu_custom_call.1
$region0: #{tpu_custom_call.1}
  #allocation0 [shape = 'u32[]', space=smem, size = 0x4, offset = 0x4, fixed_abs, tag = 'smem constant byte address 0x4 - core index']
  #allocation1 [shape = 'u32[144,128]{1,0:T(1,128)}', space=vmem, size = 0x12000, scoped, tag = 'internal scratch']
  #allocation2 [shape = 'f32[256,4]{1,0:T(8,128)}', space=vmem, size = 0x20000, scoped, tag = 'scratch operand']
  %s0 = inlined_call_operand.vmem [shape: bf16[2,256,4], index: 0, kind: input, shape index: {}]
  %s1 = inlined_call_operand.vmem [shape: bf16[4,2], index: 1, kind: input, shape index: {}]
  %s2 = inlined_call_operand.vmem [shape: f32[1,2], index: 2, kind: input, shape index: {}]
  %s3 = inlined_call_operand.vmem [shape: f32[1,2], index: 3, kind: input, shape index: {}]
  %s4 = inlined_call_operand.vmem [shape: bf16[4,2,4], index: 4, kind: input, shape index: {}]
  %s5 = inlined_call_operand.vmem [shape: f32[1,4], index: 5, kind: input, shape index: {}]
  %s6 = inlined_call_operand.vmem [shape: f32[1,4], index: 6, kind: input, shape index: {}]
  %s7 = inlined_call_operand.vmem [shape: bf16[2,256,4], index: 7, kind: output, shape index: {}]
  %s8 = sld [smem:[#allocation0]]
  $region61: #{tpu_custom_call.1} parent=0
    _
  %s10 = ssub.s32 1, %s8
  %s11 = scalar_select 0, %s10, %s8
  loop: start=0, step=1, limit=4
  $region2: #{tpu_custom_call.1} parent=0 // loop_pre_header
    _
  $region3: #{tpu_custom_call.1} parent=0 // loop_header
    %s13 = sphi 0, %s17
    %p14 = scmp.ge.s32.totalorder %s13, 4
    %s23 = sphi 0, %s25
    %s26 = sphi 0, %s23
    %s27 = sphi 0, %s26
    %s43 = sphi 0, %s27
    %s47 = sphi 0, %s47
    %s49 = sphi 0, %s47
    %s50 = sphi 0, %s49
    %s64 = sphi 0, %s50
    %s68 = sphi 0, %s68
    %s70 = sphi 0, %s68
    %s71 = sphi 0, %s70
    %s85 = sphi 0, %s71
    %s89 = sphi 0, %s89
    %s91 = sphi 0, %s89
    %s92 = sphi 0, %s91
    %s106 = sphi 0, %s92
    %s110 = sphi 0, %s110
    %s112 = sphi 0, %s110
    %s113 = sphi 0, %s112
    %s127 = sphi 0, %s113
    %s131 = sphi 0, %s131
    %s133 = sphi 0, %s131
    %s134 = sphi 0, %s133
    %s148 = sphi 0, %s134
    %s152 = sphi 0, %s152
    %s154 = sphi 0, %s152
    %s155 = sphi 0, %s154
    %s169 = sphi 0, %s155
    %s175 = sphi 0, %s177
    %s178 = sphi 0, %s175
    %s179 = sphi 0, %s178
    %s195 = sphi 0, %s179
  $region4: #{tpu_custom_call.1} parent=0 // loop_header_branch
    %16 = sbr.rel (%p14) target = $region8
  $region5: #{tpu_custom_call.1} parent=0 // loop_body
    %s18 = ssub.s32 %s13, 1
    %s19 = ssub.s32 %s13, 2
    %s20 = sadd.s32 %s13, 1
    %s21 = ssub.s32 %s13, %s20
    %p22 = scmp.eq.s32.totalorder %s21, 0
    %s24 = sadd.s32 %s23, 1
    %s25 = scalar_select %p22, %s23, %s24
    %p28 = pneg %p22
    %p29 = scmp.eq.s32.totalorder %s13, 1
    %p30 = por %p28, %p29
    %p31 = scmp.ne.s32.totalorder %s23, %s26
    %p32 = scmp.eq.s32.totalorder %s13, 0
    %p33 = por %p31, %p32
    %p34 = scmp.ne.s32.totalorder %s23, %s26
    %p35 = scmp.eq.s32.totalorder %s18, 1
    %p36 = por %p34, %p35
    %p37 = scmp.ne.s32.totalorder %s26, %s27
    %p38 = scmp.eq.s32.totalorder %s18, 0
    %p39 = por %p37, %p38
    %p40 = scmp.ne.s32.totalorder %s26, %s27
    %p41 = scmp.eq.s32.totalorder %s19, 1
    %p42 = por %p40, %p41
    %p44 = scmp.ne.s32.totalorder %s27, %s43
    %p45 = scmp.eq.s32.totalorder %s19, 0
    %p46 = por %p44, %p45
    %s48 = sadd.s32 %s47, 1
    %p51 = scmp.eq.s32.totalorder %s13, 1
    %p52 = scmp.ne.s32.totalorder %s47, %s49
    %p53 = scmp.eq.s32.totalorder %s13, 0
    %p54 = por %p52, %p53
    %p55 = scmp.ne.s32.totalorder %s47, %s49
    %p56 = scmp.eq.s32.totalorder %s18, 1
    %p57 = por %p55, %p56
    %p58 = scmp.ne.s32.totalorder %s49, %s50
    %p59 = scmp.eq.s32.totalorder %s18, 0
    %p60 = por %p58, %p59
    %p61 = scmp.ne.s32.totalorder %s49, %s50
    %p62 = scmp.eq.s32.totalorder %s19, 1
    %p63 = por %p61, %p62
    %p65 = scmp.ne.s32.totalorder %s50, %s64
    %p66 = scmp.eq.s32.totalorder %s19, 0
    %p67 = por %p65, %p66
    %s69 = sadd.s32 %s68, 1
    %p72 = scmp.eq.s32.totalorder %s13, 1
    %p73 = scmp.ne.s32.totalorder %s68, %s70
    %p74 = scmp.eq.s32.totalorder %s13, 0
    %p75 = por %p73, %p74
    %p76 = scmp.ne.s32.totalorder %s68, %s70
    %p77 = scmp.eq.s32.totalorder %s18, 1
    %p78 = por %p76, %p77
    %p79 = scmp.ne.s32.totalorder %s70, %s71
    %p80 = scmp.eq.s32.totalorder %s18, 0
    %p81 = por %p79, %p80
    %p82 = scmp.ne.s32.totalorder %s70, %s71
    %p83 = scmp.eq.s32.totalorder %s19, 1
    %p84 = por %p82, %p83
    %p86 = scmp.ne.s32.totalorder %s71, %s85
    %p87 = scmp.eq.s32.totalorder %s19, 0
    %p88 = por %p86, %p87
    %s90 = sadd.s32 %s89, 1
    %p93 = scmp.eq.s32.totalorder %s13, 1
    %p94 = scmp.ne.s32.totalorder %s89, %s91
    %p95 = scmp.eq.s32.totalorder %s13, 0
    %p96 = por %p94, %p95
    %p97 = scmp.ne.s32.totalorder %s89, %s91
    %p98 = scmp.eq.s32.totalorder %s18, 1
    %p99 = por %p97, %p98
    %p100 = scmp.ne.s32.totalorder %s91, %s92
    %p101 = scmp.eq.s32.totalorder %s18, 0
    %p102 = por %p100, %p101
    %p103 = scmp.ne.s32.totalorder %s91, %s92
    %p104 = scmp.eq.s32.totalorder %s19, 1
    %p105 = por %p103, %p104
    %p107 = scmp.ne.s32.totalorder %s92, %s106
    %p108 = scmp.eq.s32.totalorder %s19, 0
    %p109 = por %p107, %p108
    %s111 = sadd.s32 %s110, 1
    %p114 = scmp.eq.s32.totalorder %s13, 1
    %p115 = scmp.ne.s32.totalorder %s110, %s112
    %p116 = scmp.eq.s32.totalorder %s13, 0
    %p117 = por %p115, %p116
    %p118 = scmp.ne.s32.totalorder %s110, %s112
    %p119 = scmp.eq.s32.totalorder %s18, 1
    %p120 = por %p118, %p119
    %p121 = scmp.ne.s32.totalorder %s112, %s113
    %p122 = scmp.eq.s32.totalorder %s18, 0
    %p123 = por %p121, %p122
    %p124 = scmp.ne.s32.totalorder %s112, %s113
    %p125 = scmp.eq.s32.totalorder %s19, 1
    %p126 = por %p124, %p125
    %p128 = scmp.ne.s32.totalorder %s113, %s127
    %p129 = scmp.eq.s32.totalorder %s19, 0
    %p130 = por %p128, %p129
    %s132 = sadd.s32 %s131, 1
    %p135 = scmp.eq.s32.totalorder %s13, 1
    %p136 = scmp.ne.s32.totalorder %s131, %s133
    %p137 = scmp.eq.s32.totalorder %s13, 0
    %p138 = por %p136, %p137
    %p139 = scmp.ne.s32.totalorder %s131, %s133
    %p140 = scmp.eq.s32.totalorder %s18, 1
    %p141 = por %p139, %p140
    %p142 = scmp.ne.s32.totalorder %s133, %s134
    %p143 = scmp.eq.s32.totalorder %s18, 0
    %p144 = por %p142, %p143
    %p145 = scmp.ne.s32.totalorder %s133, %s134
    %p146 = scmp.eq.s32.totalorder %s19, 1
    %p147 = por %p145, %p146
    %p149 = scmp.ne.s32.totalorder %s134, %s148
    %p150 = scmp.eq.s32.totalorder %s19, 0
    %p151 = por %p149, %p150
    %s153 = sadd.s32 %s152, 1
    %p156 = scmp.eq.s32.totalorder %s13, 1
    %p157 = scmp.ne.s32.totalorder %s152, %s154
    %p158 = scmp.eq.s32.totalorder %s13, 0
    %p159 = por %p157, %p158
    %p160 = scmp.ne.s32.totalorder %s152, %s154
    %p161 = scmp.eq.s32.totalorder %s18, 1
    %p162 = por %p160, %p161
    %p163 = scmp.ne.s32.totalorder %s154, %s155
    %p164 = scmp.eq.s32.totalorder %s18, 0
    %p165 = por %p163, %p164
    %p166 = scmp.ne.s32.totalorder %s154, %s155
    %p167 = scmp.eq.s32.totalorder %s19, 1
    %p168 = por %p166, %p167
    %p170 = scmp.ne.s32.totalorder %s155, %s169
    %p171 = scmp.eq.s32.totalorder %s19, 0
    %p172 = por %p170, %p171
    %s173 = ssub.s32 %s13, %s20
    %p174 = scmp.eq.s32.totalorder %s173, 0
    %s176 = sadd.s32 %s175, 1
    %s177 = scalar_select %p174, %s175, %s176
    %p180 = pneg %p174
    %p181 = scmp.eq.s32.totalorder %s13, 1
    %p182 = por %p180, %p181
    %p183 = scmp.ne.s32.totalorder %s175, %s178
    %p184 = scmp.eq.s32.totalorder %s13, 0
    %p185 = por %p183, %p184
    %p186 = scmp.ne.s32.totalorder %s175, %s178
    %p187 = scmp.eq.s32.totalorder %s18, 1
    %p188 = por %p186, %p187
    %p189 = scmp.ne.s32.totalorder %s178, %s179
    %p190 = scmp.eq.s32.totalorder %s18, 0
    %p191 = por %p189, %p190
    %p192 = scmp.ne.s32.totalorder %s178, %s179
    %p193 = scmp.eq.s32.totalorder %s19, 1
    %p194 = por %p192, %p193
    %p196 = scmp.ne.s32.totalorder %s179, %s195
    %p197 = scmp.eq.s32.totalorder %s19, 0
    %p198 = por %p196, %p197
    %p199 = scmp.le.s32.totalorder 1, %s13
    %p200 = scmp.lt.s32.totalorder %s13, 3
    %p201 = pnand %p199, %p200
    %p202 = pneg %p201
    // Predicated region
    $region9: #{tpu_custom_call.1} parent=5 // pred_check
      _
    $region10: #{tpu_custom_call.1} parent=5 // pred_check_branch
      %204 = sbr.rel (%p201) target = $region12
    $region11: #{tpu_custom_call.1} parent=5 // pred_region
      %s205 = ssub.s32 %s13, 1
      // Predicated region
      $region13: #{tpu_custom_call.1} parent=11 // pred_check
        %p206 = pneg %p60
      $region14: #{tpu_custom_call.1} parent=11 // pred_check_branch
        %208 = sbr.rel (%p206) target = $region16
      $region15: #{tpu_custom_call.1} parent=11 // pred_region
        _
      $region16: #{tpu_custom_call.1} parent=11 // pred_fallthru
        _
      // Predicated region
      $region17: #{tpu_custom_call.1} parent=11 // pred_check
        %p209 = pneg %p81
      $region18: #{tpu_custom_call.1} parent=11 // pred_check_branch
        %211 = sbr.rel (%p209) target = $region20
      $region19: #{tpu_custom_call.1} parent=11 // pred_region
        _
      $region20: #{tpu_custom_call.1} parent=11 // pred_fallthru
        _
      // Predicated region
      $region21: #{tpu_custom_call.1} parent=11 // pred_check
        %p212 = pneg %p102
      $region22: #{tpu_custom_call.1} parent=11 // pred_check_branch
        %214 = sbr.rel (%p212) target = $region24
      $region23: #{tpu_custom_call.1} parent=11 // pred_region
        _
      $region24: #{tpu_custom_call.1} parent=11 // pred_fallthru
        _
      // Predicated region
      $region25: #{tpu_custom_call.1} parent=11 // pred_check
        %p215 = pneg %p123
      $region26: #{tpu_custom_call.1} parent=11 // pred_check_branch
        %217 = sbr.rel (%p215) target = $region28
      $region27: #{tpu_custom_call.1} parent=11 // pred_region
        _
      $region28: #{tpu_custom_call.1} parent=11 // pred_fallthru
        _
      // Predicated region
      $region29: #{tpu_custom_call.1} parent=11 // pred_check
        %p218 = pneg %p144
      $region30: #{tpu_custom_call.1} parent=11 // pred_check_branch
        %220 = sbr.rel (%p218) target = $region32
      $region31: #{tpu_custom_call.1} parent=11 // pred_region
        _
      $region32: #{tpu_custom_call.1} parent=11 // pred_fallthru
        _
      // Predicated region
      $region33: #{tpu_custom_call.1} parent=11 // pred_check
        %p221 = pneg %p165
      $region34: #{tpu_custom_call.1} parent=11 // pred_check_branch
        %223 = sbr.rel (%p221) target = $region36
      $region35: #{tpu_custom_call.1} parent=11 // pred_region
        _
      $region36: #{tpu_custom_call.1} parent=11 // pred_fallthru
        _
    $region12: #{tpu_custom_call.1} parent=5 // pred_fallthru
      _
    %p224 = scmp.lt.s32.totalorder %s13, 2
    // Predicated region
    $region37: #{tpu_custom_call.1} parent=5 // pred_check
      %p225 = pneg %p224
    $region38: #{tpu_custom_call.1} parent=5 // pred_check_branch
      %227 = sbr.rel (%p225) target = $region40
    $region39: #{tpu_custom_call.1} parent=5 // pred_region
      // Predicated region
      $region41: #{tpu_custom_call.1} parent=39 // pred_check
        %p228 = pneg %p33
      $region42: #{tpu_custom_call.1} parent=39 // pred_check_branch
        %230 = sbr.rel (%p228) target = $region44
      $region43: #{tpu_custom_call.1} parent=39 // pred_region
        %p231 = scmp.lt.s32.totalorder %s13, 1
        %s232 = scalar_select %p231, %s13, 1
        %s233 = smul.addr %s232, 32
        %s234 = smul.addr %s233, 4
        %s235 = scalar_lea.vmem %s0, %s234
      $region44: #{tpu_custom_call.1} parent=39 // pred_fallthru
        _
    $region40: #{tpu_custom_call.1} parent=5 // pred_fallthru
      _
    %p236 = scmp.le.s32.totalorder 1, %s13
    %p237 = scmp.lt.s32.totalorder %s13, 3
    %p238 = pnand %p236, %p237
    %p239 = pneg %p238
    // Predicated region
    $region45: #{tpu_custom_call.1} parent=5 // pred_check
      _
    $region46: #{tpu_custom_call.1} parent=5 // pred_check_branch
      %241 = sbr.rel (%p238) target = $region48
    $region47: #{tpu_custom_call.1} parent=5 // pred_region
      %s242 = ssub.s32 %s13, 1
      %p243 = scmp.lt.s32.totalorder %s18, 1
      %s244 = scalar_select %p243, %s18, 1
      %s245 = smul.addr %s244, 32
      %s246 = smul.addr %s245, 4
      %s247 = scalar_lea.vmem %s0, %s246
      %p248 = pneg %p39
      %p249 = pneg %p36
      %p250 = pneg %p60
      %p251 = pneg %p57
      %p252 = pneg %p81
      %p253 = pneg %p78
      %p254 = pneg %p102
      %p255 = pneg %p99
      %p256 = pneg %p123
      %p257 = pneg %p120
      %p258 = pneg %p144
      %p259 = pneg %p141
      %p260 = pneg %p165
      %p261 = pneg %p162
      %p262 = pneg %p191
      %p263 = pneg %p188
      %p264 = scmp.lt.s32.totalorder %s18, 1
      %s265 = scalar_select %p264, %s18, 1
      %s266 = smul.addr %s265, 32
      %s267 = smul.addr %s266, 4
      %s268 = scalar_lea.vmem %s7, %s267
      %p269 = scmp.lt.s32.totalorder %s18, 1
      %s270 = scalar_select %p269, %s18, 1
      %s271 = smul.addr %s270, 32
      %s272 = smul.addr %s271, 4
      %s273 = scalar_lea.vmem %s0, %s272
      %p274 = scmp.lt.s32.totalorder %s18, 1
      %s275 = scalar_select %p274, %s18, 1
      %s276 = smul.addr %s275, 32
      %s277 = smul.addr %s276, 4
      %s278 = scalar_lea.vmem %s7, %s277
      %v280 = vld [vmem:[%s273] sm:$0xf]
      %v281 = vld [vmem:[%s273 + $0x4] sm:$0xf]
      %v282 = vld [vmem:[%s273 + $0x8] sm:$0xf]
      %v283 = vld [vmem:[%s273 + $0xc] sm:$0xf]
      %v284 = vld [vmem:[%s273 + $0x10] sm:$0xf]
      %v285 = vld [vmem:[%s273 + $0x14] sm:$0xf]
      %v286 = vld [vmem:[%s273 + $0x18] sm:$0xf]
      %v287 = vld [vmem:[%s273 + $0x1c] sm:$0xf]
      %v288 = vld [vmem:[%s273 + $0x20] sm:$0xf]
      %v289 = vld [vmem:[%s273 + $0x24] sm:$0xf]
      %v290 = vld [vmem:[%s273 + $0x28] sm:$0xf]
      %v291 = vld [vmem:[%s273 + $0x2c] sm:$0xf]
      %v292 = vld [vmem:[%s273 + $0x30] sm:$0xf]
      %v293 = vld [vmem:[%s273 + $0x34] sm:$0xf]
      %v294 = vld [vmem:[%s273 + $0x38] sm:$0xf]
      %v295 = vld [vmem:[%s273 + $0x3c] sm:$0xf]
      %v296 = vld [vmem:[%s273 + $0x40] sm:$0xf]
      %v297 = vld [vmem:[%s273 + $0x44] sm:$0xf]
      %v298 = vld [vmem:[%s273 + $0x48] sm:$0xf]
      %v299 = vld [vmem:[%s273 + $0x4c] sm:$0xf]
      %v300 = vld [vmem:[%s273 + $0x50] sm:$0xf]
      %v301 = vld [vmem:[%s273 + $0x54] sm:$0xf]
      %v302 = vld [vmem:[%s273 + $0x58] sm:$0xf]
      %v303 = vld [vmem:[%s273 + $0x5c] sm:$0xf]
      %v304 = vld [vmem:[%s273 + $0x60] sm:$0xf]
      %v305 = vld [vmem:[%s273 + $0x64] sm:$0xf]
      %v306 = vld [vmem:[%s273 + $0x68] sm:$0xf]
      %v307 = vld [vmem:[%s273 + $0x6c] sm:$0xf]
      %v308 = vld [vmem:[%s273 + $0x70] sm:$0xf]
      %v309 = vld [vmem:[%s273 + $0x74] sm:$0xf]
      %v310 = vld [vmem:[%s273 + $0x78] sm:$0xf]
      %v311 = vld [vmem:[%s273 + $0x7c] sm:$0xf]
      %v312 = vld [vmem:[%s1] sm:$0x3]
      %v345 = vunpack.c.l.b16 %v280
      %v346 = vunpack.c.l.b16 %v281
      %v347 = vunpack.c.l.b16 %v282
      %v348 = vunpack.c.l.b16 %v283
      %v349 = vunpack.c.l.b16 %v284
      %v350 = vunpack.c.l.b16 %v285
      %v351 = vunpack.c.l.b16 %v286
      %v352 = vunpack.c.l.b16 %v287
      %v353 = vunpack.c.l.b16 %v288
      %v354 = vunpack.c.l.b16 %v289
      %v355 = vunpack.c.l.b16 %v290
      %v356 = vunpack.c.l.b16 %v291
      %v357 = vunpack.c.l.b16 %v292
      %v358 = vunpack.c.l.b16 %v293
      %v359 = vunpack.c.l.b16 %v294
      %v360 = vunpack.c.l.b16 %v295
      %v361 = vunpack.c.l.b16 %v296
      %v362 = vunpack.c.l.b16 %v297
      %v363 = vunpack.c.l.b16 %v298
      %v364 = vunpack.c.l.b16 %v299
      %v365 = vunpack.c.l.b16 %v300
      %v366 = vunpack.c.l.b16 %v301
      %v367 = vunpack.c.l.b16 %v302
      %v368 = vunpack.c.l.b16 %v303
      %v369 = vunpack.c.l.b16 %v304
      %v370 = vunpack.c.l.b16 %v305
      %v371 = vunpack.c.l.b16 %v306
      %v372 = vunpack.c.l.b16 %v307
      %v373 = vunpack.c.l.b16 %v308
      %v374 = vunpack.c.l.b16 %v309
      %v375 = vunpack.c.l.b16 %v310
      %v376 = vunpack.c.l.b16 %v311
      %v377 = vpack.c.b16 %v346, %v345
      %v378 = vpack.c.b16 %v348, %v347
      %v379 = vpack.c.b16 %v350, %v349
      %v380 = vpack.c.b16 %v352, %v351
      %v381 = vpack.c.b16 %v354, %v353
      %v382 = vpack.c.b16 %v356, %v355
      %v383 = vpack.c.b16 %v358, %v357
      %v384 = vpack.c.b16 %v360, %v359
      %v385 = vpack.c.b16 %v362, %v361
      %v386 = vpack.c.b16 %v364, %v363
      %v387 = vpack.c.b16 %v366, %v365
      %v388 = vpack.c.b16 %v368, %v367
      %v389 = vpack.c.b16 %v370, %v369
      %v390 = vpack.c.b16 %v372, %v371
      %v391 = vpack.c.b16 %v374, %v373
      %v392 = vpack.c.b16 %v376, %v375
      %vm393 = vcmask 31744
      %v395 = vsel %vm393, %v377, 0
      %v398 = vsel %vm393, %v378, 0
      %v401 = vsel %vm393, %v379, 0
      %v404 = vsel %vm393, %v380, 0
      %v407 = vsel %vm393, %v381, 0
      %v410 = vsel %vm393, %v382, 0
      %v413 = vsel %vm393, %v383, 0
      %v416 = vsel %vm393, %v384, 0
      %v419 = vsel %vm393, %v385, 0
      %v422 = vsel %vm393, %v386, 0
      %v425 = vsel %vm393, %v387, 0
      %v428 = vsel %vm393, %v388, 0
      %v431 = vsel %vm393, %v389, 0
      %v434 = vsel %vm393, %v390, 0
      %v437 = vsel %vm393, %v391, 0
      %v440 = vsel %vm393, %v392, 0
      %vm442 = vcmask 1041408
      %v444 = vsel %vm442, %v312, 0
      %446 = vmatprep.subr.bf16.mxu0 0
      %447 = vmatpush1.bf16.msra.mxu0 0
      %448 = vmatprep.subr.bf16.mxu0 0
      %449 = vmatpush1.bf16.msra.mxu0 0
      %450 = vmatprep.subr.bf16.mxu0 0
      %451 = vmatpush1.bf16.msra.mxu0 0
      %452 = vmatprep.subr.bf16.mxu0 0
      %453 = vmatpush1.bf16.msra.mxu0 0
      %454 = vmatprep.subr.bf16.mxu0 0
      %455 = vmatpush1.bf16.msra.mxu0 0
      %456 = vmatprep.subr.bf16.mxu0 0
      %457 = vmatpush1.bf16.msra.mxu0 0
      %458 = vmatprep.subr.bf16.mxu0 0
      %459 = vmatpush1.bf16.msra.mxu0 0
      %460 = vmatprep.subr.bf16.mxu0 0
      %461 = vmatpush1.bf16.msra.mxu0 %v444
      %462 = vmatprep.subr.bf16.mxu0 0
      %463 = vmatpush2.bf16.msra.mxu0 0
      %464 = vmatprep.subr.bf16.mxu0 0
      %465 = vmatpush2.bf16.msra.mxu0 0
      %466 = vmatprep.subr.bf16.mxu0 0
      %467 = vmatpush2.bf16.msra.mxu0 0
      %468 = vmatprep.subr.bf16.mxu0 0
      %469 = vmatpush2.bf16.msra.mxu0 0
      %470 = vmatprep.subr.bf16.mxu0 0
      %471 = vmatpush2.bf16.msra.mxu0 0
      %472 = vmatprep.subr.bf16.mxu0 0
      %473 = vmatpush2.bf16.msra.mxu0 0
      %474 = vmatprep.subr.bf16.mxu0 0
      %475 = vmatpush2.bf16.msra.mxu0 0
      %476 = vmatprep.subr.bf16.mxu0 0
      %477 = vmatpush2.bf16.msra.mxu0 0
      %478 = vmatprep.mubr.bf16.mxu0 0
      %479 = vmatmul.mubr.bf16.gmra.mxu0 %v395
      %v480 = vpop.f32.mrf.mxu0
      %v481 = vadd.f32 0.0, %v480
      %v482 = vpop.f32.mrf.mxu0
      %v483 = vpop.f32.mrf.mxu0
      %v484 = vadd.f32 0.0, %v483
      %v485 = vpop.f32.mrf.mxu0
      %486 = vmatprep.mubr.bf16.mxu0 0
      %487 = vmatmul.mubr.bf16.gmra.mxu0 %v398
      %v488 = vpop.f32.mrf.mxu0
      %v489 = vadd.f32 0.0, %v488
      %v490 = vpop.f32.mrf.mxu0
      %v491 = vpop.f32.mrf.mxu0
      %v492 = vadd.f32 0.0, %v491
      %v493 = vpop.f32.mrf.mxu0
      %494 = vmatprep.mubr.bf16.mxu0 0
      %495 = vmatmul.mubr.bf16.gmra.mxu0 %v401
      %v496 = vpop.f32.mrf.mxu0
      %v497 = vadd.f32 0.0, %v496
      %v498 = vpop.f32.mrf.mxu0
      %v499 = vpop.f32.mrf.mxu0
      %v500 = vadd.f32 0.0, %v499
      %v501 = vpop.f32.mrf.mxu0
      %502 = vmatprep.mubr.bf16.mxu0 0
      %503 = vmatmul.mubr.bf16.gmra.mxu0 %v404
      %v504 = vpop.f32.mrf.mxu0
      %v505 = vadd.f32 0.0, %v504
      %v506 = vpop.f32.mrf.mxu0
      %v507 = vpop.f32.mrf.mxu0
      %v508 = vadd.f32 0.0, %v507
      %v509 = vpop.f32.mrf.mxu0
      %510 = vmatprep.mubr.bf16.mxu0 0
      %511 = vmatmul.mubr.bf16.gmra.mxu0 %v407
      %v512 = vpop.f32.mrf.mxu0
      %v513 = vadd.f32 0.0, %v512
      %v514 = vpop.f32.mrf.mxu0
      %v515 = vpop.f32.mrf.mxu0
      %v516 = vadd.f32 0.0, %v515
      %v517 = vpop.f32.mrf.mxu0
      %518 = vmatprep.mubr.bf16.mxu0 0
      %519 = vmatmul.mubr.bf16.gmra.mxu0 %v410
      %v520 = vpop.f32.mrf.mxu0
      %v521 = vadd.f32 0.0, %v520
      %v522 = vpop.f32.mrf.mxu0
      %v523 = vpop.f32.mrf.mxu0
      %v524 = vadd.f32 0.0, %v523
      %v525 = vpop.f32.mrf.mxu0
      %526 = vmatprep.mubr.bf16.mxu0 0
      %527 = vmatmul.mubr.bf16.gmra.mxu0 %v413
      %v528 = vpop.f32.mrf.mxu0
      %v529 = vadd.f32 0.0, %v528
      %v530 = vpop.f32.mrf.mxu0
      %v531 = vpop.f32.mrf.mxu0
      %v532 = vadd.f32 0.0, %v531
      %v533 = vpop.f32.mrf.mxu0
      %534 = vmatprep.mubr.bf16.mxu0 0
      %535 = vmatmul.mubr.bf16.gmra.mxu0 %v416
      %v536 = vpop.f32.mrf.mxu0
      %v537 = vadd.f32 0.0, %v536
      %v538 = vpop.f32.mrf.mxu0
      %v539 = vpop.f32.mrf.mxu0
      %v540 = vadd.f32 0.0, %v539
      %v541 = vpop.f32.mrf.mxu0
      %542 = vmatprep.mubr.bf16.mxu0 0
      %543 = vmatmul.mubr.bf16.gmra.mxu0 %v419
      %v544 = vpop.f32.mrf.mxu0
      %v545 = vadd.f32 0.0, %v544
      %v546 = vpop.f32.mrf.mxu0
      %v547 = vpop.f32.mrf.mxu0
      %v548 = vadd.f32 0.0, %v547
      %v549 = vpop.f32.mrf.mxu0
      %550 = vmatprep.mubr.bf16.mxu0 0
      %551 = vmatmul.mubr.bf16.gmra.mxu0 %v422
      %v552 = vpop.f32.mrf.mxu0
      %v553 = vadd.f32 0.0, %v552
      %v554 = vpop.f32.mrf.mxu0
      %v555 = vpop.f32.mrf.mxu0
      %v556 = vadd.f32 0.0, %v555
      %v557 = vpop.f32.mrf.mxu0
      %558 = vmatprep.mubr.bf16.mxu0 0
      %559 = vmatmul.mubr.bf16.gmra.mxu0 %v425
      %v560 = vpop.f32.mrf.mxu0
      %v561 = vadd.f32 0.0, %v560
      %v562 = vpop.f32.mrf.mxu0
      %v563 = vpop.f32.mrf.mxu0
      %v564 = vadd.f32 0.0, %v563
      %v565 = vpop.f32.mrf.mxu0
      %566 = vmatprep.mubr.bf16.mxu0 0
      %567 = vmatmul.mubr.bf16.gmra.mxu0 %v428
      %v568 = vpop.f32.mrf.mxu0
      %v569 = vadd.f32 0.0, %v568
      %v570 = vpop.f32.mrf.mxu0
      %v571 = vpop.f32.mrf.mxu0
      %v572 = vadd.f32 0.0, %v571
      %v573 = vpop.f32.mrf.mxu0
      %574 = vmatprep.mubr.bf16.mxu0 0
      %575 = vmatmul.mubr.bf16.gmra.mxu0 %v431
      %v576 = vpop.f32.mrf.mxu0
      %v577 = vadd.f32 0.0, %v576
      %v578 = vpop.f32.mrf.mxu0
      %v579 = vpop.f32.mrf.mxu0
      %v580 = vadd.f32 0.0, %v579
      %v581 = vpop.f32.mrf.mxu0
      %582 = vmatprep.mubr.bf16.mxu0 0
      %583 = vmatmul.mubr.bf16.gmra.mxu0 %v434
      %v584 = vpop.f32.mrf.mxu0
      %v585 = vadd.f32 0.0, %v584
      %v586 = vpop.f32.mrf.mxu0
      %v587 = vpop.f32.mrf.mxu0
      %v588 = vadd.f32 0.0, %v587
      %v589 = vpop.f32.mrf.mxu0
      %590 = vmatprep.mubr.bf16.mxu0 0
      %591 = vmatmul.mubr.bf16.gmra.mxu0 %v437
      %v592 = vpop.f32.mrf.mxu0
      %v593 = vadd.f32 0.0, %v592
      %v594 = vpop.f32.mrf.mxu0
      %v595 = vpop.f32.mrf.mxu0
      %v596 = vadd.f32 0.0, %v595
      %v597 = vpop.f32.mrf.mxu0
      %598 = vmatprep.mubr.bf16.mxu0 0
      %599 = vmatmul.mubr.bf16.gmra.mxu0 %v440
      %v600 = vpop.f32.mrf.mxu0
      %v601 = vadd.f32 0.0, %v600
      %v602 = vpop.f32.mrf.mxu0
      %v603 = vpop.f32.mrf.mxu0
      %v604 = vadd.f32 0.0, %v603
      %v605 = vpop.f32.mrf.mxu0
      %606 = vdwg.mxu0
      %v607 = vld [vmem:[%s2] sm:$0x1]
      %v609 = vlaneseq
      %v610 = vshrl.u32 %v609, 7
      %v611 = vsub.s32 0, %v610
      %v612 = vrot.slane %v607, %v611
      %v614 = vmul.f32 %v481, %v612
      %v615 = vmul.f32 %v484, %v612
      %v616 = vmul.f32 %v489, %v612
      %v617 = vmul.f32 %v492, %v612
      %v618 = vmul.f32 %v497, %v612
      %v619 = vmul.f32 %v500, %v612
      %v620 = vmul.f32 %v505, %v612
      %v621 = vmul.f32 %v508, %v612
      %v622 = vmul.f32 %v513, %v612
      %v623 = vmul.f32 %v516, %v612
      %v624 = vmul.f32 %v521, %v612
      %v625 = vmul.f32 %v524, %v612
      %v626 = vmul.f32 %v529, %v612
      %v627 = vmul.f32 %v532, %v612
      %v628 = vmul.f32 %v537, %v612
      %v629 = vmul.f32 %v540, %v612
      %v630 = vmul.f32 %v545, %v612
      %v631 = vmul.f32 %v548, %v612
      %v632 = vmul.f32 %v553, %v612
      %v633 = vmul.f32 %v556, %v612
      %v634 = vmul.f32 %v561, %v612
      %v635 = vmul.f32 %v564, %v612
      %v636 = vmul.f32 %v569, %v612
      %v637 = vmul.f32 %v572, %v612
      %v638 = vmul.f32 %v577, %v612
      %v639 = vmul.f32 %v580, %v612
      %v640 = vmul.f32 %v585, %v612
      %v641 = vmul.f32 %v588, %v612
      %v642 = vmul.f32 %v593, %v612
      %v643 = vmul.f32 %v596, %v612
      %v644 = vmul.f32 %v601, %v612
      %v645 = vmul.f32 %v604, %v612
      %v646 = vld [vmem:[%s3] sm:$0x1]
      %v648 = vlaneseq
      %v649 = vshrl.u32 %v648, 7
      %v650 = vsub.s32 0, %v649
      %v651 = vrot.slane %v646, %v650
      %v653 = vadd.f32 %v614, %v651
      %v654 = vadd.f32 %v615, %v651
      %v655 = vadd.f32 %v616, %v651
      %v656 = vadd.f32 %v617, %v651
      %v657 = vadd.f32 %v618, %v651
      %v658 = vadd.f32 %v619, %v651
      %v659 = vadd.f32 %v620, %v651
      %v660 = vadd.f32 %v621, %v651
      %v661 = vadd.f32 %v622, %v651
      %v662 = vadd.f32 %v623, %v651
      %v663 = vadd.f32 %v624, %v651
      %v664 = vadd.f32 %v625, %v651
      %v665 = vadd.f32 %v626, %v651
      %v666 = vadd.f32 %v627, %v651
      %v667 = vadd.f32 %v628, %v651
      %v668 = vadd.f32 %v629, %v651
      %v669 = vadd.f32 %v630, %v651
      %v670 = vadd.f32 %v631, %v651
      %v671 = vadd.f32 %v632, %v651
      %v672 = vadd.f32 %v633, %v651
      %v673 = vadd.f32 %v634, %v651
      %v674 = vadd.f32 %v635, %v651
      %v675 = vadd.f32 %v636, %v651
      %v676 = vadd.f32 %v637, %v651
      %v677 = vadd.f32 %v638, %v651
      %v678 = vadd.f32 %v639, %v651
      %v679 = vadd.f32 %v640, %v651
      %v680 = vadd.f32 %v641, %v651
      %v681 = vadd.f32 %v642, %v651
      %v682 = vadd.f32 %v643, %v651
      %v683 = vadd.f32 %v644, %v651
      %v684 = vadd.f32 %v645, %v651
      %v685 = vxor.u32 %v653, 2147483648
      %v686 = vxor.u32 %v654, 2147483648
      %v687 = vxor.u32 %v655, 2147483648
      %v688 = vxor.u32 %v656, 2147483648
      %v689 = vxor.u32 %v657, 2147483648
      %v690 = vxor.u32 %v658, 2147483648
      %v691 = vxor.u32 %v659, 2147483648
      %v692 = vxor.u32 %v660, 2147483648
      %v693 = vxor.u32 %v661, 2147483648
      %v694 = vxor.u32 %v662, 2147483648
      %v695 = vxor.u32 %v663, 2147483648
      %v696 = vxor.u32 %v664, 2147483648
      %v697 = vxor.u32 %v665, 2147483648
      %v698 = vxor.u32 %v666, 2147483648
      %v699 = vxor.u32 %v667, 2147483648
      %v700 = vxor.u32 %v668, 2147483648
      %v701 = vxor.u32 %v669, 2147483648
      %v702 = vxor.u32 %v670, 2147483648
      %v703 = vxor.u32 %v671, 2147483648
      %v704 = vxor.u32 %v672, 2147483648
      %v705 = vxor.u32 %v673, 2147483648
      %v706 = vxor.u32 %v674, 2147483648
      %v707 = vxor.u32 %v675, 2147483648
      %v708 = vxor.u32 %v676, 2147483648
      %v709 = vxor.u32 %v677, 2147483648
      %v710 = vxor.u32 %v678, 2147483648
      %v711 = vxor.u32 %v679, 2147483648
      %v712 = vxor.u32 %v680, 2147483648
      %v713 = vxor.u32 %v681, 2147483648
      %v714 = vxor.u32 %v682, 2147483648
      %v715 = vxor.u32 %v683, 2147483648
      %v716 = vxor.u32 %v684, 2147483648
      %v717 = vmul.f32 %v685, 1.442695
      %v718 = vpow.pop %v717
      %v719 = vmul.f32 %v686, 1.442695
      %v720 = vpow.pop %v719
      %v721 = vmul.f32 %v687, 1.442695
      %v722 = vpow.pop %v721
      %v723 = vmul.f32 %v688, 1.442695
      %v724 = vpow.pop %v723
      %v725 = vmul.f32 %v689, 1.442695
      %v726 = vpow.pop %v725
      %v727 = vmul.f32 %v690, 1.442695
      %v728 = vpow.pop %v727
      %v729 = vmul.f32 %v691, 1.442695
      %v730 = vpow.pop %v729
      %v731 = vmul.f32 %v692, 1.442695
      %v732 = vpow.pop %v731
      %v733 = vmul.f32 %v693, 1.442695
      %v734 = vpow.pop %v733
      %v735 = vmul.f32 %v694, 1.442695
      %v736 = vpow.pop %v735
      %v737 = vmul.f32 %v695, 1.442695
      %v738 = vpow.pop %v737
      %v739 = vmul.f32 %v696, 1.442695
      %v740 = vpow.pop %v739
      %v741 = vmul.f32 %v697, 1.442695
      %v742 = vpow.pop %v741
      %v743 = vmul.f32 %v698, 1.442695
      %v744 = vpow.pop %v743
      %v745 = vmul.f32 %v699, 1.442695
      %v746 = vpow.pop %v745
      %v747 = vmul.f32 %v700, 1.442695
      %v748 = vpow.pop %v747
      %v749 = vmul.f32 %v701, 1.442695
      %v750 = vpow.pop %v749
      %v751 = vmul.f32 %v702, 1.442695
      %v752 = vpow.pop %v751
      %v753 = vmul.f32 %v703, 1.442695
      %v754 = vpow.pop %v753
      %v755 = vmul.f32 %v704, 1.442695
      %v756 = vpow.pop %v755
      %v757 = vmul.f32 %v705, 1.442695
      %v758 = vpow.pop %v757
      %v759 = vmul.f32 %v706, 1.442695
      %v760 = vpow.pop %v759
      %v761 = vmul.f32 %v707, 1.442695
      %v762 = vpow.pop %v761
      %v763 = vmul.f32 %v708, 1.442695
      %v764 = vpow.pop %v763
      %v765 = vmul.f32 %v709, 1.442695
      %v766 = vpow.pop %v765
      %v767 = vmul.f32 %v710, 1.442695
      %v768 = vpow.pop %v767
      %v769 = vmul.f32 %v711, 1.442695
      %v770 = vpow.pop %v769
      %v771 = vmul.f32 %v712, 1.442695
      %v772 = vpow.pop %v771
      %v773 = vmul.f32 %v713, 1.442695
      %v774 = vpow.pop %v773
      %v775 = vmul.f32 %v714, 1.442695
      %v776 = vpow.pop %v775
      %v777 = vmul.f32 %v715, 1.442695
      %v778 = vpow.pop %v777
      %v779 = vmul.f32 %v716, 1.442695
      %v780 = vpow.pop %v779
      %v781 = vadd.f32 %v718, 1.0
      %v782 = vadd.f32 %v720, 1.0
      %v783 = vadd.f32 %v722, 1.0
      %v784 = vadd.f32 %v724, 1.0
      %v785 = vadd.f32 %v726, 1.0
      %v786 = vadd.f32 %v728, 1.0
      %v787 = vadd.f32 %v730, 1.0
      %v788 = vadd.f32 %v732, 1.0
      %v789 = vadd.f32 %v734, 1.0
      %v790 = vadd.f32 %v736, 1.0
      %v791 = vadd.f32 %v738, 1.0
      %v792 = vadd.f32 %v740, 1.0
      %v793 = vadd.f32 %v742, 1.0
      %v794 = vadd.f32 %v744, 1.0
      %v795 = vadd.f32 %v746, 1.0
      %v796 = vadd.f32 %v748, 1.0
      %v797 = vadd.f32 %v750, 1.0
      %v798 = vadd.f32 %v752, 1.0
      %v799 = vadd.f32 %v754, 1.0
      %v800 = vadd.f32 %v756, 1.0
      %v801 = vadd.f32 %v758, 1.0
      %v802 = vadd.f32 %v760, 1.0
      %v803 = vadd.f32 %v762, 1.0
      %v804 = vadd.f32 %v764, 1.0
      %v805 = vadd.f32 %v766, 1.0
      %v806 = vadd.f32 %v768, 1.0
      %v807 = vadd.f32 %v770, 1.0
      %v808 = vadd.f32 %v772, 1.0
      %v809 = vadd.f32 %v774, 1.0
      %v810 = vadd.f32 %v776, 1.0
      %v811 = vadd.f32 %v778, 1.0
      %v812 = vadd.f32 %v780, 1.0
      %v813 = vrcp.pop %v781
      %v814 = vmul.f32 1.0, %v813
      %v815 = vrcp.pop %v782
      %v816 = vmul.f32 1.0, %v815
      %v817 = vrcp.pop %v783
      %v818 = vmul.f32 1.0, %v817
      %v819 = vrcp.pop %v784
      %v820 = vmul.f32 1.0, %v819
      %v821 = vrcp.pop %v785
      %v822 = vmul.f32 1.0, %v821
      %v823 = vrcp.pop %v786
      %v824 = vmul.f32 1.0, %v823
      %v825 = vrcp.pop %v787
      %v826 = vmul.f32 1.0, %v825
      %v827 = vrcp.pop %v788
      %v828 = vmul.f32 1.0, %v827
      %v829 = vrcp.pop %v789
      %v830 = vmul.f32 1.0, %v829
      %v831 = vrcp.pop %v790
      %v832 = vmul.f32 1.0, %v831
      %v833 = vrcp.pop %v791
      %v834 = vmul.f32 1.0, %v833
      %v835 = vrcp.pop %v792
      %v836 = vmul.f32 1.0, %v835
      %v837 = vrcp.pop %v793
      %v838 = vmul.f32 1.0, %v837
      %v839 = vrcp.pop %v794
      %v840 = vmul.f32 1.0, %v839
      %v841 = vrcp.pop %v795
      %v842 = vmul.f32 1.0, %v841
      %v843 = vrcp.pop %v796
      %v844 = vmul.f32 1.0, %v843
      %v845 = vrcp.pop %v797
      %v846 = vmul.f32 1.0, %v845
      %v847 = vrcp.pop %v798
      %v848 = vmul.f32 1.0, %v847
      %v849 = vrcp.pop %v799
      %v850 = vmul.f32 1.0, %v849
      %v851 = vrcp.pop %v800
      %v852 = vmul.f32 1.0, %v851
      %v853 = vrcp.pop %v801
      %v854 = vmul.f32 1.0, %v853
      %v855 = vrcp.pop %v802
      %v856 = vmul.f32 1.0, %v855
      %v857 = vrcp.pop %v803
      %v858 = vmul.f32 1.0, %v857
      %v859 = vrcp.pop %v804
      %v860 = vmul.f32 1.0, %v859
      %v861 = vrcp.pop %v805
      %v862 = vmul.f32 1.0, %v861
      %v863 = vrcp.pop %v806
      %v864 = vmul.f32 1.0, %v863
      %v865 = vrcp.pop %v807
      %v866 = vmul.f32 1.0, %v865
      %v867 = vrcp.pop %v808
      %v868 = vmul.f32 1.0, %v867
      %v869 = vrcp.pop %v809
      %v870 = vmul.f32 1.0, %v869
      %v871 = vrcp.pop %v810
      %v872 = vmul.f32 1.0, %v871
      %v873 = vrcp.pop %v811
      %v874 = vmul.f32 1.0, %v873
      %v875 = vrcp.pop %v812
      %v876 = vmul.f32 1.0, %v875
      %v877 = vmul.f32 %v653, %v814
      %v878 = vmul.f32 %v654, %v816
      %v879 = vmul.f32 %v655, %v818
      %v880 = vmul.f32 %v656, %v820
      %v881 = vmul.f32 %v657, %v822
      %v882 = vmul.f32 %v658, %v824
      %v883 = vmul.f32 %v659, %v826
      %v884 = vmul.f32 %v660, %v828
      %v885 = vmul.f32 %v661, %v830
      %v886 = vmul.f32 %v662, %v832
      %v887 = vmul.f32 %v663, %v834
      %v888 = vmul.f32 %v664, %v836
      %v889 = vmul.f32 %v665, %v838
      %v890 = vmul.f32 %v666, %v840
      %v891 = vmul.f32 %v667, %v842
      %v892 = vmul.f32 %v668, %v844
      %v893 = vmul.f32 %v669, %v846
      %v894 = vmul.f32 %v670, %v848
      %v895 = vmul.f32 %v671, %v850
      %v896 = vmul.f32 %v672, %v852
      %v897 = vmul.f32 %v673, %v854
      %v898 = vmul.f32 %v674, %v856
      %v899 = vmul.f32 %v675, %v858
      %v900 = vmul.f32 %v676, %v860
      %v901 = vmul.f32 %v677, %v862
      %v902 = vmul.f32 %v678, %v864
      %v903 = vmul.f32 %v679, %v866
      %v904 = vmul.f32 %v680, %v868
      %v905 = vmul.f32 %v681, %v870
      %v906 = vmul.f32 %v682, %v872
      %v907 = vmul.f32 %v683, %v874
      %v908 = vmul.f32 %v684, %v876
      %v909 = vlaneseq
      %v910 = vshrl.u32 %v909, 7
      %v911 = vadd.s32 %v910, 8
      %v912 = vadd.s32 %v910, 16
      %v913 = vadd.s32 %v910, 24
      %v914 = vadd.s32 %v910, 32
      %v915 = vadd.s32 %v910, 40
      %v916 = vadd.s32 %v910, 48
      %v917 = vadd.s32 %v910, 56
      %v918 = vadd.s32 %v910, 64
      %v919 = vadd.s32 %v910, 72
      %v920 = vadd.s32 %v910, 80
      %v921 = vadd.s32 %v910, 88
      %v922 = vadd.s32 %v910, 96
      %v923 = vadd.s32 %v910, 104
      %v924 = vadd.s32 %v910, 112
      %v925 = vadd.s32 %v910, 120
      %v926 = vadd.s32 %v910, 128
      %v927 = vadd.s32 %v910, 136
      %v928 = vadd.s32 %v910, 144
      %v929 = vadd.s32 %v910, 152
      %v930 = vadd.s32 %v910, 160
      %v931 = vadd.s32 %v910, 168
      %v932 = vadd.s32 %v910, 176
      %v933 = vadd.s32 %v910, 184
      %v934 = vadd.s32 %v910, 192
      %v935 = vadd.s32 %v910, 200
      %v936 = vadd.s32 %v910, 208
      %v937 = vadd.s32 %v910, 216
      %v938 = vadd.s32 %v910, 224
      %v939 = vadd.s32 %v910, 232
      %v940 = vadd.s32 %v910, 240
      %v941 = vadd.s32 %v910, 248
      %vm942 = vcmp.lt.s32.totalorder %v910, 0
      %v943 = vsub.s32 0, %v910
      %v944 = vsel %vm942, %v943, %v910
      %v945 = vshrl.u32 %v944, 4
      %v946 = vand.u32 %v944, 15
      %v947 = vsub.s32 0, %v946
      %v948 = vsel %vm942, %v947, %v946
      %vm949 = vcmp.lt.s32.totalorder %v911, 0
      %v950 = vsub.s32 0, %v911
      %v951 = vsel %vm949, %v950, %v911
      %v952 = vshrl.u32 %v951, 4
      %v953 = vand.u32 %v951, 15
      %v954 = vsub.s32 0, %v953
      %v955 = vsel %vm949, %v954, %v953
      %vm956 = vcmp.lt.s32.totalorder %v912, 0
      %v957 = vsub.s32 0, %v912
      %v958 = vsel %vm956, %v957, %v912
      %v959 = vshrl.u32 %v958, 4
      %v960 = vand.u32 %v958, 15
      %v961 = vsub.s32 0, %v960
      %v962 = vsel %vm956, %v961, %v960
      %vm963 = vcmp.lt.s32.totalorder %v913, 0
      %v964 = vsub.s32 0, %v913
      %v965 = vsel %vm963, %v964, %v913
      %v966 = vshrl.u32 %v965, 4
      %v967 = vand.u32 %v965, 15
      %v968 = vsub.s32 0, %v967
      %v969 = vsel %vm963, %v968, %v967
      %vm970 = vcmp.lt.s32.totalorder %v914, 0
      %v971 = vsub.s32 0, %v914
      %v972 = vsel %vm970, %v971, %v914
      %v973 = vshrl.u32 %v972, 4
      %v974 = vand.u32 %v972, 15
      %v975 = vsub.s32 0, %v974
      %v976 = vsel %vm970, %v975, %v974
      %vm977 = vcmp.lt.s32.totalorder %v915, 0
      %v978 = vsub.s32 0, %v915
      %v979 = vsel %vm977, %v978, %v915
      %v980 = vshrl.u32 %v979, 4
      %v981 = vand.u32 %v979, 15
      %v982 = vsub.s32 0, %v981
      %v983 = vsel %vm977, %v982, %v981
      %vm984 = vcmp.lt.s32.totalorder %v916, 0
      %v985 = vsub.s32 0, %v916
      %v986 = vsel %vm984, %v985, %v916
      %v987 = vshrl.u32 %v986, 4
      %v988 = vand.u32 %v986, 15
      %v989 = vsub.s32 0, %v988
      %v990 = vsel %vm984, %v989, %v988
      %vm991 = vcmp.lt.s32.totalorder %v917, 0
      %v992 = vsub.s32 0, %v917
      %v993 = vsel %vm991, %v992, %v917
      %v994 = vshrl.u32 %v993, 4
      %v995 = vand.u32 %v993, 15
      %v996 = vsub.s32 0, %v995
      %v997 = vsel %vm991, %v996, %v995
      %vm998 = vcmp.lt.s32.totalorder %v918, 0
      %v999 = vsub.s32 0, %v918
      %v1000 = vsel %vm998, %v999, %v918
      %v1001 = vshrl.u32 %v1000, 4
      %v1002 = vand.u32 %v1000, 15
      %v1003 = vsub.s32 0, %v1002
      %v1004 = vsel %vm998, %v1003, %v1002
      %vm1005 = vcmp.lt.s32.totalorder %v919, 0
      %v1006 = vsub.s32 0, %v919
      %v1007 = vsel %vm1005, %v1006, %v919
      %v1008 = vshrl.u32 %v1007, 4
      %v1009 = vand.u32 %v1007, 15
      %v1010 = vsub.s32 0, %v1009
      %v1011 = vsel %vm1005, %v1010, %v1009
      %vm1012 = vcmp.lt.s32.totalorder %v920, 0
      %v1013 = vsub.s32 0, %v920
      %v1014 = vsel %vm1012, %v1013, %v920
      %v1015 = vshrl.u32 %v1014, 4
      %v1016 = vand.u32 %v1014, 15
      %v1017 = vsub.s32 0, %v1016
      %v1018 = vsel %vm1012, %v1017, %v1016
      %vm1019 = vcmp.lt.s32.totalorder %v921, 0
      %v1020 = vsub.s32 0, %v921
      %v1021 = vsel %vm1019, %v1020, %v921
      %v1022 = vshrl.u32 %v1021, 4
      %v1023 = vand.u32 %v1021, 15
      %v1024 = vsub.s32 0, %v1023
      %v1025 = vsel %vm1019, %v1024, %v1023
      %vm1026 = vcmp.lt.s32.totalorder %v922, 0
      %v1027 = vsub.s32 0, %v922
      %v1028 = vsel %vm1026, %v1027, %v922
      %v1029 = vshrl.u32 %v1028, 4
      %v1030 = vand.u32 %v1028, 15
      %v1031 = vsub.s32 0, %v1030
      %v1032 = vsel %vm1026, %v1031, %v1030
      %vm1033 = vcmp.lt.s32.totalorder %v923, 0
      %v1034 = vsub.s32 0, %v923
      %v1035 = vsel %vm1033, %v1034, %v923
      %v1036 = vshrl.u32 %v1035, 4
      %v1037 = vand.u32 %v1035, 15
      %v1038 = vsub.s32 0, %v1037
      %v1039 = vsel %vm1033, %v1038, %v1037
      %vm1040 = vcmp.lt.s32.totalorder %v924, 0
      %v1041 = vsub.s32 0, %v924
      %v1042 = vsel %vm1040, %v1041, %v924
      %v1043 = vshrl.u32 %v1042, 4
      %v1044 = vand.u32 %v1042, 15
      %v1045 = vsub.s32 0, %v1044
      %v1046 = vsel %vm1040, %v1045, %v1044
      %vm1047 = vcmp.lt.s32.totalorder %v925, 0
      %v1048 = vsub.s32 0, %v925
      %v1049 = vsel %vm1047, %v1048, %v925
      %v1050 = vshrl.u32 %v1049, 4
      %v1051 = vand.u32 %v1049, 15
      %v1052 = vsub.s32 0, %v1051
      %v1053 = vsel %vm1047, %v1052, %v1051
      %vm1054 = vcmp.lt.s32.totalorder %v926, 0
      %v1055 = vsub.s32 0, %v926
      %v1056 = vsel %vm1054, %v1055, %v926
      %v1057 = vshrl.u32 %v1056, 4
      %v1058 = vand.u32 %v1056, 15
      %v1059 = vsub.s32 0, %v1058
      %v1060 = vsel %vm1054, %v1059, %v1058
      %vm1061 = vcmp.lt.s32.totalorder %v927, 0
      %v1062 = vsub.s32 0, %v927
      %v1063 = vsel %vm1061, %v1062, %v927
      %v1064 = vshrl.u32 %v1063, 4
      %v1065 = vand.u32 %v1063, 15
      %v1066 = vsub.s32 0, %v1065
      %v1067 = vsel %vm1061, %v1066, %v1065
      %vm1068 = vcmp.lt.s32.totalorder %v928, 0
      %v1069 = vsub.s32 0, %v928
      %v1070 = vsel %vm1068, %v1069, %v928
      %v1071 = vshrl.u32 %v1070, 4
      %v1072 = vand.u32 %v1070, 15
      %v1073 = vsub.s32 0, %v1072
      %v1074 = vsel %vm1068, %v1073, %v1072
      %vm1075 = vcmp.lt.s32.totalorder %v929, 0
      %v1076 = vsub.s32 0, %v929
      %v1077 = vsel %vm1075, %v1076, %v929
      %v1078 = vshrl.u32 %v1077, 4
      %v1079 = vand.u32 %v1077, 15
      %v1080 = vsub.s32 0, %v1079
      %v1081 = vsel %vm1075, %v1080, %v1079
      %vm1082 = vcmp.lt.s32.totalorder %v930, 0
      %v1083 = vsub.s32 0, %v930
      %v1084 = vsel %vm1082, %v1083, %v930
      %v1085 = vshrl.u32 %v1084, 4
      %v1086 = vand.u32 %v1084, 15
      %v1087 = vsub.s32 0, %v1086
      %v1088 = vsel %vm1082, %v1087, %v1086
      %vm1089 = vcmp.lt.s32.totalorder %v931, 0
      %v1090 = vsub.s32 0, %v931
      %v1091 = vsel %vm1089, %v1090, %v931
      %v1092 = vshrl.u32 %v1091, 4
      %v1093 = vand.u32 %v1091, 15
      %v1094 = vsub.s32 0, %v1093
      %v1095 = vsel %vm1089, %v1094, %v1093
      %vm1096 = vcmp.lt.s32.totalorder %v932, 0
      %v1097 = vsub.s32 0, %v932
      %v1098 = vsel %vm1096, %v1097, %v932
      %v1099 = vshrl.u32 %v1098, 4
      %v1100 = vand.u32 %v1098, 15
      %v1101 = vsub.s32 0, %v1100
      %v1102 = vsel %vm1096, %v1101, %v1100
      %vm1103 = vcmp.lt.s32.totalorder %v933, 0
      %v1104 = vsub.s32 0, %v933
      %v1105 = vsel %vm1103, %v1104, %v933
      %v1106 = vshrl.u32 %v1105, 4
      %v1107 = vand.u32 %v1105, 15
      %v1108 = vsub.s32 0, %v1107
      %v1109 = vsel %vm1103, %v1108, %v1107
      %vm1110 = vcmp.lt.s32.totalorder %v934, 0
      %v1111 = vsub.s32 0, %v934
      %v1112 = vsel %vm1110, %v1111, %v934
      %v1113 = vshrl.u32 %v1112, 4
      %v1114 = vand.u32 %v1112, 15
      %v1115 = vsub.s32 0, %v1114
      %v1116 = vsel %vm1110, %v1115, %v1114
      %vm1117 = vcmp.lt.s32.totalorder %v935, 0
      %v1118 = vsub.s32 0, %v935
      %v1119 = vsel %vm1117, %v1118, %v935
      %v1120 = vshrl.u32 %v1119, 4
      %v1121 = vand.u32 %v1119, 15
      %v1122 = vsub.s32 0, %v1121
      %v1123 = vsel %vm1117, %v1122, %v1121
      %vm1124 = vcmp.lt.s32.totalorder %v936, 0
      %v1125 = vsub.s32 0, %v936
      %v1126 = vsel %vm1124, %v1125, %v936
      %v1127 = vshrl.u32 %v1126, 4
      %v1128 = vand.u32 %v1126, 15
      %v1129 = vsub.s32 0, %v1128
      %v1130 = vsel %vm1124, %v1129, %v1128
      %vm1131 = vcmp.lt.s32.totalorder %v937, 0
      %v1132 = vsub.s32 0, %v937
      %v1133 = vsel %vm1131, %v1132, %v937
      %v1134 = vshrl.u32 %v1133, 4
      %v1135 = vand.u32 %v1133, 15
      %v1136 = vsub.s32 0, %v1135
      %v1137 = vsel %vm1131, %v1136, %v1135
      %vm1138 = vcmp.lt.s32.totalorder %v938, 0
      %v1139 = vsub.s32 0, %v938
      %v1140 = vsel %vm1138, %v1139, %v938
      %v1141 = vshrl.u32 %v1140, 4
      %v1142 = vand.u32 %v1140, 15
      %v1143 = vsub.s32 0, %v1142
      %v1144 = vsel %vm1138, %v1143, %v1142
      %vm1145 = vcmp.lt.s32.totalorder %v939, 0
      %v1146 = vsub.s32 0, %v939
      %v1147 = vsel %vm1145, %v1146, %v939
      %v1148 = vshrl.u32 %v1147, 4
      %v1149 = vand.u32 %v1147, 15
      %v1150 = vsub.s32 0, %v1149
      %v1151 = vsel %vm1145, %v1150, %v1149
      %vm1152 = vcmp.lt.s32.totalorder %v940, 0
      %v1153 = vsub.s32 0, %v940
      %v1154 = vsel %vm1152, %v1153, %v940
      %v1155 = vshrl.u32 %v1154, 4
      %v1156 = vand.u32 %v1154, 15
      %v1157 = vsub.s32 0, %v1156
      %v1158 = vsel %vm1152, %v1157, %v1156
      %vm1159 = vcmp.lt.s32.totalorder %v941, 0
      %v1160 = vsub.s32 0, %v941
      %v1161 = vsel %vm1159, %v1160, %v941
      %v1162 = vshrl.u32 %v1161, 4
      %v1163 = vand.u32 %v1161, 15
      %v1164 = vsub.s32 0, %v1163
      %v1165 = vsel %vm1159, %v1164, %v1163
      %vm1166 = vcmp.lt.s32.totalorder %v948, 15
      %vm1167 = vcmp.lt.s32.totalorder %v955, 15
      %vm1168 = vcmp.lt.s32.totalorder %v962, 15
      %vm1169 = vcmp.lt.s32.totalorder %v969, 15
      %vm1170 = vcmp.lt.s32.totalorder %v976, 15
      %vm1171 = vcmp.lt.s32.totalorder %v983, 15
      %vm1172 = vcmp.lt.s32.totalorder %v990, 15
      %vm1173 = vcmp.lt.s32.totalorder %v997, 15
      %vm1174 = vcmp.lt.s32.totalorder %v1004, 15
      %vm1175 = vcmp.lt.s32.totalorder %v1011, 15
      %vm1176 = vcmp.lt.s32.totalorder %v1018, 15
      %vm1177 = vcmp.lt.s32.totalorder %v1025, 15
      %vm1178 = vcmp.lt.s32.totalorder %v1032, 15
      %vm1179 = vcmp.lt.s32.totalorder %v1039, 15
      %vm1180 = vcmp.lt.s32.totalorder %v1046, 15
      %vm1181 = vcmp.lt.s32.totalorder %v1053, 15
      %vm1182 = vcmp.lt.s32.totalorder %v1060, 15
      %vm1183 = vcmp.lt.s32.totalorder %v1067, 15
      %vm1184 = vcmp.lt.s32.totalorder %v1074, 15
      %vm1185 = vcmp.lt.s32.totalorder %v1081, 15
      %vm1186 = vcmp.lt.s32.totalorder %v1088, 15
      %vm1187 = vcmp.lt.s32.totalorder %v1095, 15
      %vm1188 = vcmp.lt.s32.totalorder %v1102, 15
      %vm1189 = vcmp.lt.s32.totalorder %v1109, 15
      %vm1190 = vcmp.lt.s32.totalorder %v1116, 15
      %vm1191 = vcmp.lt.s32.totalorder %v1123, 15
      %vm1192 = vcmp.lt.s32.totalorder %v1130, 15
      %vm1193 = vcmp.lt.s32.totalorder %v1137, 15
      %vm1194 = vcmp.lt.s32.totalorder %v1144, 15
      %vm1195 = vcmp.lt.s32.totalorder %v1151, 15
      %vm1196 = vcmp.lt.s32.totalorder %v1158, 15
      %vm1197 = vcmp.lt.s32.totalorder %v1165, 15
      %vm1198 = vcmp.ge.s32.totalorder %v948, 1
      %vm1199 = vcmp.ge.s32.totalorder %v955, 1
      %vm1200 = vcmp.ge.s32.totalorder %v962, 1
      %vm1201 = vcmp.ge.s32.totalorder %v969, 1
      %vm1202 = vcmp.ge.s32.totalorder %v976, 1
      %vm1203 = vcmp.ge.s32.totalorder %v983, 1
      %vm1204 = vcmp.ge.s32.totalorder %v990, 1
      %vm1205 = vcmp.ge.s32.totalorder %v997, 1
      %vm1206 = vcmp.ge.s32.totalorder %v1004, 1
      %vm1207 = vcmp.ge.s32.totalorder %v1011, 1
      %vm1208 = vcmp.ge.s32.totalorder %v1018, 1
      %vm1209 = vcmp.ge.s32.totalorder %v1025, 1
      %vm1210 = vcmp.ge.s32.totalorder %v1032, 1
      %vm1211 = vcmp.ge.s32.totalorder %v1039, 1
      %vm1212 = vcmp.ge.s32.totalorder %v1046, 1
      %vm1213 = vcmp.ge.s32.totalorder %v1053, 1
      %vm1214 = vcmp.ge.s32.totalorder %v1060, 1
      %vm1215 = vcmp.ge.s32.totalorder %v1067, 1
      %vm1216 = vcmp.ge.s32.totalorder %v1074, 1
      %vm1217 = vcmp.ge.s32.totalorder %v1081, 1
      %vm1218 = vcmp.ge.s32.totalorder %v1088, 1
      %vm1219 = vcmp.ge.s32.totalorder %v1095, 1
      %vm1220 = vcmp.ge.s32.totalorder %v1102, 1
      %vm1221 = vcmp.ge.s32.totalorder %v1109, 1
      %vm1222 = vcmp.ge.s32.totalorder %v1116, 1
      %vm1223 = vcmp.ge.s32.totalorder %v1123, 1
      %vm1224 = vcmp.ge.s32.totalorder %v1130, 1
      %vm1225 = vcmp.ge.s32.totalorder %v1137, 1
      %vm1226 = vcmp.ge.s32.totalorder %v1144, 1
      %vm1227 = vcmp.ge.s32.totalorder %v1151, 1
      %vm1228 = vcmp.ge.s32.totalorder %v1158, 1
      %vm1229 = vcmp.ge.s32.totalorder %v1165, 1
      %vm1230 = vcmp.lt.s32.totalorder %v910, 240
      %vm1231 = vcmp.lt.s32.totalorder %v911, 240
      %vm1232 = vcmp.lt.s32.totalorder %v912, 240
      %vm1233 = vcmp.lt.s32.totalorder %v913, 240
      %vm1234 = vcmp.lt.s32.totalorder %v914, 240
      %vm1235 = vcmp.lt.s32.totalorder %v915, 240
      %vm1236 = vcmp.lt.s32.totalorder %v916, 240
      %vm1237 = vcmp.lt.s32.totalorder %v917, 240
      %vm1238 = vcmp.lt.s32.totalorder %v918, 240
      %vm1239 = vcmp.lt.s32.totalorder %v919, 240
      %vm1240 = vcmp.lt.s32.totalorder %v920, 240
      %vm1241 = vcmp.lt.s32.totalorder %v921, 240
      %vm1242 = vcmp.lt.s32.totalorder %v922, 240
      %vm1243 = vcmp.lt.s32.totalorder %v923, 240
      %vm1244 = vcmp.lt.s32.totalorder %v924, 240
      %vm1245 = vcmp.lt.s32.totalorder %v925, 240
      %vm1246 = vcmp.lt.s32.totalorder %v926, 240
      %vm1247 = vcmp.lt.s32.totalorder %v927, 240
      %vm1248 = vcmp.lt.s32.totalorder %v928, 240
      %vm1249 = vcmp.lt.s32.totalorder %v929, 240
      %vm1250 = vcmp.lt.s32.totalorder %v930, 240
      %vm1251 = vcmp.lt.s32.totalorder %v931, 240
      %vm1252 = vcmp.lt.s32.totalorder %v932, 240
      %vm1253 = vcmp.lt.s32.totalorder %v933, 240
      %vm1254 = vcmp.lt.s32.totalorder %v934, 240
      %vm1255 = vcmp.lt.s32.totalorder %v935, 240
      %vm1256 = vcmp.lt.s32.totalorder %v936, 240
      %vm1257 = vcmp.lt.s32.totalorder %v937, 240
      %vm1258 = vcmp.lt.s32.totalorder %v938, 240
      %vm1259 = vcmp.lt.s32.totalorder %v939, 240
      %vm1260 = vcmp.lt.s32.totalorder %v940, 240
      %vm1261 = vcmp.lt.s32.totalorder %v941, 240
      %vm1262 = vcmp.ge.s32.totalorder %v910, 16
      %vm1263 = vcmp.ge.s32.totalorder %v911, 16
      %vm1264 = vcmp.ge.s32.totalorder %v912, 16
      %vm1265 = vcmp.ge.s32.totalorder %v913, 16
      %vm1266 = vcmp.ge.s32.totalorder %v914, 16
      %vm1267 = vcmp.ge.s32.totalorder %v915, 16
      %vm1268 = vcmp.ge.s32.totalorder %v916, 16
      %vm1269 = vcmp.ge.s32.totalorder %v917, 16
      %vm1270 = vcmp.ge.s32.totalorder %v918, 16
      %vm1271 = vcmp.ge.s32.totalorder %v919, 16
      %vm1272 = vcmp.ge.s32.totalorder %v920, 16
      %vm1273 = vcmp.ge.s32.totalorder %v921, 16
      %vm1274 = vcmp.ge.s32.totalorder %v922, 16
      %vm1275 = vcmp.ge.s32.totalorder %v923, 16
      %vm1276 = vcmp.ge.s32.totalorder %v924, 16
      %vm1277 = vcmp.ge.s32.totalorder %v925, 16
      %vm1278 = vcmp.ge.s32.totalorder %v926, 16
      %vm1279 = vcmp.ge.s32.totalorder %v927, 16
      %vm1280 = vcmp.ge.s32.totalorder %v928, 16
      %vm1281 = vcmp.ge.s32.totalorder %v929, 16
      %vm1282 = vcmp.ge.s32.totalorder %v930, 16
      %vm1283 = vcmp.ge.s32.totalorder %v931, 16
      %vm1284 = vcmp.ge.s32.totalorder %v932, 16
      %vm1285 = vcmp.ge.s32.totalorder %v933, 16
      %vm1286 = vcmp.ge.s32.totalorder %v934, 16
      %vm1287 = vcmp.ge.s32.totalorder %v935, 16
      %vm1288 = vcmp.ge.s32.totalorder %v936, 16
      %vm1289 = vcmp.ge.s32.totalorder %v937, 16
      %vm1290 = vcmp.ge.s32.totalorder %v938, 16
      %vm1291 = vcmp.ge.s32.totalorder %v939, 16
      %vm1292 = vcmp.ge.s32.totalorder %v940, 16
      %vm1293 = vcmp.ge.s32.totalorder %v941, 16
      %vm1294 = vcmp.lt.s32.totalorder %v948, 14
      %vm1295 = vcmp.lt.s32.totalorder %v955, 14
      %vm1296 = vcmp.lt.s32.totalorder %v962, 14
      %vm1297 = vcmp.lt.s32.totalorder %v969, 14
      %vm1298 = vcmp.lt.s32.totalorder %v976, 14
      %vm1299 = vcmp.lt.s32.totalorder %v983, 14
      %vm1300 = vcmp.lt.s32.totalorder %v990, 14
      %vm1301 = vcmp.lt.s32.totalorder %v997, 14
      %vm1302 = vcmp.lt.s32.totalorder %v1004, 14
      %vm1303 = vcmp.lt.s32.totalorder %v1011, 14
      %vm1304 = vcmp.lt.s32.totalorder %v1018, 14
      %vm1305 = vcmp.lt.s32.totalorder %v1025, 14
      %vm1306 = vcmp.lt.s32.totalorder %v1032, 14
      %vm1307 = vcmp.lt.s32.totalorder %v1039, 14
      %vm1308 = vcmp.lt.s32.totalorder %v1046, 14
      %vm1309 = vcmp.lt.s32.totalorder %v1053, 14
      %vm1310 = vcmp.lt.s32.totalorder %v1060, 14
      %vm1311 = vcmp.lt.s32.totalorder %v1067, 14
      %vm1312 = vcmp.lt.s32.totalorder %v1074, 14
      %vm1313 = vcmp.lt.s32.totalorder %v1081, 14
      %vm1314 = vcmp.lt.s32.totalorder %v1088, 14
      %vm1315 = vcmp.lt.s32.totalorder %v1095, 14
      %vm1316 = vcmp.lt.s32.totalorder %v1102, 14
      %vm1317 = vcmp.lt.s32.totalorder %v1109, 14
      %vm1318 = vcmp.lt.s32.totalorder %v1116, 14
      %vm1319 = vcmp.lt.s32.totalorder %v1123, 14
      %vm1320 = vcmp.lt.s32.totalorder %v1130, 14
      %vm1321 = vcmp.lt.s32.totalorder %v1137, 14
      %vm1322 = vcmp.lt.s32.totalorder %v1144, 14
      %vm1323 = vcmp.lt.s32.totalorder %v1151, 14
      %vm1324 = vcmp.lt.s32.totalorder %v1158, 14
      %vm1325 = vcmp.lt.s32.totalorder %v1165, 14
      %vm1326 = vcmp.ge.s32.totalorder %v948, 2
      %vm1327 = vcmp.ge.s32.totalorder %v955, 2
      %vm1328 = vcmp.ge.s32.totalorder %v962, 2
      %vm1329 = vcmp.ge.s32.totalorder %v969, 2
      %vm1330 = vcmp.ge.s32.totalorder %v976, 2
      %vm1331 = vcmp.ge.s32.totalorder %v983, 2
      %vm1332 = vcmp.ge.s32.totalorder %v990, 2
      %vm1333 = vcmp.ge.s32.totalorder %v997, 2
      %vm1334 = vcmp.ge.s32.totalorder %v1004, 2
      %vm1335 = vcmp.ge.s32.totalorder %v1011, 2
      %vm1336 = vcmp.ge.s32.totalorder %v1018, 2
      %vm1337 = vcmp.ge.s32.totalorder %v1025, 2
      %vm1338 = vcmp.ge.s32.totalorder %v1032, 2
      %vm1339 = vcmp.ge.s32.totalorder %v1039, 2
      %vm1340 = vcmp.ge.s32.totalorder %v1046, 2
      %vm1341 = vcmp.ge.s32.totalorder %v1053, 2
      %vm1342 = vcmp.ge.s32.totalorder %v1060, 2
      %vm1343 = vcmp.ge.s32.totalorder %v1067, 2
      %vm1344 = vcmp.ge.s32.totalorder %v1074, 2
      %vm1345 = vcmp.ge.s32.totalorder %v1081, 2
      %vm1346 = vcmp.ge.s32.totalorder %v1088, 2
      %vm1347 = vcmp.ge.s32.totalorder %v1095, 2
      %vm1348 = vcmp.ge.s32.totalorder %v1102, 2
      %vm1349 = vcmp.ge.s32.totalorder %v1109, 2
      %vm1350 = vcmp.ge.s32.totalorder %v1116, 2
      %vm1351 = vcmp.ge.s32.totalorder %v1123, 2
      %vm1352 = vcmp.ge.s32.totalorder %v1130, 2
      %vm1353 = vcmp.ge.s32.totalorder %v1137, 2
      %vm1354 = vcmp.ge.s32.totalorder %v1144, 2
      %vm1355 = vcmp.ge.s32.totalorder %v1151, 2
      %vm1356 = vcmp.ge.s32.totalorder %v1158, 2
      %vm1357 = vcmp.ge.s32.totalorder %v1165, 2
      %vm1358 = vcmp.lt.s32.totalorder %v910, 224
      %vm1359 = vcmp.lt.s32.totalorder %v911, 224
      %vm1360 = vcmp.lt.s32.totalorder %v912, 224
      %vm1361 = vcmp.lt.s32.totalorder %v913, 224
      %vm1362 = vcmp.lt.s32.totalorder %v914, 224
      %vm1363 = vcmp.lt.s32.totalorder %v915, 224
      %vm1364 = vcmp.lt.s32.totalorder %v916, 224
      %vm1365 = vcmp.lt.s32.totalorder %v917, 224
      %vm1366 = vcmp.lt.s32.totalorder %v918, 224
      %vm1367 = vcmp.lt.s32.totalorder %v919, 224
      %vm1368 = vcmp.lt.s32.totalorder %v920, 224
      %vm1369 = vcmp.lt.s32.totalorder %v921, 224
      %vm1370 = vcmp.lt.s32.totalorder %v922, 224
      %vm1371 = vcmp.lt.s32.totalorder %v923, 224
      %vm1372 = vcmp.lt.s32.totalorder %v924, 224
      %vm1373 = vcmp.lt.s32.totalorder %v925, 224
      %vm1374 = vcmp.lt.s32.totalorder %v926, 224
      %vm1375 = vcmp.lt.s32.totalorder %v927, 224
      %vm1376 = vcmp.lt.s32.totalorder %v928, 224
      %vm1377 = vcmp.lt.s32.totalorder %v929, 224
      %vm1378 = vcmp.lt.s32.totalorder %v930, 224
      %vm1379 = vcmp.lt.s32.totalorder %v931, 224
      %vm1380 = vcmp.lt.s32.totalorder %v932, 224
      %vm1381 = vcmp.lt.s32.totalorder %v933, 224
      %vm1382 = vcmp.lt.s32.totalorder %v934, 224
      %vm1383 = vcmp.lt.s32.totalorder %v935, 224
      %vm1384 = vcmp.lt.s32.totalorder %v936, 224
      %vm1385 = vcmp.lt.s32.totalorder %v937, 224
      %vm1386 = vcmp.lt.s32.totalorder %v938, 224
      %vm1387 = vcmp.lt.s32.totalorder %v939, 224
      %vm1388 = vcmp.lt.s32.totalorder %v940, 224
      %vm1389 = vcmp.lt.s32.totalorder %v941, 224
      %vm1390 = vcmp.ge.s32.totalorder %v910, 32
      %vm1391 = vcmp.ge.s32.totalorder %v911, 32
      %vm1392 = vcmp.ge.s32.totalorder %v912, 32
      %vm1393 = vcmp.ge.s32.totalorder %v913, 32
      %vm1394 = vcmp.ge.s32.totalorder %v914, 32
      %vm1395 = vcmp.ge.s32.totalorder %v915, 32
      %vm1396 = vcmp.ge.s32.totalorder %v916, 32
      %vm1397 = vcmp.ge.s32.totalorder %v917, 32
      %vm1398 = vcmp.ge.s32.totalorder %v918, 32
      %vm1399 = vcmp.ge.s32.totalorder %v919, 32
      %vm1400 = vcmp.ge.s32.totalorder %v920, 32
      %vm1401 = vcmp.ge.s32.totalorder %v921, 32
      %vm1402 = vcmp.ge.s32.totalorder %v922, 32
      %vm1403 = vcmp.ge.s32.totalorder %v923, 32
      %vm1404 = vcmp.ge.s32.totalorder %v924, 32
      %vm1405 = vcmp.ge.s32.totalorder %v925, 32
      %vm1406 = vcmp.ge.s32.totalorder %v926, 32
      %vm1407 = vcmp.ge.s32.totalorder %v927, 32
      %vm1408 = vcmp.ge.s32.totalorder %v928, 32
      %vm1409 = vcmp.ge.s32.totalorder %v929, 32
      %vm1410 = vcmp.ge.s32.totalorder %v930, 32
      %vm1411 = vcmp.ge.s32.totalorder %v931, 32
      %vm1412 = vcmp.ge.s32.totalorder %v932, 32
      %vm1413 = vcmp.ge.s32.totalorder %v933, 32
      %vm1414 = vcmp.ge.s32.totalorder %v934, 32
      %vm1415 = vcmp.ge.s32.totalorder %v935, 32
      %vm1416 = vcmp.ge.s32.totalorder %v936, 32
      %vm1417 = vcmp.ge.s32.totalorder %v937, 32
      %vm1418 = vcmp.ge.s32.totalorder %v938, 32
      %vm1419 = vcmp.ge.s32.totalorder %v939, 32
      %vm1420 = vcmp.ge.s32.totalorder %v940, 32
      %vm1421 = vcmp.ge.s32.totalorder %v941, 32
      %v1422 = vrot.slane %v877, 1
      %v1423 = vrot.slane %v878, 1
      %v1424 = vrot.slane %v879, 1
      %v1425 = vrot.slane %v880, 1
      %v1426 = vrot.slane %v881, 1
      %v1427 = vrot.slane %v882, 1
      %v1428 = vrot.slane %v883, 1
      %v1429 = vrot.slane %v884, 1
      %v1430 = vrot.slane %v885, 1
      %v1431 = vrot.slane %v886, 1
      %v1432 = vrot.slane %v887, 1
      %v1433 = vrot.slane %v888, 1
      %v1434 = vrot.slane %v889, 1
      %v1435 = vrot.slane %v890, 1
      %v1436 = vrot.slane %v891, 1
      %v1437 = vrot.slane %v892, 1
      %v1438 = vrot.slane %v893, 1
      %v1439 = vrot.slane %v894, 1
      %v1440 = vrot.slane %v895, 1
      %v1441 = vrot.slane %v896, 1
      %v1442 = vrot.slane %v897, 1
      %v1443 = vrot.slane %v898, 1
      %v1444 = vrot.slane %v899, 1
      %v1445 = vrot.slane %v900, 1
      %v1446 = vrot.slane %v901, 1
      %v1447 = vrot.slane %v902, 1
      %v1448 = vrot.slane %v903, 1
      %v1449 = vrot.slane %v904, 1
      %v1450 = vrot.slane %v905, 1
      %v1451 = vrot.slane %v906, 1
      %v1452 = vrot.slane %v907, 1
      %v1453 = vrot.slane %v908, 1
      %vm1454 = vcmp.lt.s32.totalorder %v910, 7
      %v1455 = vsel %vm1454, %v1452, %v1453
      %v1456 = vsel %vm1454, %v1451, %v1452
      %v1457 = vsel %vm1454, %v1450, %v1451
      %v1458 = vsel %vm1454, %v1449, %v1450
      %v1459 = vsel %vm1454, %v1448, %v1449
      %v1460 = vsel %vm1454, %v1447, %v1448
      %v1461 = vsel %vm1454, %v1446, %v1447
      %v1462 = vsel %vm1454, %v1445, %v1446
      %v1463 = vsel %vm1454, %v1444, %v1445
      %v1464 = vsel %vm1454, %v1443, %v1444
      %v1465 = vsel %vm1454, %v1442, %v1443
      %v1466 = vsel %vm1454, %v1441, %v1442
      %v1467 = vsel %vm1454, %v1440, %v1441
      %v1468 = vsel %vm1454, %v1439, %v1440
      %v1469 = vsel %vm1454, %v1438, %v1439
      %v1470 = vsel %vm1454, %v1437, %v1438
      %v1471 = vsel %vm1454, %v1436, %v1437
      %v1472 = vsel %vm1454, %v1435, %v1436
      %v1473 = vsel %vm1454, %v1434, %v1435
      %v1474 = vsel %vm1454, %v1433, %v1434
      %v1475 = vsel %vm1454, %v1432, %v1433
      %v1476 = vsel %vm1454, %v1431, %v1432
      %v1477 = vsel %vm1454, %v1430, %v1431
      %v1478 = vsel %vm1454, %v1429, %v1430
      %v1479 = vsel %vm1454, %v1428, %v1429
      %v1480 = vsel %vm1454, %v1427, %v1428
      %v1481 = vsel %vm1454, %v1426, %v1427
      %v1482 = vsel %vm1454, %v1425, %v1426
      %v1483 = vsel %vm1454, %v1424, %v1425
      %v1484 = vsel %vm1454, %v1423, %v1424
      %v1485 = vsel %vm1454, %v1422, %v1423
      %v1486 = vsel %vm1454, %v1453, %v1422
      %v1487 = vsel %vm1166, 1, 0
      %v1488 = vsel %vm1167, 1, 0
      %v1489 = vsel %vm1168, 1, 0
      %v1490 = vsel %vm1169, 1, 0
      %v1491 = vsel %vm1170, 1, 0
      %v1492 = vsel %vm1171, 1, 0
      %v1493 = vsel %vm1172, 1, 0
      %v1494 = vsel %vm1173, 1, 0
      %v1495 = vsel %vm1174, 1, 0
      %v1496 = vsel %vm1175, 1, 0
      %v1497 = vsel %vm1176, 1, 0
      %v1498 = vsel %vm1177, 1, 0
      %v1499 = vsel %vm1178, 1, 0
      %v1500 = vsel %vm1179, 1, 0
      %v1501 = vsel %vm1180, 1, 0
      %v1502 = vsel %vm1181, 1, 0
      %v1503 = vsel %vm1182, 1, 0
      %v1504 = vsel %vm1183, 1, 0
      %v1505 = vsel %vm1184, 1, 0
      %v1506 = vsel %vm1185, 1, 0
      %v1507 = vsel %vm1186, 1, 0
      %v1508 = vsel %vm1187, 1, 0
      %v1509 = vsel %vm1188, 1, 0
      %v1510 = vsel %vm1189, 1, 0
      %v1511 = vsel %vm1190, 1, 0
      %v1512 = vsel %vm1191, 1, 0
      %v1513 = vsel %vm1192, 1, 0
      %v1514 = vsel %vm1193, 1, 0
      %v1515 = vsel %vm1194, 1, 0
      %v1516 = vsel %vm1195, 1, 0
      %v1517 = vsel %vm1196, 1, 0
      %v1518 = vsel %vm1197, 1, 0
      %vm1519 = vcmp.eq.s32.totalorder %v1487, 1
      %vm1520 = vcmp.eq.s32.totalorder %v1488, 1
      %vm1521 = vcmp.eq.s32.totalorder %v1489, 1
      %vm1522 = vcmp.eq.s32.totalorder %v1490, 1
      %vm1523 = vcmp.eq.s32.totalorder %v1491, 1
      %vm1524 = vcmp.eq.s32.totalorder %v1492, 1
      %vm1525 = vcmp.eq.s32.totalorder %v1493, 1
      %vm1526 = vcmp.eq.s32.totalorder %v1494, 1
      %vm1527 = vcmp.eq.s32.totalorder %v1495, 1
      %vm1528 = vcmp.eq.s32.totalorder %v1496, 1
      %vm1529 = vcmp.eq.s32.totalorder %v1497, 1
      %vm1530 = vcmp.eq.s32.totalorder %v1498, 1
      %vm1531 = vcmp.eq.s32.totalorder %v1499, 1
      %vm1532 = vcmp.eq.s32.totalorder %v1500, 1
      %vm1533 = vcmp.eq.s32.totalorder %v1501, 1
      %vm1534 = vcmp.eq.s32.totalorder %v1502, 1
      %vm1535 = vcmp.eq.s32.totalorder %v1503, 1
      %vm1536 = vcmp.eq.s32.totalorder %v1504, 1
      %vm1537 = vcmp.eq.s32.totalorder %v1505, 1
      %vm1538 = vcmp.eq.s32.totalorder %v1506, 1
      %vm1539 = vcmp.eq.s32.totalorder %v1507, 1
      %vm1540 = vcmp.eq.s32.totalorder %v1508, 1
      %vm1541 = vcmp.eq.s32.totalorder %v1509, 1
      %vm1542 = vcmp.eq.s32.totalorder %v1510, 1
      %vm1543 = vcmp.eq.s32.totalorder %v1511, 1
      %vm1544 = vcmp.eq.s32.totalorder %v1512, 1
      %vm1545 = vcmp.eq.s32.totalorder %v1513, 1
      %vm1546 = vcmp.eq.s32.totalorder %v1514, 1
      %vm1547 = vcmp.eq.s32.totalorder %v1515, 1
      %vm1548 = vcmp.eq.s32.totalorder %v1516, 1
      %vm1549 = vcmp.eq.s32.totalorder %v1517, 1
      %vm1550 = vcmp.eq.s32.totalorder %v1518, 1
      %v1551 = vsel %vm1519, %v1485, -inf
      %v1552 = vsel %vm1520, %v1484, -inf
      %v1553 = vsel %vm1521, %v1483, -inf
      %v1554 = vsel %vm1522, %v1482, -inf
      %v1555 = vsel %vm1523, %v1481, -inf
      %v1556 = vsel %vm1524, %v1480, -inf
      %v1557 = vsel %vm1525, %v1479, -inf
      %v1558 = vsel %vm1526, %v1478, -inf
      %v1559 = vsel %vm1527, %v1477, -inf
      %v1560 = vsel %vm1528, %v1476, -inf
      %v1561 = vsel %vm1529, %v1475, -inf
      %v1562 = vsel %vm1530, %v1474, -inf
      %v1563 = vsel %vm1531, %v1473, -inf
      %v1564 = vsel %vm1532, %v1472, -inf
      %v1565 = vsel %vm1533, %v1471, -inf
      %v1566 = vsel %vm1534, %v1470, -inf
      %v1567 = vsel %vm1535, %v1469, -inf
      %v1568 = vsel %vm1536, %v1468, -inf
      %v1569 = vsel %vm1537, %v1467, -inf
      %v1570 = vsel %vm1538, %v1466, -inf
      %v1571 = vsel %vm1539, %v1465, -inf
      %v1572 = vsel %vm1540, %v1464, -inf
      %v1573 = vsel %vm1541, %v1463, -inf
      %v1574 = vsel %vm1542, %v1462, -inf
      %v1575 = vsel %vm1543, %v1461, -inf
      %v1576 = vsel %vm1544, %v1460, -inf
      %v1577 = vsel %vm1545, %v1459, -inf
      %v1578 = vsel %vm1546, %v1458, -inf
      %v1579 = vsel %vm1547, %v1457, -inf
      %v1580 = vsel %vm1548, %v1456, -inf
      %v1581 = vsel %vm1549, %v1455, -inf
      %v1582 = vsel %vm1550, %v1486, -inf
      %v1583 = vmax.f32 %v877, %v1551
      %v1584 = vmax.f32 %v878, %v1552
      %v1585 = vmax.f32 %v879, %v1553
      %v1586 = vmax.f32 %v880, %v1554
      %v1587 = vmax.f32 %v881, %v1555
      %v1588 = vmax.f32 %v882, %v1556
      %v1589 = vmax.f32 %v883, %v1557
      %v1590 = vmax.f32 %v884, %v1558
      %v1591 = vmax.f32 %v885, %v1559
      %v1592 = vmax.f32 %v886, %v1560
      %v1593 = vmax.f32 %v887, %v1561
      %v1594 = vmax.f32 %v888, %v1562
      %v1595 = vmax.f32 %v889, %v1563
      %v1596 = vmax.f32 %v890, %v1564
      %v1597 = vmax.f32 %v891, %v1565
      %v1598 = vmax.f32 %v892, %v1566
      %v1599 = vmax.f32 %v893, %v1567
      %v1600 = vmax.f32 %v894, %v1568
      %v1601 = vmax.f32 %v895, %v1569
      %v1602 = vmax.f32 %v896, %v1570
      %v1603 = vmax.f32 %v897, %v1571
      %v1604 = vmax.f32 %v898, %v1572
      %v1605 = vmax.f32 %v899, %v1573
      %v1606 = vmax.f32 %v900, %v1574
      %v1607 = vmax.f32 %v901, %v1575
      %v1608 = vmax.f32 %v902, %v1576
      %v1609 = vmax.f32 %v903, %v1577
      %v1610 = vmax.f32 %v904, %v1578
      %v1611 = vmax.f32 %v905, %v1579
      %v1612 = vmax.f32 %v906, %v1580
      %v1613 = vmax.f32 %v907, %v1581
      %v1614 = vmax.f32 %v908, %v1582
      %v1615 = vrot.slane %v877, 7
      %v1616 = vrot.slane %v878, 7
      %v1617 = vrot.slane %v879, 7
      %v1618 = vrot.slane %v880, 7
      %v1619 = vrot.slane %v881, 7
      %v1620 = vrot.slane %v882, 7
      %v1621 = vrot.slane %v883, 7
      %v1622 = vrot.slane %v884, 7
      %v1623 = vrot.slane %v885, 7
      %v1624 = vrot.slane %v886, 7
      %v1625 = vrot.slane %v887, 7
      %v1626 = vrot.slane %v888, 7
      %v1627 = vrot.slane %v889, 7
      %v1628 = vrot.slane %v890, 7
      %v1629 = vrot.slane %v891, 7
      %v1630 = vrot.slane %v892, 7
      %v1631 = vrot.slane %v893, 7
      %v1632 = vrot.slane %v894, 7
      %v1633 = vrot.slane %v895, 7
      %v1634 = vrot.slane %v896, 7
      %v1635 = vrot.slane %v897, 7
      %v1636 = vrot.slane %v898, 7
      %v1637 = vrot.slane %v899, 7
      %v1638 = vrot.slane %v900, 7
      %v1639 = vrot.slane %v901, 7
      %v1640 = vrot.slane %v902, 7
      %v1641 = vrot.slane %v903, 7
      %v1642 = vrot.slane %v904, 7
      %v1643 = vrot.slane %v905, 7
      %v1644 = vrot.slane %v906, 7
      %v1645 = vrot.slane %v907, 7
      %v1646 = vrot.slane %v908, 7
      %vm1647 = vcmp.lt.s32.totalorder %v910, 1
      %v1648 = vsel %vm1647, %v1645, %v1646
      %v1649 = vsel %vm1647, %v1644, %v1645
      %v1650 = vsel %vm1647, %v1643, %v1644
      %v1651 = vsel %vm1647, %v1642, %v1643
      %v1652 = vsel %vm1647, %v1641, %v1642
      %v1653 = vsel %vm1647, %v1640, %v1641
      %v1654 = vsel %vm1647, %v1639, %v1640
      %v1655 = vsel %vm1647, %v1638, %v1639
      %v1656 = vsel %vm1647, %v1637, %v1638
      %v1657 = vsel %vm1647, %v1636, %v1637
      %v1658 = vsel %vm1647, %v1635, %v1636
      %v1659 = vsel %vm1647, %v1634, %v1635
      %v1660 = vsel %vm1647, %v1633, %v1634
      %v1661 = vsel %vm1647, %v1632, %v1633
      %v1662 = vsel %vm1647, %v1631, %v1632
      %v1663 = vsel %vm1647, %v1630, %v1631
      %v1664 = vsel %vm1647, %v1629, %v1630
      %v1665 = vsel %vm1647, %v1628, %v1629
      %v1666 = vsel %vm1647, %v1627, %v1628
      %v1667 = vsel %vm1647, %v1626, %v1627
      %v1668 = vsel %vm1647, %v1625, %v1626
      %v1669 = vsel %vm1647, %v1624, %v1625
      %v1670 = vsel %vm1647, %v1623, %v1624
      %v1671 = vsel %vm1647, %v1622, %v1623
      %v1672 = vsel %vm1647, %v1621, %v1622
      %v1673 = vsel %vm1647, %v1620, %v1621
      %v1674 = vsel %vm1647, %v1619, %v1620
      %v1675 = vsel %vm1647, %v1618, %v1619
      %v1676 = vsel %vm1647, %v1617, %v1618
      %v1677 = vsel %vm1647, %v1616, %v1617
      %v1678 = vsel %vm1647, %v1615, %v1616
      %v1679 = vsel %vm1647, %v1646, %v1615
      %v1680 = vsel %vm1198, 1, 0
      %v1681 = vsel %vm1199, 1, 0
      %v1682 = vsel %vm1200, 1, 0
      %v1683 = vsel %vm1201, 1, 0
      %v1684 = vsel %vm1202, 1, 0
      %v1685 = vsel %vm1203, 1, 0
      %v1686 = vsel %vm1204, 1, 0
      %v1687 = vsel %vm1205, 1, 0
      %v1688 = vsel %vm1206, 1, 0
      %v1689 = vsel %vm1207, 1, 0
      %v1690 = vsel %vm1208, 1, 0
      %v1691 = vsel %vm1209, 1, 0
      %v1692 = vsel %vm1210, 1, 0
      %v1693 = vsel %vm1211, 1, 0
      %v1694 = vsel %vm1212, 1, 0
      %v1695 = vsel %vm1213, 1, 0
      %v1696 = vsel %vm1214, 1, 0
      %v1697 = vsel %vm1215, 1, 0
      %v1698 = vsel %vm1216, 1, 0
      %v1699 = vsel %vm1217, 1, 0
      %v1700 = vsel %vm1218, 1, 0
      %v1701 = vsel %vm1219, 1, 0
      %v1702 = vsel %vm1220, 1, 0
      %v1703 = vsel %vm1221, 1, 0
      %v1704 = vsel %vm1222, 1, 0
      %v1705 = vsel %vm1223, 1, 0
      %v1706 = vsel %vm1224, 1, 0
      %v1707 = vsel %vm1225, 1, 0
      %v1708 = vsel %vm1226, 1, 0
      %v1709 = vsel %vm1227, 1, 0
      %v1710 = vsel %vm1228, 1, 0
      %v1711 = vsel %vm1229, 1, 0
      %vm1712 = vcmp.eq.s32.totalorder %v1680, 1
      %vm1713 = vcmp.eq.s32.totalorder %v1681, 1
      %vm1714 = vcmp.eq.s32.totalorder %v1682, 1
      %vm1715 = vcmp.eq.s32.totalorder %v1683, 1
      %vm1716 = vcmp.eq.s32.totalorder %v1684, 1
      %vm1717 = vcmp.eq.s32.totalorder %v1685, 1
      %vm1718 = vcmp.eq.s32.totalorder %v1686, 1
      %vm1719 = vcmp.eq.s32.totalorder %v1687, 1
      %vm1720 = vcmp.eq.s32.totalorder %v1688, 1
      %vm1721 = vcmp.eq.s32.totalorder %v1689, 1
      %vm1722 = vcmp.eq.s32.totalorder %v1690, 1
      %vm1723 = vcmp.eq.s32.totalorder %v1691, 1
      %vm1724 = vcmp.eq.s32.totalorder %v1692, 1
      %vm1725 = vcmp.eq.s32.totalorder %v1693, 1
      %vm1726 = vcmp.eq.s32.totalorder %v1694, 1
      %vm1727 = vcmp.eq.s32.totalorder %v1695, 1
      %vm1728 = vcmp.eq.s32.totalorder %v1696, 1
      %vm1729 = vcmp.eq.s32.totalorder %v1697, 1
      %vm1730 = vcmp.eq.s32.totalorder %v1698, 1
      %vm1731 = vcmp.eq.s32.totalorder %v1699, 1
      %vm1732 = vcmp.eq.s32.totalorder %v1700, 1
      %vm1733 = vcmp.eq.s32.totalorder %v1701, 1
      %vm1734 = vcmp.eq.s32.totalorder %v1702, 1
      %vm1735 = vcmp.eq.s32.totalorder %v1703, 1
      %vm1736 = vcmp.eq.s32.totalorder %v1704, 1
      %vm1737 = vcmp.eq.s32.totalorder %v1705, 1
      %vm1738 = vcmp.eq.s32.totalorder %v1706, 1
      %vm1739 = vcmp.eq.s32.totalorder %v1707, 1
      %vm1740 = vcmp.eq.s32.totalorder %v1708, 1
      %vm1741 = vcmp.eq.s32.totalorder %v1709, 1
      %vm1742 = vcmp.eq.s32.totalorder %v1710, 1
      %vm1743 = vcmp.eq.s32.totalorder %v1711, 1
      %v1744 = vsel %vm1712, %v1679, -inf
      %v1745 = vsel %vm1713, %v1678, -inf
      %v1746 = vsel %vm1714, %v1677, -inf
      %v1747 = vsel %vm1715, %v1676, -inf
      %v1748 = vsel %vm1716, %v1675, -inf
      %v1749 = vsel %vm1717, %v1674, -inf
      %v1750 = vsel %vm1718, %v1673, -inf
      %v1751 = vsel %vm1719, %v1672, -inf
      %v1752 = vsel %vm1720, %v1671, -inf
      %v1753 = vsel %vm1721, %v1670, -inf
      %v1754 = vsel %vm1722, %v1669, -inf
      %v1755 = vsel %vm1723, %v1668, -inf
      %v1756 = vsel %vm1724, %v1667, -inf
      %v1757 = vsel %vm1725, %v1666, -inf
      %v1758 = vsel %vm1726, %v1665, -inf
      %v1759 = vsel %vm1727, %v1664, -inf
      %v1760 = vsel %vm1728, %v1663, -inf
      %v1761 = vsel %vm1729, %v1662, -inf
      %v1762 = vsel %vm1730, %v1661, -inf
      %v1763 = vsel %vm1731, %v1660, -inf
      %v1764 = vsel %vm1732, %v1659, -inf
      %v1765 = vsel %vm1733, %v1658, -inf
      %v1766 = vsel %vm1734, %v1657, -inf
      %v1767 = vsel %vm1735, %v1656, -inf
      %v1768 = vsel %vm1736, %v1655, -inf
      %v1769 = vsel %vm1737, %v1654, -inf
      %v1770 = vsel %vm1738, %v1653, -inf
      %v1771 = vsel %vm1739, %v1652, -inf
      %v1772 = vsel %vm1740, %v1651, -inf
      %v1773 = vsel %vm1741, %v1650, -inf
      %v1774 = vsel %vm1742, %v1649, -inf
      %v1775 = vsel %vm1743, %v1648, -inf
      %v1776 = vmax.f32 %v1583, %v1744
      %v1777 = vmax.f32 %v1584, %v1745
      %v1778 = vmax.f32 %v1585, %v1746
      %v1779 = vmax.f32 %v1586, %v1747
      %v1780 = vmax.f32 %v1587, %v1748
      %v1781 = vmax.f32 %v1588, %v1749
      %v1782 = vmax.f32 %v1589, %v1750
      %v1783 = vmax.f32 %v1590, %v1751
      %v1784 = vmax.f32 %v1591, %v1752
      %v1785 = vmax.f32 %v1592, %v1753
      %v1786 = vmax.f32 %v1593, %v1754
      %v1787 = vmax.f32 %v1594, %v1755
      %v1788 = vmax.f32 %v1595, %v1756
      %v1789 = vmax.f32 %v1596, %v1757
      %v1790 = vmax.f32 %v1597, %v1758
      %v1791 = vmax.f32 %v1598, %v1759
      %v1792 = vmax.f32 %v1599, %v1760
      %v1793 = vmax.f32 %v1600, %v1761
      %v1794 = vmax.f32 %v1601, %v1762
      %v1795 = vmax.f32 %v1602, %v1763
      %v1796 = vmax.f32 %v1603, %v1764
      %v1797 = vmax.f32 %v1604, %v1765
      %v1798 = vmax.f32 %v1605, %v1766
      %v1799 = vmax.f32 %v1606, %v1767
      %v1800 = vmax.f32 %v1607, %v1768
      %v1801 = vmax.f32 %v1608, %v1769
      %v1802 = vmax.f32 %v1609, %v1770
      %v1803 = vmax.f32 %v1610, %v1771
      %v1804 = vmax.f32 %v1611, %v1772
      %v1805 = vmax.f32 %v1612, %v1773
      %v1806 = vmax.f32 %v1613, %v1774
      %v1807 = vmax.f32 %v1614, %v1775
      %v1808 = vrot.slane %v877, 2
      %v1809 = vrot.slane %v878, 2
      %v1810 = vrot.slane %v879, 2
      %v1811 = vrot.slane %v880, 2
      %v1812 = vrot.slane %v881, 2
      %v1813 = vrot.slane %v882, 2
      %v1814 = vrot.slane %v883, 2
      %v1815 = vrot.slane %v884, 2
      %v1816 = vrot.slane %v885, 2
      %v1817 = vrot.slane %v886, 2
      %v1818 = vrot.slane %v887, 2
      %v1819 = vrot.slane %v888, 2
      %v1820 = vrot.slane %v889, 2
      %v1821 = vrot.slane %v890, 2
      %v1822 = vrot.slane %v891, 2
      %v1823 = vrot.slane %v892, 2
      %v1824 = vrot.slane %v893, 2
      %v1825 = vrot.slane %v894, 2
      %v1826 = vrot.slane %v895, 2
      %v1827 = vrot.slane %v896, 2
      %v1828 = vrot.slane %v897, 2
      %v1829 = vrot.slane %v898, 2
      %v1830 = vrot.slane %v899, 2
      %v1831 = vrot.slane %v900, 2
      %v1832 = vrot.slane %v901, 2
      %v1833 = vrot.slane %v902, 2
      %v1834 = vrot.slane %v903, 2
      %v1835 = vrot.slane %v904, 2
      %v1836 = vrot.slane %v905, 2
      %v1837 = vrot.slane %v906, 2
      %v1838 = vrot.slane %v907, 2
      %v1839 = vrot.slane %v908, 2
      %vm1840 = vcmp.lt.s32.totalorder %v910, 6
      %v1841 = vsel %vm1840, %v1838, %v1839
      %v1842 = vsel %vm1840, %v1837, %v1838
      %v1843 = vsel %vm1840, %v1836, %v1837
      %v1844 = vsel %vm1840, %v1835, %v1836
      %v1845 = vsel %vm1840, %v1834, %v1835
      %v1846 = vsel %vm1840, %v1833, %v1834
      %v1847 = vsel %vm1840, %v1832, %v1833
      %v1848 = vsel %vm1840, %v1831, %v1832
      %v1849 = vsel %vm1840, %v1830, %v1831
      %v1850 = vsel %vm1840, %v1829, %v1830
      %v1851 = vsel %vm1840, %v1828, %v1829
      %v1852 = vsel %vm1840, %v1827, %v1828
      %v1853 = vsel %vm1840, %v1826, %v1827
      %v1854 = vsel %vm1840, %v1825, %v1826
      %v1855 = vsel %vm1840, %v1824, %v1825
      %v1856 = vsel %vm1840, %v1823, %v1824
      %v1857 = vsel %vm1840, %v1822, %v1823
      %v1858 = vsel %vm1840, %v1821, %v1822
      %v1859 = vsel %vm1840, %v1820, %v1821
      %v1860 = vsel %vm1840, %v1819, %v1820
      %v1861 = vsel %vm1840, %v1818, %v1819
      %v1862 = vsel %vm1840, %v1817, %v1818
      %v1863 = vsel %vm1840, %v1816, %v1817
      %v1864 = vsel %vm1840, %v1815, %v1816
      %v1865 = vsel %vm1840, %v1814, %v1815
      %v1866 = vsel %vm1840, %v1813, %v1814
      %v1867 = vsel %vm1840, %v1812, %v1813
      %v1868 = vsel %vm1840, %v1811, %v1812
      %v1869 = vsel %vm1840, %v1810, %v1811
      %v1870 = vsel %vm1840, %v1809, %v1810
      %v1871 = vsel %vm1840, %v1808, %v1809
      %v1872 = vsel %vm1840, %v1839, %v1808
      %v1873 = vsel %vm1294, 1, 0
      %v1874 = vsel %vm1295, 1, 0
      %v1875 = vsel %vm1296, 1, 0
      %v1876 = vsel %vm1297, 1, 0
      %v1877 = vsel %vm1298, 1, 0
      %v1878 = vsel %vm1299, 1, 0
      %v1879 = vsel %vm1300, 1, 0
      %v1880 = vsel %vm1301, 1, 0
      %v1881 = vsel %vm1302, 1, 0
      %v1882 = vsel %vm1303, 1, 0
      %v1883 = vsel %vm1304, 1, 0
      %v1884 = vsel %vm1305, 1, 0
      %v1885 = vsel %vm1306, 1, 0
      %v1886 = vsel %vm1307, 1, 0
      %v1887 = vsel %vm1308, 1, 0
      %v1888 = vsel %vm1309, 1, 0
      %v1889 = vsel %vm1310, 1, 0
      %v1890 = vsel %vm1311, 1, 0
      %v1891 = vsel %vm1312, 1, 0
      %v1892 = vsel %vm1313, 1, 0
      %v1893 = vsel %vm1314, 1, 0
      %v1894 = vsel %vm1315, 1, 0
      %v1895 = vsel %vm1316, 1, 0
      %v1896 = vsel %vm1317, 1, 0
      %v1897 = vsel %vm1318, 1, 0
      %v1898 = vsel %vm1319, 1, 0
      %v1899 = vsel %vm1320, 1, 0
      %v1900 = vsel %vm1321, 1, 0
      %v1901 = vsel %vm1322, 1, 0
      %v1902 = vsel %vm1323, 1, 0
      %v1903 = vsel %vm1324, 1, 0
      %v1904 = vsel %vm1325, 1, 0
      %vm1905 = vcmp.eq.s32.totalorder %v1873, 1
      %vm1906 = vcmp.eq.s32.totalorder %v1874, 1
      %vm1907 = vcmp.eq.s32.totalorder %v1875, 1
      %vm1908 = vcmp.eq.s32.totalorder %v1876, 1
      %vm1909 = vcmp.eq.s32.totalorder %v1877, 1
      %vm1910 = vcmp.eq.s32.totalorder %v1878, 1
      %vm1911 = vcmp.eq.s32.totalorder %v1879, 1
      %vm1912 = vcmp.eq.s32.totalorder %v1880, 1
      %vm1913 = vcmp.eq.s32.totalorder %v1881, 1
      %vm1914 = vcmp.eq.s32.totalorder %v1882, 1
      %vm1915 = vcmp.eq.s32.totalorder %v1883, 1
      %vm1916 = vcmp.eq.s32.totalorder %v1884, 1
      %vm1917 = vcmp.eq.s32.totalorder %v1885, 1
      %vm1918 = vcmp.eq.s32.totalorder %v1886, 1
      %vm1919 = vcmp.eq.s32.totalorder %v1887, 1
      %vm1920 = vcmp.eq.s32.totalorder %v1888, 1
      %vm1921 = vcmp.eq.s32.totalorder %v1889, 1
      %vm1922 = vcmp.eq.s32.totalorder %v1890, 1
      %vm1923 = vcmp.eq.s32.totalorder %v1891, 1
      %vm1924 = vcmp.eq.s32.totalorder %v1892, 1
      %vm1925 = vcmp.eq.s32.totalorder %v1893, 1
      %vm1926 = vcmp.eq.s32.totalorder %v1894, 1
      %vm1927 = vcmp.eq.s32.totalorder %v1895, 1
      %vm1928 = vcmp.eq.s32.totalorder %v1896, 1
      %vm1929 = vcmp.eq.s32.totalorder %v1897, 1
      %vm1930 = vcmp.eq.s32.totalorder %v1898, 1
      %vm1931 = vcmp.eq.s32.totalorder %v1899, 1
      %vm1932 = vcmp.eq.s32.totalorder %v1900, 1
      %vm1933 = vcmp.eq.s32.totalorder %v1901, 1
      %vm1934 = vcmp.eq.s32.totalorder %v1902, 1
      %vm1935 = vcmp.eq.s32.totalorder %v1903, 1
      %vm1936 = vcmp.eq.s32.totalorder %v1904, 1
      %v1937 = vsel %vm1905, %v1871, -inf
      %v1938 = vsel %vm1906, %v1870, -inf
      %v1939 = vsel %vm1907, %v1869, -inf
      %v1940 = vsel %vm1908, %v1868, -inf
      %v1941 = vsel %vm1909, %v1867, -inf
      %v1942 = vsel %vm1910, %v1866, -inf
      %v1943 = vsel %vm1911, %v1865, -inf
      %v1944 = vsel %vm1912, %v1864, -inf
      %v1945 = vsel %vm1913, %v1863, -inf
      %v1946 = vsel %vm1914, %v1862, -inf
      %v1947 = vsel %vm1915, %v1861, -inf
      %v1948 = vsel %vm1916, %v1860, -inf
      %v1949 = vsel %vm1917, %v1859, -inf
      %v1950 = vsel %vm1918, %v1858, -inf
      %v1951 = vsel %vm1919, %v1857, -inf
      %v1952 = vsel %vm1920, %v1856, -inf
      %v1953 = vsel %vm1921, %v1855, -inf
      %v1954 = vsel %vm1922, %v1854, -inf
      %v1955 = vsel %vm1923, %v1853, -inf
      %v1956 = vsel %vm1924, %v1852, -inf
      %v1957 = vsel %vm1925, %v1851, -inf
      %v1958 = vsel %vm1926, %v1850, -inf
      %v1959 = vsel %vm1927, %v1849, -inf
      %v1960 = vsel %vm1928, %v1848, -inf
      %v1961 = vsel %vm1929, %v1847, -inf
      %v1962 = vsel %vm1930, %v1846, -inf
      %v1963 = vsel %vm1931, %v1845, -inf
      %v1964 = vsel %vm1932, %v1844, -inf
      %v1965 = vsel %vm1933, %v1843, -inf
      %v1966 = vsel %vm1934, %v1842, -inf
      %v1967 = vsel %vm1935, %v1841, -inf
      %v1968 = vsel %vm1936, %v1872, -inf
      %v1969 = vmax.f32 %v1776, %v1937
      %v1970 = vmax.f32 %v1777, %v1938
      %v1971 = vmax.f32 %v1778, %v1939
      %v1972 = vmax.f32 %v1779, %v1940
      %v1973 = vmax.f32 %v1780, %v1941
      %v1974 = vmax.f32 %v1781, %v1942
      %v1975 = vmax.f32 %v1782, %v1943
      %v1976 = vmax.f32 %v1783, %v1944
      %v1977 = vmax.f32 %v1784, %v1945
      %v1978 = vmax.f32 %v1785, %v1946
      %v1979 = vmax.f32 %v1786, %v1947
      %v1980 = vmax.f32 %v1787, %v1948
      %v1981 = vmax.f32 %v1788, %v1949
      %v1982 = vmax.f32 %v1789, %v1950
      %v1983 = vmax.f32 %v1790, %v1951
      %v1984 = vmax.f32 %v1791, %v1952
      %v1985 = vmax.f32 %v1792, %v1953
      %v1986 = vmax.f32 %v1793, %v1954
      %v1987 = vmax.f32 %v1794, %v1955
      %v1988 = vmax.f32 %v1795, %v1956
      %v1989 = vmax.f32 %v1796, %v1957
      %v1990 = vmax.f32 %v1797, %v1958
      %v1991 = vmax.f32 %v1798, %v1959
      %v1992 = vmax.f32 %v1799, %v1960
      %v1993 = vmax.f32 %v1800, %v1961
      %v1994 = vmax.f32 %v1801, %v1962
      %v1995 = vmax.f32 %v1802, %v1963
      %v1996 = vmax.f32 %v1803, %v1964
      %v1997 = vmax.f32 %v1804, %v1965
      %v1998 = vmax.f32 %v1805, %v1966
      %v1999 = vmax.f32 %v1806, %v1967
      %v2000 = vmax.f32 %v1807, %v1968
      %v2001 = vrot.slane %v877, 6
      %v2002 = vrot.slane %v878, 6
      %v2003 = vrot.slane %v879, 6
      %v2004 = vrot.slane %v880, 6
      %v2005 = vrot.slane %v881, 6
      %v2006 = vrot.slane %v882, 6
      %v2007 = vrot.slane %v883, 6
      %v2008 = vrot.slane %v884, 6
      %v2009 = vrot.slane %v885, 6
      %v2010 = vrot.slane %v886, 6
      %v2011 = vrot.slane %v887, 6
      %v2012 = vrot.slane %v888, 6
      %v2013 = vrot.slane %v889, 6
      %v2014 = vrot.slane %v890, 6
      %v2015 = vrot.slane %v891, 6
      %v2016 = vrot.slane %v892, 6
      %v2017 = vrot.slane %v893, 6
      %v2018 = vrot.slane %v894, 6
      %v2019 = vrot.slane %v895, 6
      %v2020 = vrot.slane %v896, 6
      %v2021 = vrot.slane %v897, 6
      %v2022 = vrot.slane %v898, 6
      %v2023 = vrot.slane %v899, 6
      %v2024 = vrot.slane %v900, 6
      %v2025 = vrot.slane %v901, 6
      %v2026 = vrot.slane %v902, 6
      %v2027 = vrot.slane %v903, 6
      %v2028 = vrot.slane %v904, 6
      %v2029 = vrot.slane %v905, 6
      %v2030 = vrot.slane %v906, 6
      %v2031 = vrot.slane %v907, 6
      %v2032 = vrot.slane %v908, 6
      %vm2033 = vcmp.lt.s32.totalorder %v910, 2
      %v2034 = vsel %vm2033, %v2031, %v2032
      %v2035 = vsel %vm2033, %v2030, %v2031
      %v2036 = vsel %vm2033, %v2029, %v2030
      %v2037 = vsel %vm2033, %v2028, %v2029
      %v2038 = vsel %vm2033, %v2027, %v2028
      %v2039 = vsel %vm2033, %v2026, %v2027
      %v2040 = vsel %vm2033, %v2025, %v2026
      %v2041 = vsel %vm2033, %v2024, %v2025
      %v2042 = vsel %vm2033, %v2023, %v2024
      %v2043 = vsel %vm2033, %v2022, %v2023
      %v2044 = vsel %vm2033, %v2021, %v2022
      %v2045 = vsel %vm2033, %v2020, %v2021
      %v2046 = vsel %vm2033, %v2019, %v2020
      %v2047 = vsel %vm2033, %v2018, %v2019
      %v2048 = vsel %vm2033, %v2017, %v2018
      %v2049 = vsel %vm2033, %v2016, %v2017
      %v2050 = vsel %vm2033, %v2015, %v2016
      %v2051 = vsel %vm2033, %v2014, %v2015
      %v2052 = vsel %vm2033, %v2013, %v2014
      %v2053 = vsel %vm2033, %v2012, %v2013
      %v2054 = vsel %vm2033, %v2011, %v2012
      %v2055 = vsel %vm2033, %v2010, %v2011
      %v2056 = vsel %vm2033, %v2009, %v2010
      %v2057 = vsel %vm2033, %v2008, %v2009
      %v2058 = vsel %vm2033, %v2007, %v2008
      %v2059 = vsel %vm2033, %v2006, %v2007
      %v2060 = vsel %vm2033, %v2005, %v2006
      %v2061 = vsel %vm2033, %v2004, %v2005
      %v2062 = vsel %vm2033, %v2003, %v2004
      %v2063 = vsel %vm2033, %v2002, %v2003
      %v2064 = vsel %vm2033, %v2001, %v2002
      %v2065 = vsel %vm2033, %v2032, %v2001
      %v2066 = vsel %vm1326, 1, 0
      %v2067 = vsel %vm1327, 1, 0
      %v2068 = vsel %vm1328, 1, 0
      %v2069 = vsel %vm1329, 1, 0
      %v2070 = vsel %vm1330, 1, 0
      %v2071 = vsel %vm1331, 1, 0
      %v2072 = vsel %vm1332, 1, 0
      %v2073 = vsel %vm1333, 1, 0
      %v2074 = vsel %vm1334, 1, 0
      %v2075 = vsel %vm1335, 1, 0
      %v2076 = vsel %vm1336, 1, 0
      %v2077 = vsel %vm1337, 1, 0
      %v2078 = vsel %vm1338, 1, 0
      %v2079 = vsel %vm1339, 1, 0
      %v2080 = vsel %vm1340, 1, 0
      %v2081 = vsel %vm1341, 1, 0
      %v2082 = vsel %vm1342, 1, 0
      %v2083 = vsel %vm1343, 1, 0
      %v2084 = vsel %vm1344, 1, 0
      %v2085 = vsel %vm1345, 1, 0
      %v2086 = vsel %vm1346, 1, 0
      %v2087 = vsel %vm1347, 1, 0
      %v2088 = vsel %vm1348, 1, 0
      %v2089 = vsel %vm1349, 1, 0
      %v2090 = vsel %vm1350, 1, 0
      %v2091 = vsel %vm1351, 1, 0
      %v2092 = vsel %vm1352, 1, 0
      %v2093 = vsel %vm1353, 1, 0
      %v2094 = vsel %vm1354, 1, 0
      %v2095 = vsel %vm1355, 1, 0
      %v2096 = vsel %vm1356, 1, 0
      %v2097 = vsel %vm1357, 1, 0
      %vm2098 = vcmp.eq.s32.totalorder %v2066, 1
      %vm2099 = vcmp.eq.s32.totalorder %v2067, 1
      %vm2100 = vcmp.eq.s32.totalorder %v2068, 1
      %vm2101 = vcmp.eq.s32.totalorder %v2069, 1
      %vm2102 = vcmp.eq.s32.totalorder %v2070, 1
      %vm2103 = vcmp.eq.s32.totalorder %v2071, 1
      %vm2104 = vcmp.eq.s32.totalorder %v2072, 1
      %vm2105 = vcmp.eq.s32.totalorder %v2073, 1
      %vm2106 = vcmp.eq.s32.totalorder %v2074, 1
      %vm2107 = vcmp.eq.s32.totalorder %v2075, 1
      %vm2108 = vcmp.eq.s32.totalorder %v2076, 1
      %vm2109 = vcmp.eq.s32.totalorder %v2077, 1
      %vm2110 = vcmp.eq.s32.totalorder %v2078, 1
      %vm2111 = vcmp.eq.s32.totalorder %v2079, 1
      %vm2112 = vcmp.eq.s32.totalorder %v2080, 1
      %vm2113 = vcmp.eq.s32.totalorder %v2081, 1
      %vm2114 = vcmp.eq.s32.totalorder %v2082, 1
      %vm2115 = vcmp.eq.s32.totalorder %v2083, 1
      %vm2116 = vcmp.eq.s32.totalorder %v2084, 1
      %vm2117 = vcmp.eq.s32.totalorder %v2085, 1
      %vm2118 = vcmp.eq.s32.totalorder %v2086, 1
      %vm2119 = vcmp.eq.s32.totalorder %v2087, 1
      %vm2120 = vcmp.eq.s32.totalorder %v2088, 1
      %vm2121 = vcmp.eq.s32.totalorder %v2089, 1
      %vm2122 = vcmp.eq.s32.totalorder %v2090, 1
      %vm2123 = vcmp.eq.s32.totalorder %v2091, 1
      %vm2124 = vcmp.eq.s32.totalorder %v2092, 1
      %vm2125 = vcmp.eq.s32.totalorder %v2093, 1
      %vm2126 = vcmp.eq.s32.totalorder %v2094, 1
      %vm2127 = vcmp.eq.s32.totalorder %v2095, 1
      %vm2128 = vcmp.eq.s32.totalorder %v2096, 1
      %vm2129 = vcmp.eq.s32.totalorder %v2097, 1
      %v2130 = vsel %vm2098, %v2065, -inf
      %v2131 = vsel %vm2099, %v2064, -inf
      %v2132 = vsel %vm2100, %v2063, -inf
      %v2133 = vsel %vm2101, %v2062, -inf
      %v2134 = vsel %vm2102, %v2061, -inf
      %v2135 = vsel %vm2103, %v2060, -inf
      %v2136 = vsel %vm2104, %v2059, -inf
      %v2137 = vsel %vm2105, %v2058, -inf
      %v2138 = vsel %vm2106, %v2057, -inf
      %v2139 = vsel %vm2107, %v2056, -inf
      %v2140 = vsel %vm2108, %v2055, -inf
      %v2141 = vsel %vm2109, %v2054, -inf
      %v2142 = vsel %vm2110, %v2053, -inf
      %v2143 = vsel %vm2111, %v2052, -inf
      %v2144 = vsel %vm2112, %v2051, -inf
      %v2145 = vsel %vm2113, %v2050, -inf
      %v2146 = vsel %vm2114, %v2049, -inf
      %v2147 = vsel %vm2115, %v2048, -inf
      %v2148 = vsel %vm2116, %v2047, -inf
      %v2149 = vsel %vm2117, %v2046, -inf
      %v2150 = vsel %vm2118, %v2045, -inf
      %v2151 = vsel %vm2119, %v2044, -inf
      %v2152 = vsel %vm2120, %v2043, -inf
      %v2153 = vsel %vm2121, %v2042, -inf
      %v2154 = vsel %vm2122, %v2041, -inf
      %v2155 = vsel %vm2123, %v2040, -inf
      %v2156 = vsel %vm2124, %v2039, -inf
      %v2157 = vsel %vm2125, %v2038, -inf
      %v2158 = vsel %vm2126, %v2037, -inf
      %v2159 = vsel %vm2127, %v2036, -inf
      %v2160 = vsel %vm2128, %v2035, -inf
      %v2161 = vsel %vm2129, %v2034, -inf
      %v2162 = vmax.f32 %v1969, %v2130
      %v2163 = vmax.f32 %v1970, %v2131
      %v2164 = vmax.f32 %v1971, %v2132
      %v2165 = vmax.f32 %v1972, %v2133
      %v2166 = vmax.f32 %v1973, %v2134
      %v2167 = vmax.f32 %v1974, %v2135
      %v2168 = vmax.f32 %v1975, %v2136
      %v2169 = vmax.f32 %v1976, %v2137
      %v2170 = vmax.f32 %v1977, %v2138
      %v2171 = vmax.f32 %v1978, %v2139
      %v2172 = vmax.f32 %v1979, %v2140
      %v2173 = vmax.f32 %v1980, %v2141
      %v2174 = vmax.f32 %v1981, %v2142
      %v2175 = vmax.f32 %v1982, %v2143
      %v2176 = vmax.f32 %v1983, %v2144
      %v2177 = vmax.f32 %v1984, %v2145
      %v2178 = vmax.f32 %v1985, %v2146
      %v2179 = vmax.f32 %v1986, %v2147
      %v2180 = vmax.f32 %v1987, %v2148
      %v2181 = vmax.f32 %v1988, %v2149
      %v2182 = vmax.f32 %v1989, %v2150
      %v2183 = vmax.f32 %v1990, %v2151
      %v2184 = vmax.f32 %v1991, %v2152
      %v2185 = vmax.f32 %v1992, %v2153
      %v2186 = vmax.f32 %v1993, %v2154
      %v2187 = vmax.f32 %v1994, %v2155
      %v2188 = vmax.f32 %v1995, %v2156
      %v2189 = vmax.f32 %v1996, %v2157
      %v2190 = vmax.f32 %v1997, %v2158
      %v2191 = vmax.f32 %v1998, %v2159
      %v2192 = vmax.f32 %v1999, %v2160
      %v2193 = vmax.f32 %v2000, %v2161
      %v2194 = vsel %vm1230, 1, 0
      %v2195 = vsel %vm1231, 1, 0
      %v2196 = vsel %vm1232, 1, 0
      %v2197 = vsel %vm1233, 1, 0
      %v2198 = vsel %vm1234, 1, 0
      %v2199 = vsel %vm1235, 1, 0
      %v2200 = vsel %vm1236, 1, 0
      %v2201 = vsel %vm1237, 1, 0
      %v2202 = vsel %vm1238, 1, 0
      %v2203 = vsel %vm1239, 1, 0
      %v2204 = vsel %vm1240, 1, 0
      %v2205 = vsel %vm1241, 1, 0
      %v2206 = vsel %vm1242, 1, 0
      %v2207 = vsel %vm1243, 1, 0
      %v2208 = vsel %vm1244, 1, 0
      %v2209 = vsel %vm1245, 1, 0
      %v2210 = vsel %vm1246, 1, 0
      %v2211 = vsel %vm1247, 1, 0
      %v2212 = vsel %vm1248, 1, 0
      %v2213 = vsel %vm1249, 1, 0
      %v2214 = vsel %vm1250, 1, 0
      %v2215 = vsel %vm1251, 1, 0
      %v2216 = vsel %vm1252, 1, 0
      %v2217 = vsel %vm1253, 1, 0
      %v2218 = vsel %vm1254, 1, 0
      %v2219 = vsel %vm1255, 1, 0
      %v2220 = vsel %vm1256, 1, 0
      %v2221 = vsel %vm1257, 1, 0
      %v2222 = vsel %vm1258, 1, 0
      %v2223 = vsel %vm1259, 1, 0
      %v2224 = vsel %vm1260, 1, 0
      %v2225 = vsel %vm1261, 1, 0
      %vm2226 = vcmp.eq.s32.totalorder %v2194, 1
      %vm2227 = vcmp.eq.s32.totalorder %v2195, 1
      %vm2228 = vcmp.eq.s32.totalorder %v2196, 1
      %vm2229 = vcmp.eq.s32.totalorder %v2197, 1
      %vm2230 = vcmp.eq.s32.totalorder %v2198, 1
      %vm2231 = vcmp.eq.s32.totalorder %v2199, 1
      %vm2232 = vcmp.eq.s32.totalorder %v2200, 1
      %vm2233 = vcmp.eq.s32.totalorder %v2201, 1
      %vm2234 = vcmp.eq.s32.totalorder %v2202, 1
      %vm2235 = vcmp.eq.s32.totalorder %v2203, 1
      %vm2236 = vcmp.eq.s32.totalorder %v2204, 1
      %vm2237 = vcmp.eq.s32.totalorder %v2205, 1
      %vm2238 = vcmp.eq.s32.totalorder %v2206, 1
      %vm2239 = vcmp.eq.s32.totalorder %v2207, 1
      %vm2240 = vcmp.eq.s32.totalorder %v2208, 1
      %vm2241 = vcmp.eq.s32.totalorder %v2209, 1
      %vm2242 = vcmp.eq.s32.totalorder %v2210, 1
      %vm2243 = vcmp.eq.s32.totalorder %v2211, 1
      %vm2244 = vcmp.eq.s32.totalorder %v2212, 1
      %vm2245 = vcmp.eq.s32.totalorder %v2213, 1
      %vm2246 = vcmp.eq.s32.totalorder %v2214, 1
      %vm2247 = vcmp.eq.s32.totalorder %v2215, 1
      %vm2248 = vcmp.eq.s32.totalorder %v2216, 1
      %vm2249 = vcmp.eq.s32.totalorder %v2217, 1
      %vm2250 = vcmp.eq.s32.totalorder %v2218, 1
      %vm2251 = vcmp.eq.s32.totalorder %v2219, 1
      %vm2252 = vcmp.eq.s32.totalorder %v2220, 1
      %vm2253 = vcmp.eq.s32.totalorder %v2221, 1
      %vm2254 = vcmp.eq.s32.totalorder %v2222, 1
      %vm2255 = vcmp.eq.s32.totalorder %v2223, 1
      %vm2256 = vcmp.eq.s32.totalorder %v2224, 1
      %vm2257 = vcmp.eq.s32.totalorder %v2225, 1
      %v2258 = vsel %vm2226, %v2164, -inf
      %v2259 = vsel %vm2227, %v2165, -inf
      %v2260 = vsel %vm2228, %v2166, -inf
      %v2261 = vsel %vm2229, %v2167, -inf
      %v2262 = vsel %vm2230, %v2168, -inf
      %v2263 = vsel %vm2231, %v2169, -inf
      %v2264 = vsel %vm2232, %v2170, -inf
      %v2265 = vsel %vm2233, %v2171, -inf
      %v2266 = vsel %vm2234, %v2172, -inf
      %v2267 = vsel %vm2235, %v2173, -inf
      %v2268 = vsel %vm2236, %v2174, -inf
      %v2269 = vsel %vm2237, %v2175, -inf
      %v2270 = vsel %vm2238, %v2176, -inf
      %v2271 = vsel %vm2239, %v2177, -inf
      %v2272 = vsel %vm2240, %v2178, -inf
      %v2273 = vsel %vm2241, %v2179, -inf
      %v2274 = vsel %vm2242, %v2180, -inf
      %v2275 = vsel %vm2243, %v2181, -inf
      %v2276 = vsel %vm2244, %v2182, -inf
      %v2277 = vsel %vm2245, %v2183, -inf
      %v2278 = vsel %vm2246, %v2184, -inf
      %v2279 = vsel %vm2247, %v2185, -inf
      %v2280 = vsel %vm2248, %v2186, -inf
      %v2281 = vsel %vm2249, %v2187, -inf
      %v2282 = vsel %vm2250, %v2188, -inf
      %v2283 = vsel %vm2251, %v2189, -inf
      %v2284 = vsel %vm2252, %v2190, -inf
      %v2285 = vsel %vm2253, %v2191, -inf
      %v2286 = vsel %vm2254, %v2192, -inf
      %v2287 = vsel %vm2255, %v2193, -inf
      %v2288 = vsel %vm2256, %v2162, -inf
      %v2289 = vsel %vm2257, %v2163, -inf
      %v2290 = vmax.f32 %v2162, %v2258
      %v2291 = vmax.f32 %v2163, %v2259
      %v2292 = vmax.f32 %v2164, %v2260
      %v2293 = vmax.f32 %v2165, %v2261
      %v2294 = vmax.f32 %v2166, %v2262
      %v2295 = vmax.f32 %v2167, %v2263
      %v2296 = vmax.f32 %v2168, %v2264
      %v2297 = vmax.f32 %v2169, %v2265
      %v2298 = vmax.f32 %v2170, %v2266
      %v2299 = vmax.f32 %v2171, %v2267
      %v2300 = vmax.f32 %v2172, %v2268
      %v2301 = vmax.f32 %v2173, %v2269
      %v2302 = vmax.f32 %v2174, %v2270
      %v2303 = vmax.f32 %v2175, %v2271
      %v2304 = vmax.f32 %v2176, %v2272
      %v2305 = vmax.f32 %v2177, %v2273
      %v2306 = vmax.f32 %v2178, %v2274
      %v2307 = vmax.f32 %v2179, %v2275
      %v2308 = vmax.f32 %v2180, %v2276
      %v2309 = vmax.f32 %v2181, %v2277
      %v2310 = vmax.f32 %v2182, %v2278
      %v2311 = vmax.f32 %v2183, %v2279
      %v2312 = vmax.f32 %v2184, %v2280
      %v2313 = vmax.f32 %v2185, %v2281
      %v2314 = vmax.f32 %v2186, %v2282
      %v2315 = vmax.f32 %v2187, %v2283
      %v2316 = vmax.f32 %v2188, %v2284
      %v2317 = vmax.f32 %v2189, %v2285
      %v2318 = vmax.f32 %v2190, %v2286
      %v2319 = vmax.f32 %v2191, %v2287
      %v2320 = vmax.f32 %v2192, %v2288
      %v2321 = vmax.f32 %v2193, %v2289
      %v2322 = vsel %vm1262, 1, 0
      %v2323 = vsel %vm1263, 1, 0
      %v2324 = vsel %vm1264, 1, 0
      %v2325 = vsel %vm1265, 1, 0
      %v2326 = vsel %vm1266, 1, 0
      %v2327 = vsel %vm1267, 1, 0
      %v2328 = vsel %vm1268, 1, 0
      %v2329 = vsel %vm1269, 1, 0
      %v2330 = vsel %vm1270, 1, 0
      %v2331 = vsel %vm1271, 1, 0
      %v2332 = vsel %vm1272, 1, 0
      %v2333 = vsel %vm1273, 1, 0
      %v2334 = vsel %vm1274, 1, 0
      %v2335 = vsel %vm1275, 1, 0
      %v2336 = vsel %vm1276, 1, 0
      %v2337 = vsel %vm1277, 1, 0
      %v2338 = vsel %vm1278, 1, 0
      %v2339 = vsel %vm1279, 1, 0
      %v2340 = vsel %vm1280, 1, 0
      %v2341 = vsel %vm1281, 1, 0
      %v2342 = vsel %vm1282, 1, 0
      %v2343 = vsel %vm1283, 1, 0
      %v2344 = vsel %vm1284, 1, 0
      %v2345 = vsel %vm1285, 1, 0
      %v2346 = vsel %vm1286, 1, 0
      %v2347 = vsel %vm1287, 1, 0
      %v2348 = vsel %vm1288, 1, 0
      %v2349 = vsel %vm1289, 1, 0
      %v2350 = vsel %vm1290, 1, 0
      %v2351 = vsel %vm1291, 1, 0
      %v2352 = vsel %vm1292, 1, 0
      %v2353 = vsel %vm1293, 1, 0
      %vm2354 = vcmp.eq.s32.totalorder %v2322, 1
      %vm2355 = vcmp.eq.s32.totalorder %v2323, 1
      %vm2356 = vcmp.eq.s32.totalorder %v2324, 1
      %vm2357 = vcmp.eq.s32.totalorder %v2325, 1
      %vm2358 = vcmp.eq.s32.totalorder %v2326, 1
      %vm2359 = vcmp.eq.s32.totalorder %v2327, 1
      %vm2360 = vcmp.eq.s32.totalorder %v2328, 1
      %vm2361 = vcmp.eq.s32.totalorder %v2329, 1
      %vm2362 = vcmp.eq.s32.totalorder %v2330, 1
      %vm2363 = vcmp.eq.s32.totalorder %v2331, 1
      %vm2364 = vcmp.eq.s32.totalorder %v2332, 1
      %vm2365 = vcmp.eq.s32.totalorder %v2333, 1
      %vm2366 = vcmp.eq.s32.totalorder %v2334, 1
      %vm2367 = vcmp.eq.s32.totalorder %v2335, 1
      %vm2368 = vcmp.eq.s32.totalorder %v2336, 1
      %vm2369 = vcmp.eq.s32.totalorder %v2337, 1
      %vm2370 = vcmp.eq.s32.totalorder %v2338, 1
      %vm2371 = vcmp.eq.s32.totalorder %v2339, 1
      %vm2372 = vcmp.eq.s32.totalorder %v2340, 1
      %vm2373 = vcmp.eq.s32.totalorder %v2341, 1
      %vm2374 = vcmp.eq.s32.totalorder %v2342, 1
      %vm2375 = vcmp.eq.s32.totalorder %v2343, 1
      %vm2376 = vcmp.eq.s32.totalorder %v2344, 1
      %vm2377 = vcmp.eq.s32.totalorder %v2345, 1
      %vm2378 = vcmp.eq.s32.totalorder %v2346, 1
      %vm2379 = vcmp.eq.s32.totalorder %v2347, 1
      %vm2380 = vcmp.eq.s32.totalorder %v2348, 1
      %vm2381 = vcmp.eq.s32.totalorder %v2349, 1
      %vm2382 = vcmp.eq.s32.totalorder %v2350, 1
      %vm2383 = vcmp.eq.s32.totalorder %v2351, 1
      %vm2384 = vcmp.eq.s32.totalorder %v2352, 1
      %vm2385 = vcmp.eq.s32.totalorder %v2353, 1
      %v2386 = vsel %vm2354, %v2192, -inf
      %v2387 = vsel %vm2355, %v2193, -inf
      %v2388 = vsel %vm2356, %v2162, -inf
      %v2389 = vsel %vm2357, %v2163, -inf
      %v2390 = vsel %vm2358, %v2164, -inf
      %v2391 = vsel %vm2359, %v2165, -inf
      %v2392 = vsel %vm2360, %v2166, -inf
      %v2393 = vsel %vm2361, %v2167, -inf
      %v2394 = vsel %vm2362, %v2168, -inf
      %v2395 = vsel %vm2363, %v2169, -inf
      %v2396 = vsel %vm2364, %v2170, -inf
      %v2397 = vsel %vm2365, %v2171, -inf
      %v2398 = vsel %vm2366, %v2172, -inf
      %v2399 = vsel %vm2367, %v2173, -inf
      %v2400 = vsel %vm2368, %v2174, -inf
      %v2401 = vsel %vm2369, %v2175, -inf
      %v2402 = vsel %vm2370, %v2176, -inf
      %v2403 = vsel %vm2371, %v2177, -inf
      %v2404 = vsel %vm2372, %v2178, -inf
      %v2405 = vsel %vm2373, %v2179, -inf
      %v2406 = vsel %vm2374, %v2180, -inf
      %v2407 = vsel %vm2375, %v2181, -inf
      %v2408 = vsel %vm2376, %v2182, -inf
      %v2409 = vsel %vm2377, %v2183, -inf
      %v2410 = vsel %vm2378, %v2184, -inf
      %v2411 = vsel %vm2379, %v2185, -inf
      %v2412 = vsel %vm2380, %v2186, -inf
      %v2413 = vsel %vm2381, %v2187, -inf
      %v2414 = vsel %vm2382, %v2188, -inf
      %v2415 = vsel %vm2383, %v2189, -inf
      %v2416 = vsel %vm2384, %v2190, -inf
      %v2417 = vsel %vm2385, %v2191, -inf
      %v2418 = vmax.f32 %v2290, %v2386
      %v2419 = vmax.f32 %v2291, %v2387
      %v2420 = vmax.f32 %v2292, %v2388
      %v2421 = vmax.f32 %v2293, %v2389
      %v2422 = vmax.f32 %v2294, %v2390
      %v2423 = vmax.f32 %v2295, %v2391
      %v2424 = vmax.f32 %v2296, %v2392
      %v2425 = vmax.f32 %v2297, %v2393
      %v2426 = vmax.f32 %v2298, %v2394
      %v2427 = vmax.f32 %v2299, %v2395
      %v2428 = vmax.f32 %v2300, %v2396
      %v2429 = vmax.f32 %v2301, %v2397
      %v2430 = vmax.f32 %v2302, %v2398
      %v2431 = vmax.f32 %v2303, %v2399
      %v2432 = vmax.f32 %v2304, %v2400
      %v2433 = vmax.f32 %v2305, %v2401
      %v2434 = vmax.f32 %v2306, %v2402
      %v2435 = vmax.f32 %v2307, %v2403
      %v2436 = vmax.f32 %v2308, %v2404
      %v2437 = vmax.f32 %v2309, %v2405
      %v2438 = vmax.f32 %v2310, %v2406
      %v2439 = vmax.f32 %v2311, %v2407
      %v2440 = vmax.f32 %v2312, %v2408
      %v2441 = vmax.f32 %v2313, %v2409
      %v2442 = vmax.f32 %v2314, %v2410
      %v2443 = vmax.f32 %v2315, %v2411
      %v2444 = vmax.f32 %v2316, %v2412
      %v2445 = vmax.f32 %v2317, %v2413
      %v2446 = vmax.f32 %v2318, %v2414
      %v2447 = vmax.f32 %v2319, %v2415
      %v2448 = vmax.f32 %v2320, %v2416
      %v2449 = vmax.f32 %v2321, %v2417
      %v2450 = vsel %vm1358, 1, 0
      %v2451 = vsel %vm1359, 1, 0
      %v2452 = vsel %vm1360, 1, 0
      %v2453 = vsel %vm1361, 1, 0
      %v2454 = vsel %vm1362, 1, 0
      %v2455 = vsel %vm1363, 1, 0
      %v2456 = vsel %vm1364, 1, 0
      %v2457 = vsel %vm1365, 1, 0
      %v2458 = vsel %vm1366, 1, 0
      %v2459 = vsel %vm1367, 1, 0
      %v2460 = vsel %vm1368, 1, 0
      %v2461 = vsel %vm1369, 1, 0
      %v2462 = vsel %vm1370, 1, 0
      %v2463 = vsel %vm1371, 1, 0
      %v2464 = vsel %vm1372, 1, 0
      %v2465 = vsel %vm1373, 1, 0
      %v2466 = vsel %vm1374, 1, 0
      %v2467 = vsel %vm1375, 1, 0
      %v2468 = vsel %vm1376, 1, 0
      %v2469 = vsel %vm1377, 1, 0
      %v2470 = vsel %vm1378, 1, 0
      %v2471 = vsel %vm1379, 1, 0
      %v2472 = vsel %vm1380, 1, 0
      %v2473 = vsel %vm1381, 1, 0
      %v2474 = vsel %vm1382, 1, 0
      %v2475 = vsel %vm1383, 1, 0
      %v2476 = vsel %vm1384, 1, 0
      %v2477 = vsel %vm1385, 1, 0
      %v2478 = vsel %vm1386, 1, 0
      %v2479 = vsel %vm1387, 1, 0
      %v2480 = vsel %vm1388, 1, 0
      %v2481 = vsel %vm1389, 1, 0
      %vm2482 = vcmp.eq.s32.totalorder %v2450, 1
      %vm2483 = vcmp.eq.s32.totalorder %v2451, 1
      %vm2484 = vcmp.eq.s32.totalorder %v2452, 1
      %vm2485 = vcmp.eq.s32.totalorder %v2453, 1
      %vm2486 = vcmp.eq.s32.totalorder %v2454, 1
      %vm2487 = vcmp.eq.s32.totalorder %v2455, 1
      %vm2488 = vcmp.eq.s32.totalorder %v2456, 1
      %vm2489 = vcmp.eq.s32.totalorder %v2457, 1
      %vm2490 = vcmp.eq.s32.totalorder %v2458, 1
      %vm2491 = vcmp.eq.s32.totalorder %v2459, 1
      %vm2492 = vcmp.eq.s32.totalorder %v2460, 1
      %vm2493 = vcmp.eq.s32.totalorder %v2461, 1
      %vm2494 = vcmp.eq.s32.totalorder %v2462, 1
      %vm2495 = vcmp.eq.s32.totalorder %v2463, 1
      %vm2496 = vcmp.eq.s32.totalorder %v2464, 1
      %vm2497 = vcmp.eq.s32.totalorder %v2465, 1
      %vm2498 = vcmp.eq.s32.totalorder %v2466, 1
      %vm2499 = vcmp.eq.s32.totalorder %v2467, 1
      %vm2500 = vcmp.eq.s32.totalorder %v2468, 1
      %vm2501 = vcmp.eq.s32.totalorder %v2469, 1
      %vm2502 = vcmp.eq.s32.totalorder %v2470, 1
      %vm2503 = vcmp.eq.s32.totalorder %v2471, 1
      %vm2504 = vcmp.eq.s32.totalorder %v2472, 1
      %vm2505 = vcmp.eq.s32.totalorder %v2473, 1
      %vm2506 = vcmp.eq.s32.totalorder %v2474, 1
      %vm2507 = vcmp.eq.s32.totalorder %v2475, 1
      %vm2508 = vcmp.eq.s32.totalorder %v2476, 1
      %vm2509 = vcmp.eq.s32.totalorder %v2477, 1
      %vm2510 = vcmp.eq.s32.totalorder %v2478, 1
      %vm2511 = vcmp.eq.s32.totalorder %v2479, 1
      %vm2512 = vcmp.eq.s32.totalorder %v2480, 1
      %vm2513 = vcmp.eq.s32.totalorder %v2481, 1
      %v2514 = vsel %vm2482, %v2166, -inf
      %v2515 = vsel %vm2483, %v2167, -inf
      %v2516 = vsel %vm2484, %v2168, -inf
      %v2517 = vsel %vm2485, %v2169, -inf
      %v2518 = vsel %vm2486, %v2170, -inf
      %v2519 = vsel %vm2487, %v2171, -inf
      %v2520 = vsel %vm2488, %v2172, -inf
      %v2521 = vsel %vm2489, %v2173, -inf
      %v2522 = vsel %vm2490, %v2174, -inf
      %v2523 = vsel %vm2491, %v2175, -inf
      %v2524 = vsel %vm2492, %v2176, -inf
      %v2525 = vsel %vm2493, %v2177, -inf
      %v2526 = vsel %vm2494, %v2178, -inf
      %v2527 = vsel %vm2495, %v2179, -inf
      %v2528 = vsel %vm2496, %v2180, -inf
      %v2529 = vsel %vm2497, %v2181, -inf
      %v2530 = vsel %vm2498, %v2182, -inf
      %v2531 = vsel %vm2499, %v2183, -inf
      %v2532 = vsel %vm2500, %v2184, -inf
      %v2533 = vsel %vm2501, %v2185, -inf
      %v2534 = vsel %vm2502, %v2186, -inf
      %v2535 = vsel %vm2503, %v2187, -inf
      %v2536 = vsel %vm2504, %v2188, -inf
      %v2537 = vsel %vm2505, %v2189, -inf
      %v2538 = vsel %vm2506, %v2190, -inf
      %v2539 = vsel %vm2507, %v2191, -inf
      %v2540 = vsel %vm2508, %v2192, -inf
      %v2541 = vsel %vm2509, %v2193, -inf
      %v2542 = vsel %vm2510, %v2162, -inf
      %v2543 = vsel %vm2511, %v2163, -inf
      %v2544 = vsel %vm2512, %v2164, -inf
      %v2545 = vsel %vm2513, %v2165, -inf
      %v2546 = vmax.f32 %v2418, %v2514
      %v2547 = vmax.f32 %v2419, %v2515
      %v2548 = vmax.f32 %v2420, %v2516
      %v2549 = vmax.f32 %v2421, %v2517
      %v2550 = vmax.f32 %v2422, %v2518
      %v2551 = vmax.f32 %v2423, %v2519
      %v2552 = vmax.f32 %v2424, %v2520
      %v2553 = vmax.f32 %v2425, %v2521
      %v2554 = vmax.f32 %v2426, %v2522
      %v2555 = vmax.f32 %v2427, %v2523
      %v2556 = vmax.f32 %v2428, %v2524
      %v2557 = vmax.f32 %v2429, %v2525
      %v2558 = vmax.f32 %v2430, %v2526
      %v2559 = vmax.f32 %v2431, %v2527
      %v2560 = vmax.f32 %v2432, %v2528
      %v2561 = vmax.f32 %v2433, %v2529
      %v2562 = vmax.f32 %v2434, %v2530
      %v2563 = vmax.f32 %v2435, %v2531
      %v2564 = vmax.f32 %v2436, %v2532
      %v2565 = vmax.f32 %v2437, %v2533
      %v2566 = vmax.f32 %v2438, %v2534
      %v2567 = vmax.f32 %v2439, %v2535
      %v2568 = vmax.f32 %v2440, %v2536
      %v2569 = vmax.f32 %v2441, %v2537
      %v2570 = vmax.f32 %v2442, %v2538
      %v2571 = vmax.f32 %v2443, %v2539
      %v2572 = vmax.f32 %v2444, %v2540
      %v2573 = vmax.f32 %v2445, %v2541
      %v2574 = vmax.f32 %v2446, %v2542
      %v2575 = vmax.f32 %v2447, %v2543
      %v2576 = vmax.f32 %v2448, %v2544
      %v2577 = vmax.f32 %v2449, %v2545
      %v2578 = vsel %vm1390, 1, 0
      %v2579 = vsel %vm1391, 1, 0
      %v2580 = vsel %vm1392, 1, 0
      %v2581 = vsel %vm1393, 1, 0
      %v2582 = vsel %vm1394, 1, 0
      %v2583 = vsel %vm1395, 1, 0
      %v2584 = vsel %vm1396, 1, 0
      %v2585 = vsel %vm1397, 1, 0
      %v2586 = vsel %vm1398, 1, 0
      %v2587 = vsel %vm1399, 1, 0
      %v2588 = vsel %vm1400, 1, 0
      %v2589 = vsel %vm1401, 1, 0
      %v2590 = vsel %vm1402, 1, 0
      %v2591 = vsel %vm1403, 1, 0
      %v2592 = vsel %vm1404, 1, 0
      %v2593 = vsel %vm1405, 1, 0
      %v2594 = vsel %vm1406, 1, 0
      %v2595 = vsel %vm1407, 1, 0
      %v2596 = vsel %vm1408, 1, 0
      %v2597 = vsel %vm1409, 1, 0
      %v2598 = vsel %vm1410, 1, 0
      %v2599 = vsel %vm1411, 1, 0
      %v2600 = vsel %vm1412, 1, 0
      %v2601 = vsel %vm1413, 1, 0
      %v2602 = vsel %vm1414, 1, 0
      %v2603 = vsel %vm1415, 1, 0
      %v2604 = vsel %vm1416, 1, 0
      %v2605 = vsel %vm1417, 1, 0
      %v2606 = vsel %vm1418, 1, 0
      %v2607 = vsel %vm1419, 1, 0
      %v2608 = vsel %vm1420, 1, 0
      %v2609 = vsel %vm1421, 1, 0
      %vm2610 = vcmp.eq.s32.totalorder %v2578, 1
      %vm2611 = vcmp.eq.s32.totalorder %v2579, 1
      %vm2612 = vcmp.eq.s32.totalorder %v2580, 1
      %vm2613 = vcmp.eq.s32.totalorder %v2581, 1
      %vm2614 = vcmp.eq.s32.totalorder %v2582, 1
      %vm2615 = vcmp.eq.s32.totalorder %v2583, 1
      %vm2616 = vcmp.eq.s32.totalorder %v2584, 1
      %vm2617 = vcmp.eq.s32.totalorder %v2585, 1
      %vm2618 = vcmp.eq.s32.totalorder %v2586, 1
      %vm2619 = vcmp.eq.s32.totalorder %v2587, 1
      %vm2620 = vcmp.eq.s32.totalorder %v2588, 1
      %vm2621 = vcmp.eq.s32.totalorder %v2589, 1
      %vm2622 = vcmp.eq.s32.totalorder %v2590, 1
      %vm2623 = vcmp.eq.s32.totalorder %v2591, 1
      %vm2624 = vcmp.eq.s32.totalorder %v2592, 1
      %vm2625 = vcmp.eq.s32.totalorder %v2593, 1
      %vm2626 = vcmp.eq.s32.totalorder %v2594, 1
      %vm2627 = vcmp.eq.s32.totalorder %v2595, 1
      %vm2628 = vcmp.eq.s32.totalorder %v2596, 1
      %vm2629 = vcmp.eq.s32.totalorder %v2597, 1
      %vm2630 = vcmp.eq.s32.totalorder %v2598, 1
      %vm2631 = vcmp.eq.s32.totalorder %v2599, 1
      %vm2632 = vcmp.eq.s32.totalorder %v2600, 1
      %vm2633 = vcmp.eq.s32.totalorder %v2601, 1
      %vm2634 = vcmp.eq.s32.totalorder %v2602, 1
      %vm2635 = vcmp.eq.s32.totalorder %v2603, 1
      %vm2636 = vcmp.eq.s32.totalorder %v2604, 1
      %vm2637 = vcmp.eq.s32.totalorder %v2605, 1
      %vm2638 = vcmp.eq.s32.totalorder %v2606, 1
      %vm2639 = vcmp.eq.s32.totalorder %v2607, 1
      %vm2640 = vcmp.eq.s32.totalorder %v2608, 1
      %vm2641 = vcmp.eq.s32.totalorder %v2609, 1
      %v2642 = vsel %vm2610, %v2190, -inf
      %v2643 = vsel %vm2611, %v2191, -inf
      %v2644 = vsel %vm2612, %v2192, -inf
      %v2645 = vsel %vm2613, %v2193, -inf
      %v2646 = vsel %vm2614, %v2162, -inf
      %v2647 = vsel %vm2615, %v2163, -inf
      %v2648 = vsel %vm2616, %v2164, -inf
      %v2649 = vsel %vm2617, %v2165, -inf
      %v2650 = vsel %vm2618, %v2166, -inf
      %v2651 = vsel %vm2619, %v2167, -inf
      %v2652 = vsel %vm2620, %v2168, -inf
      %v2653 = vsel %vm2621, %v2169, -inf
      %v2654 = vsel %vm2622, %v2170, -inf
      %v2655 = vsel %vm2623, %v2171, -inf
      %v2656 = vsel %vm2624, %v2172, -inf
      %v2657 = vsel %vm2625, %v2173, -inf
      %v2658 = vsel %vm2626, %v2174, -inf
      %v2659 = vsel %vm2627, %v2175, -inf
      %v2660 = vsel %vm2628, %v2176, -inf
      %v2661 = vsel %vm2629, %v2177, -inf
      %v2662 = vsel %vm2630, %v2178, -inf
      %v2663 = vsel %vm2631, %v2179, -inf
      %v2664 = vsel %vm2632, %v2180, -inf
      %v2665 = vsel %vm2633, %v2181, -inf
      %v2666 = vsel %vm2634, %v2182, -inf
      %v2667 = vsel %vm2635, %v2183, -inf
      %v2668 = vsel %vm2636, %v2184, -inf
      %v2669 = vsel %vm2637, %v2185, -inf
      %v2670 = vsel %vm2638, %v2186, -inf
      %v2671 = vsel %vm2639, %v2187, -inf
      %v2672 = vsel %vm2640, %v2188, -inf
      %v2673 = vsel %vm2641, %v2189, -inf
      %v2674 = vmax.f32 %v2546, %v2642
      %v2675 = vmax.f32 %v2547, %v2643
      %v2676 = vmax.f32 %v2548, %v2644
      %v2677 = vmax.f32 %v2549, %v2645
      %v2678 = vmax.f32 %v2550, %v2646
      %v2679 = vmax.f32 %v2551, %v2647
      %v2680 = vmax.f32 %v2552, %v2648
      %v2681 = vmax.f32 %v2553, %v2649
      %v2682 = vmax.f32 %v2554, %v2650
      %v2683 = vmax.f32 %v2555, %v2651
      %v2684 = vmax.f32 %v2556, %v2652
      %v2685 = vmax.f32 %v2557, %v2653
      %v2686 = vmax.f32 %v2558, %v2654
      %v2687 = vmax.f32 %v2559, %v2655
      %v2688 = vmax.f32 %v2560, %v2656
      %v2689 = vmax.f32 %v2561, %v2657
      %v2690 = vmax.f32 %v2562, %v2658
      %v2691 = vmax.f32 %v2563, %v2659
      %v2692 = vmax.f32 %v2564, %v2660
      %v2693 = vmax.f32 %v2565, %v2661
      %v2694 = vmax.f32 %v2566, %v2662
      %v2695 = vmax.f32 %v2567, %v2663
      %v2696 = vmax.f32 %v2568, %v2664
      %v2697 = vmax.f32 %v2569, %v2665
      %v2698 = vmax.f32 %v2570, %v2666
      %v2699 = vmax.f32 %v2571, %v2667
      %v2700 = vmax.f32 %v2572, %v2668
      %v2701 = vmax.f32 %v2573, %v2669
      %v2702 = vmax.f32 %v2574, %v2670
      %v2703 = vmax.f32 %v2575, %v2671
      %v2704 = vmax.f32 %v2576, %v2672
      %v2705 = vmax.f32 %v2577, %v2673
      %v2706 = vrot.slane %v2674, 1
      %v2707 = vrot.slane %v2675, 1
      %v2708 = vrot.slane %v2676, 1
      %v2709 = vrot.slane %v2677, 1
      %v2710 = vrot.slane %v2678, 1
      %v2711 = vrot.slane %v2679, 1
      %v2712 = vrot.slane %v2680, 1
      %v2713 = vrot.slane %v2681, 1
      %v2714 = vrot.slane %v2682, 1
      %v2715 = vrot.slane %v2683, 1
      %v2716 = vrot.slane %v2684, 1
      %v2717 = vrot.slane %v2685, 1
      %v2718 = vrot.slane %v2686, 1
      %v2719 = vrot.slane %v2687, 1
      %v2720 = vrot.slane %v2688, 1
      %v2721 = vrot.slane %v2689, 1
      %v2722 = vrot.slane %v2690, 1
      %v2723 = vrot.slane %v2691, 1
      %v2724 = vrot.slane %v2692, 1
      %v2725 = vrot.slane %v2693, 1
      %v2726 = vrot.slane %v2694, 1
      %v2727 = vrot.slane %v2695, 1
      %v2728 = vrot.slane %v2696, 1
      %v2729 = vrot.slane %v2697, 1
      %v2730 = vrot.slane %v2698, 1
      %v2731 = vrot.slane %v2699, 1
      %v2732 = vrot.slane %v2700, 1
      %v2733 = vrot.slane %v2701, 1
      %v2734 = vrot.slane %v2702, 1
      %v2735 = vrot.slane %v2703, 1
      %v2736 = vrot.slane %v2704, 1
      %v2737 = vrot.slane %v2705, 1
      %v2738 = vsel %vm1454, %v2736, %v2737
      %v2739 = vsel %vm1454, %v2735, %v2736
      %v2740 = vsel %vm1454, %v2734, %v2735
      %v2741 = vsel %vm1454, %v2733, %v2734
      %v2742 = vsel %vm1454, %v2732, %v2733
      %v2743 = vsel %vm1454, %v2731, %v2732
      %v2744 = vsel %vm1454, %v2730, %v2731
      %v2745 = vsel %vm1454, %v2729, %v2730
      %v2746 = vsel %vm1454, %v2728, %v2729
      %v2747 = vsel %vm1454, %v2727, %v2728
      %v2748 = vsel %vm1454, %v2726, %v2727
      %v2749 = vsel %vm1454, %v2725, %v2726
      %v2750 = vsel %vm1454, %v2724, %v2725
      %v2751 = vsel %vm1454, %v2723, %v2724
      %v2752 = vsel %vm1454, %v2722, %v2723
      %v2753 = vsel %vm1454, %v2721, %v2722
      %v2754 = vsel %vm1454, %v2720, %v2721
      %v2755 = vsel %vm1454, %v2719, %v2720
      %v2756 = vsel %vm1454, %v2718, %v2719
      %v2757 = vsel %vm1454, %v2717, %v2718
      %v2758 = vsel %vm1454, %v2716, %v2717
      %v2759 = vsel %vm1454, %v2715, %v2716
      %v2760 = vsel %vm1454, %v2714, %v2715
      %v2761 = vsel %vm1454, %v2713, %v2714
      %v2762 = vsel %vm1454, %v2712, %v2713
      %v2763 = vsel %vm1454, %v2711, %v2712
      %v2764 = vsel %vm1454, %v2710, %v2711
      %v2765 = vsel %vm1454, %v2709, %v2710
      %v2766 = vsel %vm1454, %v2708, %v2709
      %v2767 = vsel %vm1454, %v2707, %v2708
      %v2768 = vsel %vm1454, %v2706, %v2707
      %v2769 = vsel %vm1454, %v2737, %v2706
      %v2770 = vsel %vm1519, %v2768, -inf
      %v2771 = vsel %vm1520, %v2767, -inf
      %v2772 = vsel %vm1521, %v2766, -inf
      %v2773 = vsel %vm1522, %v2765, -inf
      %v2774 = vsel %vm1523, %v2764, -inf
      %v2775 = vsel %vm1524, %v2763, -inf
      %v2776 = vsel %vm1525, %v2762, -inf
      %v2777 = vsel %vm1526, %v2761, -inf
      %v2778 = vsel %vm1527, %v2760, -inf
      %v2779 = vsel %vm1528, %v2759, -inf
      %v2780 = vsel %vm1529, %v2758, -inf
      %v2781 = vsel %vm1530, %v2757, -inf
      %v2782 = vsel %vm1531, %v2756, -inf
      %v2783 = vsel %vm1532, %v2755, -inf
      %v2784 = vsel %vm1533, %v2754, -inf
      %v2785 = vsel %vm1534, %v2753, -inf
      %v2786 = vsel %vm1535, %v2752, -inf
      %v2787 = vsel %vm1536, %v2751, -inf
      %v2788 = vsel %vm1537, %v2750, -inf
      %v2789 = vsel %vm1538, %v2749, -inf
      %v2790 = vsel %vm1539, %v2748, -inf
      %v2791 = vsel %vm1540, %v2747, -inf
      %v2792 = vsel %vm1541, %v2746, -inf
      %v2793 = vsel %vm1542, %v2745, -inf
      %v2794 = vsel %vm1543, %v2744, -inf
      %v2795 = vsel %vm1544, %v2743, -inf
      %v2796 = vsel %vm1545, %v2742, -inf
      %v2797 = vsel %vm1546, %v2741, -inf
      %v2798 = vsel %vm1547, %v2740, -inf
      %v2799 = vsel %vm1548, %v2739, -inf
      %v2800 = vsel %vm1549, %v2738, -inf
      %v2801 = vsel %vm1550, %v2769, -inf
      %v2802 = vmax.f32 %v2674, %v2770
      %v2803 = vmax.f32 %v2675, %v2771
      %v2804 = vmax.f32 %v2676, %v2772
      %v2805 = vmax.f32 %v2677, %v2773
      %v2806 = vmax.f32 %v2678, %v2774
      %v2807 = vmax.f32 %v2679, %v2775
      %v2808 = vmax.f32 %v2680, %v2776
      %v2809 = vmax.f32 %v2681, %v2777
      %v2810 = vmax.f32 %v2682, %v2778
      %v2811 = vmax.f32 %v2683, %v2779
      %v2812 = vmax.f32 %v2684, %v2780
      %v2813 = vmax.f32 %v2685, %v2781
      %v2814 = vmax.f32 %v2686, %v2782
      %v2815 = vmax.f32 %v2687, %v2783
      %v2816 = vmax.f32 %v2688, %v2784
      %v2817 = vmax.f32 %v2689, %v2785
      %v2818 = vmax.f32 %v2690, %v2786
      %v2819 = vmax.f32 %v2691, %v2787
      %v2820 = vmax.f32 %v2692, %v2788
      %v2821 = vmax.f32 %v2693, %v2789
      %v2822 = vmax.f32 %v2694, %v2790
      %v2823 = vmax.f32 %v2695, %v2791
      %v2824 = vmax.f32 %v2696, %v2792
      %v2825 = vmax.f32 %v2697, %v2793
      %v2826 = vmax.f32 %v2698, %v2794
      %v2827 = vmax.f32 %v2699, %v2795
      %v2828 = vmax.f32 %v2700, %v2796
      %v2829 = vmax.f32 %v2701, %v2797
      %v2830 = vmax.f32 %v2702, %v2798
      %v2831 = vmax.f32 %v2703, %v2799
      %v2832 = vmax.f32 %v2704, %v2800
      %v2833 = vmax.f32 %v2705, %v2801
      %v2834 = vrot.slane %v2674, 7
      %v2835 = vrot.slane %v2675, 7
      %v2836 = vrot.slane %v2676, 7
      %v2837 = vrot.slane %v2677, 7
      %v2838 = vrot.slane %v2678, 7
      %v2839 = vrot.slane %v2679, 7
      %v2840 = vrot.slane %v2680, 7
      %v2841 = vrot.slane %v2681, 7
      %v2842 = vrot.slane %v2682, 7
      %v2843 = vrot.slane %v2683, 7
      %v2844 = vrot.slane %v2684, 7
      %v2845 = vrot.slane %v2685, 7
      %v2846 = vrot.slane %v2686, 7
      %v2847 = vrot.slane %v2687, 7
      %v2848 = vrot.slane %v2688, 7
      %v2849 = vrot.slane %v2689, 7
      %v2850 = vrot.slane %v2690, 7
      %v2851 = vrot.slane %v2691, 7
      %v2852 = vrot.slane %v2692, 7
      %v2853 = vrot.slane %v2693, 7
      %v2854 = vrot.slane %v2694, 7
      %v2855 = vrot.slane %v2695, 7
      %v2856 = vrot.slane %v2696, 7
      %v2857 = vrot.slane %v2697, 7
      %v2858 = vrot.slane %v2698, 7
      %v2859 = vrot.slane %v2699, 7
      %v2860 = vrot.slane %v2700, 7
      %v2861 = vrot.slane %v2701, 7
      %v2862 = vrot.slane %v2702, 7
      %v2863 = vrot.slane %v2703, 7
      %v2864 = vrot.slane %v2704, 7
      %v2865 = vrot.slane %v2705, 7
      %v2866 = vsel %vm1647, %v2864, %v2865
      %v2867 = vsel %vm1647, %v2863, %v2864
      %v2868 = vsel %vm1647, %v2862, %v2863
      %v2869 = vsel %vm1647, %v2861, %v2862
      %v2870 = vsel %vm1647, %v2860, %v2861
      %v2871 = vsel %vm1647, %v2859, %v2860
      %v2872 = vsel %vm1647, %v2858, %v2859
      %v2873 = vsel %vm1647, %v2857, %v2858
      %v2874 = vsel %vm1647, %v2856, %v2857
      %v2875 = vsel %vm1647, %v2855, %v2856
      %v2876 = vsel %vm1647, %v2854, %v2855
      %v2877 = vsel %vm1647, %v2853, %v2854
      %v2878 = vsel %vm1647, %v2852, %v2853
      %v2879 = vsel %vm1647, %v2851, %v2852
      %v2880 = vsel %vm1647, %v2850, %v2851
      %v2881 = vsel %vm1647, %v2849, %v2850
      %v2882 = vsel %vm1647, %v2848, %v2849
      %v2883 = vsel %vm1647, %v2847, %v2848
      %v2884 = vsel %vm1647, %v2846, %v2847
      %v2885 = vsel %vm1647, %v2845, %v2846
      %v2886 = vsel %vm1647, %v2844, %v2845
      %v2887 = vsel %vm1647, %v2843, %v2844
      %v2888 = vsel %vm1647, %v2842, %v2843
      %v2889 = vsel %vm1647, %v2841, %v2842
      %v2890 = vsel %vm1647, %v2840, %v2841
      %v2891 = vsel %vm1647, %v2839, %v2840
      %v2892 = vsel %vm1647, %v2838, %v2839
      %v2893 = vsel %vm1647, %v2837, %v2838
      %v2894 = vsel %vm1647, %v2836, %v2837
      %v2895 = vsel %vm1647, %v2835, %v2836
      %v2896 = vsel %vm1647, %v2834, %v2835
      %v2897 = vsel %vm1647, %v2865, %v2834
      %v2898 = vsel %vm1712, %v2897, -inf
      %v2899 = vsel %vm1713, %v2896, -inf
      %v2900 = vsel %vm1714, %v2895, -inf
      %v2901 = vsel %vm1715, %v2894, -inf
      %v2902 = vsel %vm1716, %v2893, -inf
      %v2903 = vsel %vm1717, %v2892, -inf
      %v2904 = vsel %vm1718, %v2891, -inf
      %v2905 = vsel %vm1719, %v2890, -inf
      %v2906 = vsel %vm1720, %v2889, -inf
      %v2907 = vsel %vm1721, %v2888, -inf
      %v2908 = vsel %vm1722, %v2887, -inf
      %v2909 = vsel %vm1723, %v2886, -inf
      %v2910 = vsel %vm1724, %v2885, -inf
      %v2911 = vsel %vm1725, %v2884, -inf
      %v2912 = vsel %vm1726, %v2883, -inf
      %v2913 = vsel %vm1727, %v2882, -inf
      %v2914 = vsel %vm1728, %v2881, -inf
      %v2915 = vsel %vm1729, %v2880, -inf
      %v2916 = vsel %vm1730, %v2879, -inf
      %v2917 = vsel %vm1731, %v2878, -inf
      %v2918 = vsel %vm1732, %v2877, -inf
      %v2919 = vsel %vm1733, %v2876, -inf
      %v2920 = vsel %vm1734, %v2875, -inf
      %v2921 = vsel %vm1735, %v2874, -inf
      %v2922 = vsel %vm1736, %v2873, -inf
      %v2923 = vsel %vm1737, %v2872, -inf
      %v2924 = vsel %vm1738, %v2871, -inf
      %v2925 = vsel %vm1739, %v2870, -inf
      %v2926 = vsel %vm1740, %v2869, -inf
      %v2927 = vsel %vm1741, %v2868, -inf
      %v2928 = vsel %vm1742, %v2867, -inf
      %v2929 = vsel %vm1743, %v2866, -inf
      %v2930 = vmax.f32 %v2802, %v2898
      %v2931 = vmax.f32 %v2803, %v2899
      %v2932 = vmax.f32 %v2804, %v2900
      %v2933 = vmax.f32 %v2805, %v2901
      %v2934 = vmax.f32 %v2806, %v2902
      %v2935 = vmax.f32 %v2807, %v2903
      %v2936 = vmax.f32 %v2808, %v2904
      %v2937 = vmax.f32 %v2809, %v2905
      %v2938 = vmax.f32 %v2810, %v2906
      %v2939 = vmax.f32 %v2811, %v2907
      %v2940 = vmax.f32 %v2812, %v2908
      %v2941 = vmax.f32 %v2813, %v2909
      %v2942 = vmax.f32 %v2814, %v2910
      %v2943 = vmax.f32 %v2815, %v2911
      %v2944 = vmax.f32 %v2816, %v2912
      %v2945 = vmax.f32 %v2817, %v2913
      %v2946 = vmax.f32 %v2818, %v2914
      %v2947 = vmax.f32 %v2819, %v2915
      %v2948 = vmax.f32 %v2820, %v2916
      %v2949 = vmax.f32 %v2821, %v2917
      %v2950 = vmax.f32 %v2822, %v2918
      %v2951 = vmax.f32 %v2823, %v2919
      %v2952 = vmax.f32 %v2824, %v2920
      %v2953 = vmax.f32 %v2825, %v2921
      %v2954 = vmax.f32 %v2826, %v2922
      %v2955 = vmax.f32 %v2827, %v2923
      %v2956 = vmax.f32 %v2828, %v2924
      %v2957 = vmax.f32 %v2829, %v2925
      %v2958 = vmax.f32 %v2830, %v2926
      %v2959 = vmax.f32 %v2831, %v2927
      %v2960 = vmax.f32 %v2832, %v2928
      %v2961 = vmax.f32 %v2833, %v2929
      %v2962 = vrot.slane %v2674, 2
      %v2963 = vrot.slane %v2675, 2
      %v2964 = vrot.slane %v2676, 2
      %v2965 = vrot.slane %v2677, 2
      %v2966 = vrot.slane %v2678, 2
      %v2967 = vrot.slane %v2679, 2
      %v2968 = vrot.slane %v2680, 2
      %v2969 = vrot.slane %v2681, 2
      %v2970 = vrot.slane %v2682, 2
      %v2971 = vrot.slane %v2683, 2
      %v2972 = vrot.slane %v2684, 2
      %v2973 = vrot.slane %v2685, 2
      %v2974 = vrot.slane %v2686, 2
      %v2975 = vrot.slane %v2687, 2
      %v2976 = vrot.slane %v2688, 2
      %v2977 = vrot.slane %v2689, 2
      %v2978 = vrot.slane %v2690, 2
      %v2979 = vrot.slane %v2691, 2
      %v2980 = vrot.slane %v2692, 2
      %v2981 = vrot.slane %v2693, 2
      %v2982 = vrot.slane %v2694, 2
      %v2983 = vrot.slane %v2695, 2
      %v2984 = vrot.slane %v2696, 2
      %v2985 = vrot.slane %v2697, 2
      %v2986 = vrot.slane %v2698, 2
      %v2987 = vrot.slane %v2699, 2
      %v2988 = vrot.slane %v2700, 2
      %v2989 = vrot.slane %v2701, 2
      %v2990 = vrot.slane %v2702, 2
      %v2991 = vrot.slane %v2703, 2
      %v2992 = vrot.slane %v2704, 2
      %v2993 = vrot.slane %v2705, 2
      %v2994 = vsel %vm1840, %v2992, %v2993
      %v2995 = vsel %vm1840, %v2991, %v2992
      %v2996 = vsel %vm1840, %v2990, %v2991
      %v2997 = vsel %vm1840, %v2989, %v2990
      %v2998 = vsel %vm1840, %v2988, %v2989
      %v2999 = vsel %vm1840, %v2987, %v2988
      %v3000 = vsel %vm1840, %v2986, %v2987
      %v3001 = vsel %vm1840, %v2985, %v2986
      %v3002 = vsel %vm1840, %v2984, %v2985
      %v3003 = vsel %vm1840, %v2983, %v2984
      %v3004 = vsel %vm1840, %v2982, %v2983
      %v3005 = vsel %vm1840, %v2981, %v2982
      %v3006 = vsel %vm1840, %v2980, %v2981
      %v3007 = vsel %vm1840, %v2979, %v2980
      %v3008 = vsel %vm1840, %v2978, %v2979
      %v3009 = vsel %vm1840, %v2977, %v2978
      %v3010 = vsel %vm1840, %v2976, %v2977
      %v3011 = vsel %vm1840, %v2975, %v2976
      %v3012 = vsel %vm1840, %v2974, %v2975
      %v3013 = vsel %vm1840, %v2973, %v2974
      %v3014 = vsel %vm1840, %v2972, %v2973
      %v3015 = vsel %vm1840, %v2971, %v2972
      %v3016 = vsel %vm1840, %v2970, %v2971
      %v3017 = vsel %vm1840, %v2969, %v2970
      %v3018 = vsel %vm1840, %v2968, %v2969
      %v3019 = vsel %vm1840, %v2967, %v2968
      %v3020 = vsel %vm1840, %v2966, %v2967
      %v3021 = vsel %vm1840, %v2965, %v2966
      %v3022 = vsel %vm1840, %v2964, %v2965
      %v3023 = vsel %vm1840, %v2963, %v2964
      %v3024 = vsel %vm1840, %v2962, %v2963
      %v3025 = vsel %vm1840, %v2993, %v2962
      %v3026 = vsel %vm1905, %v3024, -inf
      %v3027 = vsel %vm1906, %v3023, -inf
      %v3028 = vsel %vm1907, %v3022, -inf
      %v3029 = vsel %vm1908, %v3021, -inf
      %v3030 = vsel %vm1909, %v3020, -inf
      %v3031 = vsel %vm1910, %v3019, -inf
      %v3032 = vsel %vm1911, %v3018, -inf
      %v3033 = vsel %vm1912, %v3017, -inf
      %v3034 = vsel %vm1913, %v3016, -inf
      %v3035 = vsel %vm1914, %v3015, -inf
      %v3036 = vsel %vm1915, %v3014, -inf
      %v3037 = vsel %vm1916, %v3013, -inf
      %v3038 = vsel %vm1917, %v3012, -inf
      %v3039 = vsel %vm1918, %v3011, -inf
      %v3040 = vsel %vm1919, %v3010, -inf
      %v3041 = vsel %vm1920, %v3009, -inf
      %v3042 = vsel %vm1921, %v3008, -inf
      %v3043 = vsel %vm1922, %v3007, -inf
      %v3044 = vsel %vm1923, %v3006, -inf
      %v3045 = vsel %vm1924, %v3005, -inf
      %v3046 = vsel %vm1925, %v3004, -inf
      %v3047 = vsel %vm1926, %v3003, -inf
      %v3048 = vsel %vm1927, %v3002, -inf
      %v3049 = vsel %vm1928, %v3001, -inf
      %v3050 = vsel %vm1929, %v3000, -inf
      %v3051 = vsel %vm1930, %v2999, -inf
      %v3052 = vsel %vm1931, %v2998, -inf
      %v3053 = vsel %vm1932, %v2997, -inf
      %v3054 = vsel %vm1933, %v2996, -inf
      %v3055 = vsel %vm1934, %v2995, -inf
      %v3056 = vsel %vm1935, %v2994, -inf
      %v3057 = vsel %vm1936, %v3025, -inf
      %v3058 = vmax.f32 %v2930, %v3026
      %v3059 = vmax.f32 %v2931, %v3027
      %v3060 = vmax.f32 %v2932, %v3028
      %v3061 = vmax.f32 %v2933, %v3029
      %v3062 = vmax.f32 %v2934, %v3030
      %v3063 = vmax.f32 %v2935, %v3031
      %v3064 = vmax.f32 %v2936, %v3032
      %v3065 = vmax.f32 %v2937, %v3033
      %v3066 = vmax.f32 %v2938, %v3034
      %v3067 = vmax.f32 %v2939, %v3035
      %v3068 = vmax.f32 %v2940, %v3036
      %v3069 = vmax.f32 %v2941, %v3037
      %v3070 = vmax.f32 %v2942, %v3038
      %v3071 = vmax.f32 %v2943, %v3039
      %v3072 = vmax.f32 %v2944, %v3040
      %v3073 = vmax.f32 %v2945, %v3041
      %v3074 = vmax.f32 %v2946, %v3042
      %v3075 = vmax.f32 %v2947, %v3043
      %v3076 = vmax.f32 %v2948, %v3044
      %v3077 = vmax.f32 %v2949, %v3045
      %v3078 = vmax.f32 %v2950, %v3046
      %v3079 = vmax.f32 %v2951, %v3047
      %v3080 = vmax.f32 %v2952, %v3048
      %v3081 = vmax.f32 %v2953, %v3049
      %v3082 = vmax.f32 %v2954, %v3050
      %v3083 = vmax.f32 %v2955, %v3051
      %v3084 = vmax.f32 %v2956, %v3052
      %v3085 = vmax.f32 %v2957, %v3053
      %v3086 = vmax.f32 %v2958, %v3054
      %v3087 = vmax.f32 %v2959, %v3055
      %v3088 = vmax.f32 %v2960, %v3056
      %v3089 = vmax.f32 %v2961, %v3057
      %v3090 = vrot.slane %v2674, 6
      %v3091 = vrot.slane %v2675, 6
      %v3092 = vrot.slane %v2676, 6
      %v3093 = vrot.slane %v2677, 6
      %v3094 = vrot.slane %v2678, 6
      %v3095 = vrot.slane %v2679, 6
      %v3096 = vrot.slane %v2680, 6
      %v3097 = vrot.slane %v2681, 6
      %v3098 = vrot.slane %v2682, 6
      %v3099 = vrot.slane %v2683, 6
      %v3100 = vrot.slane %v2684, 6
      %v3101 = vrot.slane %v2685, 6
      %v3102 = vrot.slane %v2686, 6
      %v3103 = vrot.slane %v2687, 6
      %v3104 = vrot.slane %v2688, 6
      %v3105 = vrot.slane %v2689, 6
      %v3106 = vrot.slane %v2690, 6
      %v3107 = vrot.slane %v2691, 6
      %v3108 = vrot.slane %v2692, 6
      %v3109 = vrot.slane %v2693, 6
      %v3110 = vrot.slane %v2694, 6
      %v3111 = vrot.slane %v2695, 6
      %v3112 = vrot.slane %v2696, 6
      %v3113 = vrot.slane %v2697, 6
      %v3114 = vrot.slane %v2698, 6
      %v3115 = vrot.slane %v2699, 6
      %v3116 = vrot.slane %v2700, 6
      %v3117 = vrot.slane %v2701, 6
      %v3118 = vrot.slane %v2702, 6
      %v3119 = vrot.slane %v2703, 6
      %v3120 = vrot.slane %v2704, 6
      %v3121 = vrot.slane %v2705, 6
      %v3122 = vsel %vm2033, %v3120, %v3121
      %v3123 = vsel %vm2033, %v3119, %v3120
      %v3124 = vsel %vm2033, %v3118, %v3119
      %v3125 = vsel %vm2033, %v3117, %v3118
      %v3126 = vsel %vm2033, %v3116, %v3117
      %v3127 = vsel %vm2033, %v3115, %v3116
      %v3128 = vsel %vm2033, %v3114, %v3115
      %v3129 = vsel %vm2033, %v3113, %v3114
      %v3130 = vsel %vm2033, %v3112, %v3113
      %v3131 = vsel %vm2033, %v3111, %v3112
      %v3132 = vsel %vm2033, %v3110, %v3111
      %v3133 = vsel %vm2033, %v3109, %v3110
      %v3134 = vsel %vm2033, %v3108, %v3109
      %v3135 = vsel %vm2033, %v3107, %v3108
      %v3136 = vsel %vm2033, %v3106, %v3107
      %v3137 = vsel %vm2033, %v3105, %v3106
      %v3138 = vsel %vm2033, %v3104, %v3105
      %v3139 = vsel %vm2033, %v3103, %v3104
      %v3140 = vsel %vm2033, %v3102, %v3103
      %v3141 = vsel %vm2033, %v3101, %v3102
      %v3142 = vsel %vm2033, %v3100, %v3101
      %v3143 = vsel %vm2033, %v3099, %v3100
      %v3144 = vsel %vm2033, %v3098, %v3099
      %v3145 = vsel %vm2033, %v3097, %v3098
      %v3146 = vsel %vm2033, %v3096, %v3097
      %v3147 = vsel %vm2033, %v3095, %v3096
      %v3148 = vsel %vm2033, %v3094, %v3095
      %v3149 = vsel %vm2033, %v3093, %v3094
      %v3150 = vsel %vm2033, %v3092, %v3093
      %v3151 = vsel %vm2033, %v3091, %v3092
      %v3152 = vsel %vm2033, %v3090, %v3091
      %v3153 = vsel %vm2033, %v3121, %v3090
      %v3154 = vsel %vm2098, %v3153, -inf
      %v3155 = vsel %vm2099, %v3152, -inf
      %v3156 = vsel %vm2100, %v3151, -inf
      %v3157 = vsel %vm2101, %v3150, -inf
      %v3158 = vsel %vm2102, %v3149, -inf
      %v3159 = vsel %vm2103, %v3148, -inf
      %v3160 = vsel %vm2104, %v3147, -inf
      %v3161 = vsel %vm2105, %v3146, -inf
      %v3162 = vsel %vm2106, %v3145, -inf
      %v3163 = vsel %vm2107, %v3144, -inf
      %v3164 = vsel %vm2108, %v3143, -inf
      %v3165 = vsel %vm2109, %v3142, -inf
      %v3166 = vsel %vm2110, %v3141, -inf
      %v3167 = vsel %vm2111, %v3140, -inf
      %v3168 = vsel %vm2112, %v3139, -inf
      %v3169 = vsel %vm2113, %v3138, -inf
      %v3170 = vsel %vm2114, %v3137, -inf
      %v3171 = vsel %vm2115, %v3136, -inf
      %v3172 = vsel %vm2116, %v3135, -inf
      %v3173 = vsel %vm2117, %v3134, -inf
      %v3174 = vsel %vm2118, %v3133, -inf
      %v3175 = vsel %vm2119, %v3132, -inf
      %v3176 = vsel %vm2120, %v3131, -inf
      %v3177 = vsel %vm2121, %v3130, -inf
      %v3178 = vsel %vm2122, %v3129, -inf
      %v3179 = vsel %vm2123, %v3128, -inf
      %v3180 = vsel %vm2124, %v3127, -inf
      %v3181 = vsel %vm2125, %v3126, -inf
      %v3182 = vsel %vm2126, %v3125, -inf
      %v3183 = vsel %vm2127, %v3124, -inf
      %v3184 = vsel %vm2128, %v3123, -inf
      %v3185 = vsel %vm2129, %v3122, -inf
      %v3186 = vmax.f32 %v3058, %v3154
      %v3187 = vmax.f32 %v3059, %v3155
      %v3188 = vmax.f32 %v3060, %v3156
      %v3189 = vmax.f32 %v3061, %v3157
      %v3190 = vmax.f32 %v3062, %v3158
      %v3191 = vmax.f32 %v3063, %v3159
      %v3192 = vmax.f32 %v3064, %v3160
      %v3193 = vmax.f32 %v3065, %v3161
      %v3194 = vmax.f32 %v3066, %v3162
      %v3195 = vmax.f32 %v3067, %v3163
      %v3196 = vmax.f32 %v3068, %v3164
      %v3197 = vmax.f32 %v3069, %v3165
      %v3198 = vmax.f32 %v3070, %v3166
      %v3199 = vmax.f32 %v3071, %v3167
      %v3200 = vmax.f32 %v3072, %v3168
      %v3201 = vmax.f32 %v3073, %v3169
      %v3202 = vmax.f32 %v3074, %v3170
      %v3203 = vmax.f32 %v3075, %v3171
      %v3204 = vmax.f32 %v3076, %v3172
      %v3205 = vmax.f32 %v3077, %v3173
      %v3206 = vmax.f32 %v3078, %v3174
      %v3207 = vmax.f32 %v3079, %v3175
      %v3208 = vmax.f32 %v3080, %v3176
      %v3209 = vmax.f32 %v3081, %v3177
      %v3210 = vmax.f32 %v3082, %v3178
      %v3211 = vmax.f32 %v3083, %v3179
      %v3212 = vmax.f32 %v3084, %v3180
      %v3213 = vmax.f32 %v3085, %v3181
      %v3214 = vmax.f32 %v3086, %v3182
      %v3215 = vmax.f32 %v3087, %v3183
      %v3216 = vmax.f32 %v3088, %v3184
      %v3217 = vmax.f32 %v3089, %v3185
      %v3218 = vsel %vm2226, %v3188, -inf
      %v3219 = vsel %vm2227, %v3189, -inf
      %v3220 = vsel %vm2228, %v3190, -inf
      %v3221 = vsel %vm2229, %v3191, -inf
      %v3222 = vsel %vm2230, %v3192, -inf
      %v3223 = vsel %vm2231, %v3193, -inf
      %v3224 = vsel %vm2232, %v3194, -inf
      %v3225 = vsel %vm2233, %v3195, -inf
      %v3226 = vsel %vm2234, %v3196, -inf
      %v3227 = vsel %vm2235, %v3197, -inf
      %v3228 = vsel %vm2236, %v3198, -inf
      %v3229 = vsel %vm2237, %v3199, -inf
      %v3230 = vsel %vm2238, %v3200, -inf
      %v3231 = vsel %vm2239, %v3201, -inf
      %v3232 = vsel %vm2240, %v3202, -inf
      %v3233 = vsel %vm2241, %v3203, -inf
      %v3234 = vsel %vm2242, %v3204, -inf
      %v3235 = vsel %vm2243, %v3205, -inf
      %v3236 = vsel %vm2244, %v3206, -inf
      %v3237 = vsel %vm2245, %v3207, -inf
      %v3238 = vsel %vm2246, %v3208, -inf
      %v3239 = vsel %vm2247, %v3209, -inf
      %v3240 = vsel %vm2248, %v3210, -inf
      %v3241 = vsel %vm2249, %v3211, -inf
      %v3242 = vsel %vm2250, %v3212, -inf
      %v3243 = vsel %vm2251, %v3213, -inf
      %v3244 = vsel %vm2252, %v3214, -inf
      %v3245 = vsel %vm2253, %v3215, -inf
      %v3246 = vsel %vm2254, %v3216, -inf
      %v3247 = vsel %vm2255, %v3217, -inf
      %v3248 = vsel %vm2256, %v3186, -inf
      %v3249 = vsel %vm2257, %v3187, -inf
      %v3250 = vmax.f32 %v3186, %v3218
      %v3251 = vmax.f32 %v3187, %v3219
      %v3252 = vmax.f32 %v3188, %v3220
      %v3253 = vmax.f32 %v3189, %v3221
      %v3254 = vmax.f32 %v3190, %v3222
      %v3255 = vmax.f32 %v3191, %v3223
      %v3256 = vmax.f32 %v3192, %v3224
      %v3257 = vmax.f32 %v3193, %v3225
      %v3258 = vmax.f32 %v3194, %v3226
      %v3259 = vmax.f32 %v3195, %v3227
      %v3260 = vmax.f32 %v3196, %v3228
      %v3261 = vmax.f32 %v3197, %v3229
      %v3262 = vmax.f32 %v3198, %v3230
      %v3263 = vmax.f32 %v3199, %v3231
      %v3264 = vmax.f32 %v3200, %v3232
      %v3265 = vmax.f32 %v3201, %v3233
      %v3266 = vmax.f32 %v3202, %v3234
      %v3267 = vmax.f32 %v3203, %v3235
      %v3268 = vmax.f32 %v3204, %v3236
      %v3269 = vmax.f32 %v3205, %v3237
      %v3270 = vmax.f32 %v3206, %v3238
      %v3271 = vmax.f32 %v3207, %v3239
      %v3272 = vmax.f32 %v3208, %v3240
      %v3273 = vmax.f32 %v3209, %v3241
      %v3274 = vmax.f32 %v3210, %v3242
      %v3275 = vmax.f32 %v3211, %v3243
      %v3276 = vmax.f32 %v3212, %v3244
      %v3277 = vmax.f32 %v3213, %v3245
      %v3278 = vmax.f32 %v3214, %v3246
      %v3279 = vmax.f32 %v3215, %v3247
      %v3280 = vmax.f32 %v3216, %v3248
      %v3281 = vmax.f32 %v3217, %v3249
      %v3282 = vsel %vm2354, %v3216, -inf
      %v3283 = vsel %vm2355, %v3217, -inf
      %v3284 = vsel %vm2356, %v3186, -inf
      %v3285 = vsel %vm2357, %v3187, -inf
      %v3286 = vsel %vm2358, %v3188, -inf
      %v3287 = vsel %vm2359, %v3189, -inf
      %v3288 = vsel %vm2360, %v3190, -inf
      %v3289 = vsel %vm2361, %v3191, -inf
      %v3290 = vsel %vm2362, %v3192, -inf
      %v3291 = vsel %vm2363, %v3193, -inf
      %v3292 = vsel %vm2364, %v3194, -inf
      %v3293 = vsel %vm2365, %v3195, -inf
      %v3294 = vsel %vm2366, %v3196, -inf
      %v3295 = vsel %vm2367, %v3197, -inf
      %v3296 = vsel %vm2368, %v3198, -inf
      %v3297 = vsel %vm2369, %v3199, -inf
      %v3298 = vsel %vm2370, %v3200, -inf
      %v3299 = vsel %vm2371, %v3201, -inf
      %v3300 = vsel %vm2372, %v3202, -inf
      %v3301 = vsel %vm2373, %v3203, -inf
      %v3302 = vsel %vm2374, %v3204, -inf
      %v3303 = vsel %vm2375, %v3205, -inf
      %v3304 = vsel %vm2376, %v3206, -inf
      %v3305 = vsel %vm2377, %v3207, -inf
      %v3306 = vsel %vm2378, %v3208, -inf
      %v3307 = vsel %vm2379, %v3209, -inf
      %v3308 = vsel %vm2380, %v3210, -inf
      %v3309 = vsel %vm2381, %v3211, -inf
      %v3310 = vsel %vm2382, %v3212, -inf
      %v3311 = vsel %vm2383, %v3213, -inf
      %v3312 = vsel %vm2384, %v3214, -inf
      %v3313 = vsel %vm2385, %v3215, -inf
      %v3314 = vmax.f32 %v3250, %v3282
      %v3315 = vmax.f32 %v3251, %v3283
      %v3316 = vmax.f32 %v3252, %v3284
      %v3317 = vmax.f32 %v3253, %v3285
      %v3318 = vmax.f32 %v3254, %v3286
      %v3319 = vmax.f32 %v3255, %v3287
      %v3320 = vmax.f32 %v3256, %v3288
      %v3321 = vmax.f32 %v3257, %v3289
      %v3322 = vmax.f32 %v3258, %v3290
      %v3323 = vmax.f32 %v3259, %v3291
      %v3324 = vmax.f32 %v3260, %v3292
      %v3325 = vmax.f32 %v3261, %v3293
      %v3326 = vmax.f32 %v3262, %v3294
      %v3327 = vmax.f32 %v3263, %v3295
      %v3328 = vmax.f32 %v3264, %v3296
      %v3329 = vmax.f32 %v3265, %v3297
      %v3330 = vmax.f32 %v3266, %v3298
      %v3331 = vmax.f32 %v3267, %v3299
      %v3332 = vmax.f32 %v3268, %v3300
      %v3333 = vmax.f32 %v3269, %v3301
      %v3334 = vmax.f32 %v3270, %v3302
      %v3335 = vmax.f32 %v3271, %v3303
      %v3336 = vmax.f32 %v3272, %v3304
      %v3337 = vmax.f32 %v3273, %v3305
      %v3338 = vmax.f32 %v3274, %v3306
      %v3339 = vmax.f32 %v3275, %v3307
      %v3340 = vmax.f32 %v3276, %v3308
      %v3341 = vmax.f32 %v3277, %v3309
      %v3342 = vmax.f32 %v3278, %v3310
      %v3343 = vmax.f32 %v3279, %v3311
      %v3344 = vmax.f32 %v3280, %v3312
      %v3345 = vmax.f32 %v3281, %v3313
      %v3346 = vsel %vm2482, %v3190, -inf
      %v3347 = vsel %vm2483, %v3191, -inf
      %v3348 = vsel %vm2484, %v3192, -inf
      %v3349 = vsel %vm2485, %v3193, -inf
      %v3350 = vsel %vm2486, %v3194, -inf
      %v3351 = vsel %vm2487, %v3195, -inf
      %v3352 = vsel %vm2488, %v3196, -inf
      %v3353 = vsel %vm2489, %v3197, -inf
      %v3354 = vsel %vm2490, %v3198, -inf
      %v3355 = vsel %vm2491, %v3199, -inf
      %v3356 = vsel %vm2492, %v3200, -inf
      %v3357 = vsel %vm2493, %v3201, -inf
      %v3358 = vsel %vm2494, %v3202, -inf
      %v3359 = vsel %vm2495, %v3203, -inf
      %v3360 = vsel %vm2496, %v3204, -inf
      %v3361 = vsel %vm2497, %v3205, -inf
      %v3362 = vsel %vm2498, %v3206, -inf
      %v3363 = vsel %vm2499, %v3207, -inf
      %v3364 = vsel %vm2500, %v3208, -inf
      %v3365 = vsel %vm2501, %v3209, -inf
      %v3366 = vsel %vm2502, %v3210, -inf
      %v3367 = vsel %vm2503, %v3211, -inf
      %v3368 = vsel %vm2504, %v3212, -inf
      %v3369 = vsel %vm2505, %v3213, -inf
      %v3370 = vsel %vm2506, %v3214, -inf
      %v3371 = vsel %vm2507, %v3215, -inf
      %v3372 = vsel %vm2508, %v3216, -inf
      %v3373 = vsel %vm2509, %v3217, -inf
      %v3374 = vsel %vm2510, %v3186, -inf
      %v3375 = vsel %vm2511, %v3187, -inf
      %v3376 = vsel %vm2512, %v3188, -inf
      %v3377 = vsel %vm2513, %v3189, -inf
      %v3378 = vmax.f32 %v3314, %v3346
      %v3379 = vmax.f32 %v3315, %v3347
      %v3380 = vmax.f32 %v3316, %v3348
      %v3381 = vmax.f32 %v3317, %v3349
      %v3382 = vmax.f32 %v3318, %v3350
      %v3383 = vmax.f32 %v3319, %v3351
      %v3384 = vmax.f32 %v3320, %v3352
      %v3385 = vmax.f32 %v3321, %v3353
      %v3386 = vmax.f32 %v3322, %v3354
      %v3387 = vmax.f32 %v3323, %v3355
      %v3388 = vmax.f32 %v3324, %v3356
      %v3389 = vmax.f32 %v3325, %v3357
      %v3390 = vmax.f32 %v3326, %v3358
      %v3391 = vmax.f32 %v3327, %v3359
      %v3392 = vmax.f32 %v3328, %v3360
      %v3393 = vmax.f32 %v3329, %v3361
      %v3394 = vmax.f32 %v3330, %v3362
      %v3395 = vmax.f32 %v3331, %v3363
      %v3396 = vmax.f32 %v3332, %v3364
      %v3397 = vmax.f32 %v3333, %v3365
      %v3398 = vmax.f32 %v3334, %v3366
      %v3399 = vmax.f32 %v3335, %v3367
      %v3400 = vmax.f32 %v3336, %v3368
      %v3401 = vmax.f32 %v3337, %v3369
      %v3402 = vmax.f32 %v3338, %v3370
      %v3403 = vmax.f32 %v3339, %v3371
      %v3404 = vmax.f32 %v3340, %v3372
      %v3405 = vmax.f32 %v3341, %v3373
      %v3406 = vmax.f32 %v3342, %v3374
      %v3407 = vmax.f32 %v3343, %v3375
      %v3408 = vmax.f32 %v3344, %v3376
      %v3409 = vmax.f32 %v3345, %v3377
      %v3410 = vsel %vm2610, %v3214, -inf
      %v3411 = vsel %vm2611, %v3215, -inf
      %v3412 = vsel %vm2612, %v3216, -inf
      %v3413 = vsel %vm2613, %v3217, -inf
      %v3414 = vsel %vm2614, %v3186, -inf
      %v3415 = vsel %vm2615, %v3187, -inf
      %v3416 = vsel %vm2616, %v3188, -inf
      %v3417 = vsel %vm2617, %v3189, -inf
      %v3418 = vsel %vm2618, %v3190, -inf
      %v3419 = vsel %vm2619, %v3191, -inf
      %v3420 = vsel %vm2620, %v3192, -inf
      %v3421 = vsel %vm2621, %v3193, -inf
      %v3422 = vsel %vm2622, %v3194, -inf
      %v3423 = vsel %vm2623, %v3195, -inf
      %v3424 = vsel %vm2624, %v3196, -inf
      %v3425 = vsel %vm2625, %v3197, -inf
      %v3426 = vsel %vm2626, %v3198, -inf
      %v3427 = vsel %vm2627, %v3199, -inf
      %v3428 = vsel %vm2628, %v3200, -inf
      %v3429 = vsel %vm2629, %v3201, -inf
      %v3430 = vsel %vm2630, %v3202, -inf
      %v3431 = vsel %vm2631, %v3203, -inf
      %v3432 = vsel %vm2632, %v3204, -inf
      %v3433 = vsel %vm2633, %v3205, -inf
      %v3434 = vsel %vm2634, %v3206, -inf
      %v3435 = vsel %vm2635, %v3207, -inf
      %v3436 = vsel %vm2636, %v3208, -inf
      %v3437 = vsel %vm2637, %v3209, -inf
      %v3438 = vsel %vm2638, %v3210, -inf
      %v3439 = vsel %vm2639, %v3211, -inf
      %v3440 = vsel %vm2640, %v3212, -inf
      %v3441 = vsel %vm2641, %v3213, -inf
      %v3442 = vmax.f32 %v3378, %v3410
      %v3443 = vmax.f32 %v3379, %v3411
      %v3444 = vmax.f32 %v3380, %v3412
      %v3445 = vmax.f32 %v3381, %v3413
      %v3446 = vmax.f32 %v3382, %v3414
      %v3447 = vmax.f32 %v3383, %v3415
      %v3448 = vmax.f32 %v3384, %v3416
      %v3449 = vmax.f32 %v3385, %v3417
      %v3450 = vmax.f32 %v3386, %v3418
      %v3451 = vmax.f32 %v3387, %v3419
      %v3452 = vmax.f32 %v3388, %v3420
      %v3453 = vmax.f32 %v3389, %v3421
      %v3454 = vmax.f32 %v3390, %v3422
      %v3455 = vmax.f32 %v3391, %v3423
      %v3456 = vmax.f32 %v3392, %v3424
      %v3457 = vmax.f32 %v3393, %v3425
      %v3458 = vmax.f32 %v3394, %v3426
      %v3459 = vmax.f32 %v3395, %v3427
      %v3460 = vmax.f32 %v3396, %v3428
      %v3461 = vmax.f32 %v3397, %v3429
      %v3462 = vmax.f32 %v3398, %v3430
      %v3463 = vmax.f32 %v3399, %v3431
      %v3464 = vmax.f32 %v3400, %v3432
      %v3465 = vmax.f32 %v3401, %v3433
      %v3466 = vmax.f32 %v3402, %v3434
      %v3467 = vmax.f32 %v3403, %v3435
      %v3468 = vmax.f32 %v3404, %v3436
      %v3469 = vmax.f32 %v3405, %v3437
      %v3470 = vmax.f32 %v3406, %v3438
      %v3471 = vmax.f32 %v3407, %v3439
      %v3472 = vmax.f32 %v3408, %v3440
      %v3473 = vmax.f32 %v3409, %v3441
      %v3474 = vrot.slane %v3442, 1
      %v3475 = vrot.slane %v3443, 1
      %v3476 = vrot.slane %v3444, 1
      %v3477 = vrot.slane %v3445, 1
      %v3478 = vrot.slane %v3446, 1
      %v3479 = vrot.slane %v3447, 1
      %v3480 = vrot.slane %v3448, 1
      %v3481 = vrot.slane %v3449, 1
      %v3482 = vrot.slane %v3450, 1
      %v3483 = vrot.slane %v3451, 1
      %v3484 = vrot.slane %v3452, 1
      %v3485 = vrot.slane %v3453, 1
      %v3486 = vrot.slane %v3454, 1
      %v3487 = vrot.slane %v3455, 1
      %v3488 = vrot.slane %v3456, 1
      %v3489 = vrot.slane %v3457, 1
      %v3490 = vrot.slane %v3458, 1
      %v3491 = vrot.slane %v3459, 1
      %v3492 = vrot.slane %v3460, 1
      %v3493 = vrot.slane %v3461, 1
      %v3494 = vrot.slane %v3462, 1
      %v3495 = vrot.slane %v3463, 1
      %v3496 = vrot.slane %v3464, 1
      %v3497 = vrot.slane %v3465, 1
      %v3498 = vrot.slane %v3466, 1
      %v3499 = vrot.slane %v3467, 1
      %v3500 = vrot.slane %v3468, 1
      %v3501 = vrot.slane %v3469, 1
      %v3502 = vrot.slane %v3470, 1
      %v3503 = vrot.slane %v3471, 1
      %v3504 = vrot.slane %v3472, 1
      %v3505 = vrot.slane %v3473, 1
      %v3506 = vsel %vm1454, %v3504, %v3505
      %v3507 = vsel %vm1454, %v3503, %v3504
      %v3508 = vsel %vm1454, %v3502, %v3503
      %v3509 = vsel %vm1454, %v3501, %v3502
      %v3510 = vsel %vm1454, %v3500, %v3501
      %v3511 = vsel %vm1454, %v3499, %v3500
      %v3512 = vsel %vm1454, %v3498, %v3499
      %v3513 = vsel %vm1454, %v3497, %v3498
      %v3514 = vsel %vm1454, %v3496, %v3497
      %v3515 = vsel %vm1454, %v3495, %v3496
      %v3516 = vsel %vm1454, %v3494, %v3495
      %v3517 = vsel %vm1454, %v3493, %v3494
      %v3518 = vsel %vm1454, %v3492, %v3493
      %v3519 = vsel %vm1454, %v3491, %v3492
      %v3520 = vsel %vm1454, %v3490, %v3491
      %v3521 = vsel %vm1454, %v3489, %v3490
      %v3522 = vsel %vm1454, %v3488, %v3489
      %v3523 = vsel %vm1454, %v3487, %v3488
      %v3524 = vsel %vm1454, %v3486, %v3487
      %v3525 = vsel %vm1454, %v3485, %v3486
      %v3526 = vsel %vm1454, %v3484, %v3485
      %v3527 = vsel %vm1454, %v3483, %v3484
      %v3528 = vsel %vm1454, %v3482, %v3483
      %v3529 = vsel %vm1454, %v3481, %v3482
      %v3530 = vsel %vm1454, %v3480, %v3481
      %v3531 = vsel %vm1454, %v3479, %v3480
      %v3532 = vsel %vm1454, %v3478, %v3479
      %v3533 = vsel %vm1454, %v3477, %v3478
      %v3534 = vsel %vm1454, %v3476, %v3477
      %v3535 = vsel %vm1454, %v3475, %v3476
      %v3536 = vsel %vm1454, %v3474, %v3475
      %v3537 = vsel %vm1454, %v3505, %v3474
      %v3538 = vsel %vm1519, %v3536, -inf
      %v3539 = vsel %vm1520, %v3535, -inf
      %v3540 = vsel %vm1521, %v3534, -inf
      %v3541 = vsel %vm1522, %v3533, -inf
      %v3542 = vsel %vm1523, %v3532, -inf
      %v3543 = vsel %vm1524, %v3531, -inf
      %v3544 = vsel %vm1525, %v3530, -inf
      %v3545 = vsel %vm1526, %v3529, -inf
      %v3546 = vsel %vm1527, %v3528, -inf
      %v3547 = vsel %vm1528, %v3527, -inf
      %v3548 = vsel %vm1529, %v3526, -inf
      %v3549 = vsel %vm1530, %v3525, -inf
      %v3550 = vsel %vm1531, %v3524, -inf
      %v3551 = vsel %vm1532, %v3523, -inf
      %v3552 = vsel %vm1533, %v3522, -inf
      %v3553 = vsel %vm1534, %v3521, -inf
      %v3554 = vsel %vm1535, %v3520, -inf
      %v3555 = vsel %vm1536, %v3519, -inf
      %v3556 = vsel %vm1537, %v3518, -inf
      %v3557 = vsel %vm1538, %v3517, -inf
      %v3558 = vsel %vm1539, %v3516, -inf
      %v3559 = vsel %vm1540, %v3515, -inf
      %v3560 = vsel %vm1541, %v3514, -inf
      %v3561 = vsel %vm1542, %v3513, -inf
      %v3562 = vsel %vm1543, %v3512, -inf
      %v3563 = vsel %vm1544, %v3511, -inf
      %v3564 = vsel %vm1545, %v3510, -inf
      %v3565 = vsel %vm1546, %v3509, -inf
      %v3566 = vsel %vm1547, %v3508, -inf
      %v3567 = vsel %vm1548, %v3507, -inf
      %v3568 = vsel %vm1549, %v3506, -inf
      %v3569 = vsel %vm1550, %v3537, -inf
      %v3570 = vmax.f32 %v3442, %v3538
      %v3571 = vmax.f32 %v3443, %v3539
      %v3572 = vmax.f32 %v3444, %v3540
      %v3573 = vmax.f32 %v3445, %v3541
      %v3574 = vmax.f32 %v3446, %v3542
      %v3575 = vmax.f32 %v3447, %v3543
      %v3576 = vmax.f32 %v3448, %v3544
      %v3577 = vmax.f32 %v3449, %v3545
      %v3578 = vmax.f32 %v3450, %v3546
      %v3579 = vmax.f32 %v3451, %v3547
      %v3580 = vmax.f32 %v3452, %v3548
      %v3581 = vmax.f32 %v3453, %v3549
      %v3582 = vmax.f32 %v3454, %v3550
      %v3583 = vmax.f32 %v3455, %v3551
      %v3584 = vmax.f32 %v3456, %v3552
      %v3585 = vmax.f32 %v3457, %v3553
      %v3586 = vmax.f32 %v3458, %v3554
      %v3587 = vmax.f32 %v3459, %v3555
      %v3588 = vmax.f32 %v3460, %v3556
      %v3589 = vmax.f32 %v3461, %v3557
      %v3590 = vmax.f32 %v3462, %v3558
      %v3591 = vmax.f32 %v3463, %v3559
      %v3592 = vmax.f32 %v3464, %v3560
      %v3593 = vmax.f32 %v3465, %v3561
      %v3594 = vmax.f32 %v3466, %v3562
      %v3595 = vmax.f32 %v3467, %v3563
      %v3596 = vmax.f32 %v3468, %v3564
      %v3597 = vmax.f32 %v3469, %v3565
      %v3598 = vmax.f32 %v3470, %v3566
      %v3599 = vmax.f32 %v3471, %v3567
      %v3600 = vmax.f32 %v3472, %v3568
      %v3601 = vmax.f32 %v3473, %v3569
      %v3602 = vrot.slane %v3442, 7
      %v3603 = vrot.slane %v3443, 7
      %v3604 = vrot.slane %v3444, 7
      %v3605 = vrot.slane %v3445, 7
      %v3606 = vrot.slane %v3446, 7
      %v3607 = vrot.slane %v3447, 7
      %v3608 = vrot.slane %v3448, 7
      %v3609 = vrot.slane %v3449, 7
      %v3610 = vrot.slane %v3450, 7
      %v3611 = vrot.slane %v3451, 7
      %v3612 = vrot.slane %v3452, 7
      %v3613 = vrot.slane %v3453, 7
      %v3614 = vrot.slane %v3454, 7
      %v3615 = vrot.slane %v3455, 7
      %v3616 = vrot.slane %v3456, 7
      %v3617 = vrot.slane %v3457, 7
      %v3618 = vrot.slane %v3458, 7
      %v3619 = vrot.slane %v3459, 7
      %v3620 = vrot.slane %v3460, 7
      %v3621 = vrot.slane %v3461, 7
      %v3622 = vrot.slane %v3462, 7
      %v3623 = vrot.slane %v3463, 7
      %v3624 = vrot.slane %v3464, 7
      %v3625 = vrot.slane %v3465, 7
      %v3626 = vrot.slane %v3466, 7
      %v3627 = vrot.slane %v3467, 7
      %v3628 = vrot.slane %v3468, 7
      %v3629 = vrot.slane %v3469, 7
      %v3630 = vrot.slane %v3470, 7
      %v3631 = vrot.slane %v3471, 7
      %v3632 = vrot.slane %v3472, 7
      %v3633 = vrot.slane %v3473, 7
      %v3634 = vsel %vm1647, %v3632, %v3633
      %v3635 = vsel %vm1647, %v3631, %v3632
      %v3636 = vsel %vm1647, %v3630, %v3631
      %v3637 = vsel %vm1647, %v3629, %v3630
      %v3638 = vsel %vm1647, %v3628, %v3629
      %v3639 = vsel %vm1647, %v3627, %v3628
      %v3640 = vsel %vm1647, %v3626, %v3627
      %v3641 = vsel %vm1647, %v3625, %v3626
      %v3642 = vsel %vm1647, %v3624, %v3625
      %v3643 = vsel %vm1647, %v3623, %v3624
      %v3644 = vsel %vm1647, %v3622, %v3623
      %v3645 = vsel %vm1647, %v3621, %v3622
      %v3646 = vsel %vm1647, %v3620, %v3621
      %v3647 = vsel %vm1647, %v3619, %v3620
      %v3648 = vsel %vm1647, %v3618, %v3619
      %v3649 = vsel %vm1647, %v3617, %v3618
      %v3650 = vsel %vm1647, %v3616, %v3617
      %v3651 = vsel %vm1647, %v3615, %v3616
      %v3652 = vsel %vm1647, %v3614, %v3615
      %v3653 = vsel %vm1647, %v3613, %v3614
      %v3654 = vsel %vm1647, %v3612, %v3613
      %v3655 = vsel %vm1647, %v3611, %v3612
      %v3656 = vsel %vm1647, %v3610, %v3611
      %v3657 = vsel %vm1647, %v3609, %v3610
      %v3658 = vsel %vm1647, %v3608, %v3609
      %v3659 = vsel %vm1647, %v3607, %v3608
      %v3660 = vsel %vm1647, %v3606, %v3607
      %v3661 = vsel %vm1647, %v3605, %v3606
      %v3662 = vsel %vm1647, %v3604, %v3605
      %v3663 = vsel %vm1647, %v3603, %v3604
      %v3664 = vsel %vm1647, %v3602, %v3603
      %v3665 = vsel %vm1647, %v3633, %v3602
      %v3666 = vsel %vm1712, %v3665, -inf
      %v3667 = vsel %vm1713, %v3664, -inf
      %v3668 = vsel %vm1714, %v3663, -inf
      %v3669 = vsel %vm1715, %v3662, -inf
      %v3670 = vsel %vm1716, %v3661, -inf
      %v3671 = vsel %vm1717, %v3660, -inf
      %v3672 = vsel %vm1718, %v3659, -inf
      %v3673 = vsel %vm1719, %v3658, -inf
      %v3674 = vsel %vm1720, %v3657, -inf
      %v3675 = vsel %vm1721, %v3656, -inf
      %v3676 = vsel %vm1722, %v3655, -inf
      %v3677 = vsel %vm1723, %v3654, -inf
      %v3678 = vsel %vm1724, %v3653, -inf
      %v3679 = vsel %vm1725, %v3652, -inf
      %v3680 = vsel %vm1726, %v3651, -inf
      %v3681 = vsel %vm1727, %v3650, -inf
      %v3682 = vsel %vm1728, %v3649, -inf
      %v3683 = vsel %vm1729, %v3648, -inf
      %v3684 = vsel %vm1730, %v3647, -inf
      %v3685 = vsel %vm1731, %v3646, -inf
      %v3686 = vsel %vm1732, %v3645, -inf
      %v3687 = vsel %vm1733, %v3644, -inf
      %v3688 = vsel %vm1734, %v3643, -inf
      %v3689 = vsel %vm1735, %v3642, -inf
      %v3690 = vsel %vm1736, %v3641, -inf
      %v3691 = vsel %vm1737, %v3640, -inf
      %v3692 = vsel %vm1738, %v3639, -inf
      %v3693 = vsel %vm1739, %v3638, -inf
      %v3694 = vsel %vm1740, %v3637, -inf
      %v3695 = vsel %vm1741, %v3636, -inf
      %v3696 = vsel %vm1742, %v3635, -inf
      %v3697 = vsel %vm1743, %v3634, -inf
      %v3698 = vmax.f32 %v3570, %v3666
      %v3699 = vmax.f32 %v3571, %v3667
      %v3700 = vmax.f32 %v3572, %v3668
      %v3701 = vmax.f32 %v3573, %v3669
      %v3702 = vmax.f32 %v3574, %v3670
      %v3703 = vmax.f32 %v3575, %v3671
      %v3704 = vmax.f32 %v3576, %v3672
      %v3705 = vmax.f32 %v3577, %v3673
      %v3706 = vmax.f32 %v3578, %v3674
      %v3707 = vmax.f32 %v3579, %v3675
      %v3708 = vmax.f32 %v3580, %v3676
      %v3709 = vmax.f32 %v3581, %v3677
      %v3710 = vmax.f32 %v3582, %v3678
      %v3711 = vmax.f32 %v3583, %v3679
      %v3712 = vmax.f32 %v3584, %v3680
      %v3713 = vmax.f32 %v3585, %v3681
      %v3714 = vmax.f32 %v3586, %v3682
      %v3715 = vmax.f32 %v3587, %v3683
      %v3716 = vmax.f32 %v3588, %v3684
      %v3717 = vmax.f32 %v3589, %v3685
      %v3718 = vmax.f32 %v3590, %v3686
      %v3719 = vmax.f32 %v3591, %v3687
      %v3720 = vmax.f32 %v3592, %v3688
      %v3721 = vmax.f32 %v3593, %v3689
      %v3722 = vmax.f32 %v3594, %v3690
      %v3723 = vmax.f32 %v3595, %v3691
      %v3724 = vmax.f32 %v3596, %v3692
      %v3725 = vmax.f32 %v3597, %v3693
      %v3726 = vmax.f32 %v3598, %v3694
      %v3727 = vmax.f32 %v3599, %v3695
      %v3728 = vmax.f32 %v3600, %v3696
      %v3729 = vmax.f32 %v3601, %v3697
      %v3730 = vrot.slane %v3442, 2
      %v3731 = vrot.slane %v3443, 2
      %v3732 = vrot.slane %v3444, 2
      %v3733 = vrot.slane %v3445, 2
      %v3734 = vrot.slane %v3446, 2
      %v3735 = vrot.slane %v3447, 2
      %v3736 = vrot.slane %v3448, 2
      %v3737 = vrot.slane %v3449, 2
      %v3738 = vrot.slane %v3450, 2
      %v3739 = vrot.slane %v3451, 2
      %v3740 = vrot.slane %v3452, 2
      %v3741 = vrot.slane %v3453, 2
      %v3742 = vrot.slane %v3454, 2
      %v3743 = vrot.slane %v3455, 2
      %v3744 = vrot.slane %v3456, 2
      %v3745 = vrot.slane %v3457, 2
      %v3746 = vrot.slane %v3458, 2
      %v3747 = vrot.slane %v3459, 2
      %v3748 = vrot.slane %v3460, 2
      %v3749 = vrot.slane %v3461, 2
      %v3750 = vrot.slane %v3462, 2
      %v3751 = vrot.slane %v3463, 2
      %v3752 = vrot.slane %v3464, 2
      %v3753 = vrot.slane %v3465, 2
      %v3754 = vrot.slane %v3466, 2
      %v3755 = vrot.slane %v3467, 2
      %v3756 = vrot.slane %v3468, 2
      %v3757 = vrot.slane %v3469, 2
      %v3758 = vrot.slane %v3470, 2
      %v3759 = vrot.slane %v3471, 2
      %v3760 = vrot.slane %v3472, 2
      %v3761 = vrot.slane %v3473, 2
      %v3762 = vsel %vm1840, %v3760, %v3761
      %v3763 = vsel %vm1840, %v3759, %v3760
      %v3764 = vsel %vm1840, %v3758, %v3759
      %v3765 = vsel %vm1840, %v3757, %v3758
      %v3766 = vsel %vm1840, %v3756, %v3757
      %v3767 = vsel %vm1840, %v3755, %v3756
      %v3768 = vsel %vm1840, %v3754, %v3755
      %v3769 = vsel %vm1840, %v3753, %v3754
      %v3770 = vsel %vm1840, %v3752, %v3753
      %v3771 = vsel %vm1840, %v3751, %v3752
      %v3772 = vsel %vm1840, %v3750, %v3751
      %v3773 = vsel %vm1840, %v3749, %v3750
      %v3774 = vsel %vm1840, %v3748, %v3749
      %v3775 = vsel %vm1840, %v3747, %v3748
      %v3776 = vsel %vm1840, %v3746, %v3747
      %v3777 = vsel %vm1840, %v3745, %v3746
      %v3778 = vsel %vm1840, %v3744, %v3745
      %v3779 = vsel %vm1840, %v3743, %v3744
      %v3780 = vsel %vm1840, %v3742, %v3743
      %v3781 = vsel %vm1840, %v3741, %v3742
      %v3782 = vsel %vm1840, %v3740, %v3741
      %v3783 = vsel %vm1840, %v3739, %v3740
      %v3784 = vsel %vm1840, %v3738, %v3739
      %v3785 = vsel %vm1840, %v3737, %v3738
      %v3786 = vsel %vm1840, %v3736, %v3737
      %v3787 = vsel %vm1840, %v3735, %v3736
      %v3788 = vsel %vm1840, %v3734, %v3735
      %v3789 = vsel %vm1840, %v3733, %v3734
      %v3790 = vsel %vm1840, %v3732, %v3733
      %v3791 = vsel %vm1840, %v3731, %v3732
      %v3792 = vsel %vm1840, %v3730, %v3731
      %v3793 = vsel %vm1840, %v3761, %v3730
      %v3794 = vsel %vm1905, %v3792, -inf
      %v3795 = vsel %vm1906, %v3791, -inf
      %v3796 = vsel %vm1907, %v3790, -inf
      %v3797 = vsel %vm1908, %v3789, -inf
      %v3798 = vsel %vm1909, %v3788, -inf
      %v3799 = vsel %vm1910, %v3787, -inf
      %v3800 = vsel %vm1911, %v3786, -inf
      %v3801 = vsel %vm1912, %v3785, -inf
      %v3802 = vsel %vm1913, %v3784, -inf
      %v3803 = vsel %vm1914, %v3783, -inf
      %v3804 = vsel %vm1915, %v3782, -inf
      %v3805 = vsel %vm1916, %v3781, -inf
      %v3806 = vsel %vm1917, %v3780, -inf
      %v3807 = vsel %vm1918, %v3779, -inf
      %v3808 = vsel %vm1919, %v3778, -inf
      %v3809 = vsel %vm1920, %v3777, -inf
      %v3810 = vsel %vm1921, %v3776, -inf
      %v3811 = vsel %vm1922, %v3775, -inf
      %v3812 = vsel %vm1923, %v3774, -inf
      %v3813 = vsel %vm1924, %v3773, -inf
      %v3814 = vsel %vm1925, %v3772, -inf
      %v3815 = vsel %vm1926, %v3771, -inf
      %v3816 = vsel %vm1927, %v3770, -inf
      %v3817 = vsel %vm1928, %v3769, -inf
      %v3818 = vsel %vm1929, %v3768, -inf
      %v3819 = vsel %vm1930, %v3767, -inf
      %v3820 = vsel %vm1931, %v3766, -inf
      %v3821 = vsel %vm1932, %v3765, -inf
      %v3822 = vsel %vm1933, %v3764, -inf
      %v3823 = vsel %vm1934, %v3763, -inf
      %v3824 = vsel %vm1935, %v3762, -inf
      %v3825 = vsel %vm1936, %v3793, -inf
      %v3826 = vmax.f32 %v3698, %v3794
      %v3827 = vmax.f32 %v3699, %v3795
      %v3828 = vmax.f32 %v3700, %v3796
      %v3829 = vmax.f32 %v3701, %v3797
      %v3830 = vmax.f32 %v3702, %v3798
      %v3831 = vmax.f32 %v3703, %v3799
      %v3832 = vmax.f32 %v3704, %v3800
      %v3833 = vmax.f32 %v3705, %v3801
      %v3834 = vmax.f32 %v3706, %v3802
      %v3835 = vmax.f32 %v3707, %v3803
      %v3836 = vmax.f32 %v3708, %v3804
      %v3837 = vmax.f32 %v3709, %v3805
      %v3838 = vmax.f32 %v3710, %v3806
      %v3839 = vmax.f32 %v3711, %v3807
      %v3840 = vmax.f32 %v3712, %v3808
      %v3841 = vmax.f32 %v3713, %v3809
      %v3842 = vmax.f32 %v3714, %v3810
      %v3843 = vmax.f32 %v3715, %v3811
      %v3844 = vmax.f32 %v3716, %v3812
      %v3845 = vmax.f32 %v3717, %v3813
      %v3846 = vmax.f32 %v3718, %v3814
      %v3847 = vmax.f32 %v3719, %v3815
      %v3848 = vmax.f32 %v3720, %v3816
      %v3849 = vmax.f32 %v3721, %v3817
      %v3850 = vmax.f32 %v3722, %v3818
      %v3851 = vmax.f32 %v3723, %v3819
      %v3852 = vmax.f32 %v3724, %v3820
      %v3853 = vmax.f32 %v3725, %v3821
      %v3854 = vmax.f32 %v3726, %v3822
      %v3855 = vmax.f32 %v3727, %v3823
      %v3856 = vmax.f32 %v3728, %v3824
      %v3857 = vmax.f32 %v3729, %v3825
      %v3858 = vrot.slane %v3442, 6
      %v3859 = vrot.slane %v3443, 6
      %v3860 = vrot.slane %v3444, 6
      %v3861 = vrot.slane %v3445, 6
      %v3862 = vrot.slane %v3446, 6
      %v3863 = vrot.slane %v3447, 6
      %v3864 = vrot.slane %v3448, 6
      %v3865 = vrot.slane %v3449, 6
      %v3866 = vrot.slane %v3450, 6
      %v3867 = vrot.slane %v3451, 6
      %v3868 = vrot.slane %v3452, 6
      %v3869 = vrot.slane %v3453, 6
      %v3870 = vrot.slane %v3454, 6
      %v3871 = vrot.slane %v3455, 6
      %v3872 = vrot.slane %v3456, 6
      %v3873 = vrot.slane %v3457, 6
      %v3874 = vrot.slane %v3458, 6
      %v3875 = vrot.slane %v3459, 6
      %v3876 = vrot.slane %v3460, 6
      %v3877 = vrot.slane %v3461, 6
      %v3878 = vrot.slane %v3462, 6
      %v3879 = vrot.slane %v3463, 6
      %v3880 = vrot.slane %v3464, 6
      %v3881 = vrot.slane %v3465, 6
      %v3882 = vrot.slane %v3466, 6
      %v3883 = vrot.slane %v3467, 6
      %v3884 = vrot.slane %v3468, 6
      %v3885 = vrot.slane %v3469, 6
      %v3886 = vrot.slane %v3470, 6
      %v3887 = vrot.slane %v3471, 6
      %v3888 = vrot.slane %v3472, 6
      %v3889 = vrot.slane %v3473, 6
      %v3890 = vsel %vm2033, %v3888, %v3889
      %v3891 = vsel %vm2033, %v3887, %v3888
      %v3892 = vsel %vm2033, %v3886, %v3887
      %v3893 = vsel %vm2033, %v3885, %v3886
      %v3894 = vsel %vm2033, %v3884, %v3885
      %v3895 = vsel %vm2033, %v3883, %v3884
      %v3896 = vsel %vm2033, %v3882, %v3883
      %v3897 = vsel %vm2033, %v3881, %v3882
      %v3898 = vsel %vm2033, %v3880, %v3881
      %v3899 = vsel %vm2033, %v3879, %v3880
      %v3900 = vsel %vm2033, %v3878, %v3879
      %v3901 = vsel %vm2033, %v3877, %v3878
      %v3902 = vsel %vm2033, %v3876, %v3877
      %v3903 = vsel %vm2033, %v3875, %v3876
      %v3904 = vsel %vm2033, %v3874, %v3875
      %v3905 = vsel %vm2033, %v3873, %v3874
      %v3906 = vsel %vm2033, %v3872, %v3873
      %v3907 = vsel %vm2033, %v3871, %v3872
      %v3908 = vsel %vm2033, %v3870, %v3871
      %v3909 = vsel %vm2033, %v3869, %v3870
      %v3910 = vsel %vm2033, %v3868, %v3869
      %v3911 = vsel %vm2033, %v3867, %v3868
      %v3912 = vsel %vm2033, %v3866, %v3867
      %v3913 = vsel %vm2033, %v3865, %v3866
      %v3914 = vsel %vm2033, %v3864, %v3865
      %v3915 = vsel %vm2033, %v3863, %v3864
      %v3916 = vsel %vm2033, %v3862, %v3863
      %v3917 = vsel %vm2033, %v3861, %v3862
      %v3918 = vsel %vm2033, %v3860, %v3861
      %v3919 = vsel %vm2033, %v3859, %v3860
      %v3920 = vsel %vm2033, %v3858, %v3859
      %v3921 = vsel %vm2033, %v3889, %v3858
      %v3922 = vsel %vm2098, %v3921, -inf
      %v3923 = vsel %vm2099, %v3920, -inf
      %v3924 = vsel %vm2100, %v3919, -inf
      %v3925 = vsel %vm2101, %v3918, -inf
      %v3926 = vsel %vm2102, %v3917, -inf
      %v3927 = vsel %vm2103, %v3916, -inf
      %v3928 = vsel %vm2104, %v3915, -inf
      %v3929 = vsel %vm2105, %v3914, -inf
      %v3930 = vsel %vm2106, %v3913, -inf
      %v3931 = vsel %vm2107, %v3912, -inf
      %v3932 = vsel %vm2108, %v3911, -inf
      %v3933 = vsel %vm2109, %v3910, -inf
      %v3934 = vsel %vm2110, %v3909, -inf
      %v3935 = vsel %vm2111, %v3908, -inf
      %v3936 = vsel %vm2112, %v3907, -inf
      %v3937 = vsel %vm2113, %v3906, -inf
      %v3938 = vsel %vm2114, %v3905, -inf
      %v3939 = vsel %vm2115, %v3904, -inf
      %v3940 = vsel %vm2116, %v3903, -inf
      %v3941 = vsel %vm2117, %v3902, -inf
      %v3942 = vsel %vm2118, %v3901, -inf
      %v3943 = vsel %vm2119, %v3900, -inf
      %v3944 = vsel %vm2120, %v3899, -inf
      %v3945 = vsel %vm2121, %v3898, -inf
      %v3946 = vsel %vm2122, %v3897, -inf
      %v3947 = vsel %vm2123, %v3896, -inf
      %v3948 = vsel %vm2124, %v3895, -inf
      %v3949 = vsel %vm2125, %v3894, -inf
      %v3950 = vsel %vm2126, %v3893, -inf
      %v3951 = vsel %vm2127, %v3892, -inf
      %v3952 = vsel %vm2128, %v3891, -inf
      %v3953 = vsel %vm2129, %v3890, -inf
      %v3954 = vmax.f32 %v3826, %v3922
      %v3955 = vmax.f32 %v3827, %v3923
      %v3956 = vmax.f32 %v3828, %v3924
      %v3957 = vmax.f32 %v3829, %v3925
      %v3958 = vmax.f32 %v3830, %v3926
      %v3959 = vmax.f32 %v3831, %v3927
      %v3960 = vmax.f32 %v3832, %v3928
      %v3961 = vmax.f32 %v3833, %v3929
      %v3962 = vmax.f32 %v3834, %v3930
      %v3963 = vmax.f32 %v3835, %v3931
      %v3964 = vmax.f32 %v3836, %v3932
      %v3965 = vmax.f32 %v3837, %v3933
      %v3966 = vmax.f32 %v3838, %v3934
      %v3967 = vmax.f32 %v3839, %v3935
      %v3968 = vmax.f32 %v3840, %v3936
      %v3969 = vmax.f32 %v3841, %v3937
      %v3970 = vmax.f32 %v3842, %v3938
      %v3971 = vmax.f32 %v3843, %v3939
      %v3972 = vmax.f32 %v3844, %v3940
      %v3973 = vmax.f32 %v3845, %v3941
      %v3974 = vmax.f32 %v3846, %v3942
      %v3975 = vmax.f32 %v3847, %v3943
      %v3976 = vmax.f32 %v3848, %v3944
      %v3977 = vmax.f32 %v3849, %v3945
      %v3978 = vmax.f32 %v3850, %v3946
      %v3979 = vmax.f32 %v3851, %v3947
      %v3980 = vmax.f32 %v3852, %v3948
      %v3981 = vmax.f32 %v3853, %v3949
      %v3982 = vmax.f32 %v3854, %v3950
      %v3983 = vmax.f32 %v3855, %v3951
      %v3984 = vmax.f32 %v3856, %v3952
      %v3985 = vmax.f32 %v3857, %v3953
      %v3986 = vsel %vm2226, %v3956, -inf
      %v3987 = vsel %vm2227, %v3957, -inf
      %v3988 = vsel %vm2228, %v3958, -inf
      %v3989 = vsel %vm2229, %v3959, -inf
      %v3990 = vsel %vm2230, %v3960, -inf
      %v3991 = vsel %vm2231, %v3961, -inf
      %v3992 = vsel %vm2232, %v3962, -inf
      %v3993 = vsel %vm2233, %v3963, -inf
      %v3994 = vsel %vm2234, %v3964, -inf
      %v3995 = vsel %vm2235, %v3965, -inf
      %v3996 = vsel %vm2236, %v3966, -inf
      %v3997 = vsel %vm2237, %v3967, -inf
      %v3998 = vsel %vm2238, %v3968, -inf
      %v3999 = vsel %vm2239, %v3969, -inf
      %v4000 = vsel %vm2240, %v3970, -inf
      %v4001 = vsel %vm2241, %v3971, -inf
      %v4002 = vsel %vm2242, %v3972, -inf
      %v4003 = vsel %vm2243, %v3973, -inf
      %v4004 = vsel %vm2244, %v3974, -inf
      %v4005 = vsel %vm2245, %v3975, -inf
      %v4006 = vsel %vm2246, %v3976, -inf
      %v4007 = vsel %vm2247, %v3977, -inf
      %v4008 = vsel %vm2248, %v3978, -inf
      %v4009 = vsel %vm2249, %v3979, -inf
      %v4010 = vsel %vm2250, %v3980, -inf
      %v4011 = vsel %vm2251, %v3981, -inf
      %v4012 = vsel %vm2252, %v3982, -inf
      %v4013 = vsel %vm2253, %v3983, -inf
      %v4014 = vsel %vm2254, %v3984, -inf
      %v4015 = vsel %vm2255, %v3985, -inf
      %v4016 = vsel %vm2256, %v3954, -inf
      %v4017 = vsel %vm2257, %v3955, -inf
      %v4018 = vmax.f32 %v3954, %v3986
      %v4019 = vmax.f32 %v3955, %v3987
      %v4020 = vmax.f32 %v3956, %v3988
      %v4021 = vmax.f32 %v3957, %v3989
      %v4022 = vmax.f32 %v3958, %v3990
      %v4023 = vmax.f32 %v3959, %v3991
      %v4024 = vmax.f32 %v3960, %v3992
      %v4025 = vmax.f32 %v3961, %v3993
      %v4026 = vmax.f32 %v3962, %v3994
      %v4027 = vmax.f32 %v3963, %v3995
      %v4028 = vmax.f32 %v3964, %v3996
      %v4029 = vmax.f32 %v3965, %v3997
      %v4030 = vmax.f32 %v3966, %v3998
      %v4031 = vmax.f32 %v3967, %v3999
      %v4032 = vmax.f32 %v3968, %v4000
      %v4033 = vmax.f32 %v3969, %v4001
      %v4034 = vmax.f32 %v3970, %v4002
      %v4035 = vmax.f32 %v3971, %v4003
      %v4036 = vmax.f32 %v3972, %v4004
      %v4037 = vmax.f32 %v3973, %v4005
      %v4038 = vmax.f32 %v3974, %v4006
      %v4039 = vmax.f32 %v3975, %v4007
      %v4040 = vmax.f32 %v3976, %v4008
      %v4041 = vmax.f32 %v3977, %v4009
      %v4042 = vmax.f32 %v3978, %v4010
      %v4043 = vmax.f32 %v3979, %v4011
      %v4044 = vmax.f32 %v3980, %v4012
      %v4045 = vmax.f32 %v3981, %v4013
      %v4046 = vmax.f32 %v3982, %v4014
      %v4047 = vmax.f32 %v3983, %v4015
      %v4048 = vmax.f32 %v3984, %v4016
      %v4049 = vmax.f32 %v3985, %v4017
      %v4050 = vsel %vm2354, %v3984, -inf
      %v4051 = vsel %vm2355, %v3985, -inf
      %v4052 = vsel %vm2356, %v3954, -inf
      %v4053 = vsel %vm2357, %v3955, -inf
      %v4054 = vsel %vm2358, %v3956, -inf
      %v4055 = vsel %vm2359, %v3957, -inf
      %v4056 = vsel %vm2360, %v3958, -inf
      %v4057 = vsel %vm2361, %v3959, -inf
      %v4058 = vsel %vm2362, %v3960, -inf
      %v4059 = vsel %vm2363, %v3961, -inf
      %v4060 = vsel %vm2364, %v3962, -inf
      %v4061 = vsel %vm2365, %v3963, -inf
      %v4062 = vsel %vm2366, %v3964, -inf
      %v4063 = vsel %vm2367, %v3965, -inf
      %v4064 = vsel %vm2368, %v3966, -inf
      %v4065 = vsel %vm2369, %v3967, -inf
      %v4066 = vsel %vm2370, %v3968, -inf
      %v4067 = vsel %vm2371, %v3969, -inf
      %v4068 = vsel %vm2372, %v3970, -inf
      %v4069 = vsel %vm2373, %v3971, -inf
      %v4070 = vsel %vm2374, %v3972, -inf
      %v4071 = vsel %vm2375, %v3973, -inf
      %v4072 = vsel %vm2376, %v3974, -inf
      %v4073 = vsel %vm2377, %v3975, -inf
      %v4074 = vsel %vm2378, %v3976, -inf
      %v4075 = vsel %vm2379, %v3977, -inf
      %v4076 = vsel %vm2380, %v3978, -inf
      %v4077 = vsel %vm2381, %v3979, -inf
      %v4078 = vsel %vm2382, %v3980, -inf
      %v4079 = vsel %vm2383, %v3981, -inf
      %v4080 = vsel %vm2384, %v3982, -inf
      %v4081 = vsel %vm2385, %v3983, -inf
      %v4082 = vmax.f32 %v4018, %v4050
      %v4083 = vmax.f32 %v4019, %v4051
      %v4084 = vmax.f32 %v4020, %v4052
      %v4085 = vmax.f32 %v4021, %v4053
      %v4086 = vmax.f32 %v4022, %v4054
      %v4087 = vmax.f32 %v4023, %v4055
      %v4088 = vmax.f32 %v4024, %v4056
      %v4089 = vmax.f32 %v4025, %v4057
      %v4090 = vmax.f32 %v4026, %v4058
      %v4091 = vmax.f32 %v4027, %v4059
      %v4092 = vmax.f32 %v4028, %v4060
      %v4093 = vmax.f32 %v4029, %v4061
      %v4094 = vmax.f32 %v4030, %v4062
      %v4095 = vmax.f32 %v4031, %v4063
      %v4096 = vmax.f32 %v4032, %v4064
      %v4097 = vmax.f32 %v4033, %v4065
      %v4098 = vmax.f32 %v4034, %v4066
      %v4099 = vmax.f32 %v4035, %v4067
      %v4100 = vmax.f32 %v4036, %v4068
      %v4101 = vmax.f32 %v4037, %v4069
      %v4102 = vmax.f32 %v4038, %v4070
      %v4103 = vmax.f32 %v4039, %v4071
      %v4104 = vmax.f32 %v4040, %v4072
      %v4105 = vmax.f32 %v4041, %v4073
      %v4106 = vmax.f32 %v4042, %v4074
      %v4107 = vmax.f32 %v4043, %v4075
      %v4108 = vmax.f32 %v4044, %v4076
      %v4109 = vmax.f32 %v4045, %v4077
      %v4110 = vmax.f32 %v4046, %v4078
      %v4111 = vmax.f32 %v4047, %v4079
      %v4112 = vmax.f32 %v4048, %v4080
      %v4113 = vmax.f32 %v4049, %v4081
      %v4114 = vsel %vm2482, %v3958, -inf
      %v4115 = vsel %vm2483, %v3959, -inf
      %v4116 = vsel %vm2484, %v3960, -inf
      %v4117 = vsel %vm2485, %v3961, -inf
      %v4118 = vsel %vm2486, %v3962, -inf
      %v4119 = vsel %vm2487, %v3963, -inf
      %v4120 = vsel %vm2488, %v3964, -inf
      %v4121 = vsel %vm2489, %v3965, -inf
      %v4122 = vsel %vm2490, %v3966, -inf
      %v4123 = vsel %vm2491, %v3967, -inf
      %v4124 = vsel %vm2492, %v3968, -inf
      %v4125 = vsel %vm2493, %v3969, -inf
      %v4126 = vsel %vm2494, %v3970, -inf
      %v4127 = vsel %vm2495, %v3971, -inf
      %v4128 = vsel %vm2496, %v3972, -inf
      %v4129 = vsel %vm2497, %v3973, -inf
      %v4130 = vsel %vm2498, %v3974, -inf
      %v4131 = vsel %vm2499, %v3975, -inf
      %v4132 = vsel %vm2500, %v3976, -inf
      %v4133 = vsel %vm2501, %v3977, -inf
      %v4134 = vsel %vm2502, %v3978, -inf
      %v4135 = vsel %vm2503, %v3979, -inf
      %v4136 = vsel %vm2504, %v3980, -inf
      %v4137 = vsel %vm2505, %v3981, -inf
      %v4138 = vsel %vm2506, %v3982, -inf
      %v4139 = vsel %vm2507, %v3983, -inf
      %v4140 = vsel %vm2508, %v3984, -inf
      %v4141 = vsel %vm2509, %v3985, -inf
      %v4142 = vsel %vm2510, %v3954, -inf
      %v4143 = vsel %vm2511, %v3955, -inf
      %v4144 = vsel %vm2512, %v3956, -inf
      %v4145 = vsel %vm2513, %v3957, -inf
      %v4146 = vmax.f32 %v4082, %v4114
      %v4147 = vmax.f32 %v4083, %v4115
      %v4148 = vmax.f32 %v4084, %v4116
      %v4149 = vmax.f32 %v4085, %v4117
      %v4150 = vmax.f32 %v4086, %v4118
      %v4151 = vmax.f32 %v4087, %v4119
      %v4152 = vmax.f32 %v4088, %v4120
      %v4153 = vmax.f32 %v4089, %v4121
      %v4154 = vmax.f32 %v4090, %v4122
      %v4155 = vmax.f32 %v4091, %v4123
      %v4156 = vmax.f32 %v4092, %v4124
      %v4157 = vmax.f32 %v4093, %v4125
      %v4158 = vmax.f32 %v4094, %v4126
      %v4159 = vmax.f32 %v4095, %v4127
      %v4160 = vmax.f32 %v4096, %v4128
      %v4161 = vmax.f32 %v4097, %v4129
      %v4162 = vmax.f32 %v4098, %v4130
      %v4163 = vmax.f32 %v4099, %v4131
      %v4164 = vmax.f32 %v4100, %v4132
      %v4165 = vmax.f32 %v4101, %v4133
      %v4166 = vmax.f32 %v4102, %v4134
      %v4167 = vmax.f32 %v4103, %v4135
      %v4168 = vmax.f32 %v4104, %v4136
      %v4169 = vmax.f32 %v4105, %v4137
      %v4170 = vmax.f32 %v4106, %v4138
      %v4171 = vmax.f32 %v4107, %v4139
      %v4172 = vmax.f32 %v4108, %v4140
      %v4173 = vmax.f32 %v4109, %v4141
      %v4174 = vmax.f32 %v4110, %v4142
      %v4175 = vmax.f32 %v4111, %v4143
      %v4176 = vmax.f32 %v4112, %v4144
      %v4177 = vmax.f32 %v4113, %v4145
      %v4178 = vsel %vm2610, %v3982, -inf
      %v4179 = vsel %vm2611, %v3983, -inf
      %v4180 = vsel %vm2612, %v3984, -inf
      %v4181 = vsel %vm2613, %v3985, -inf
      %v4182 = vsel %vm2614, %v3954, -inf
      %v4183 = vsel %vm2615, %v3955, -inf
      %v4184 = vsel %vm2616, %v3956, -inf
      %v4185 = vsel %vm2617, %v3957, -inf
      %v4186 = vsel %vm2618, %v3958, -inf
      %v4187 = vsel %vm2619, %v3959, -inf
      %v4188 = vsel %vm2620, %v3960, -inf
      %v4189 = vsel %vm2621, %v3961, -inf
      %v4190 = vsel %vm2622, %v3962, -inf
      %v4191 = vsel %vm2623, %v3963, -inf
      %v4192 = vsel %vm2624, %v3964, -inf
      %v4193 = vsel %vm2625, %v3965, -inf
      %v4194 = vsel %vm2626, %v3966, -inf
      %v4195 = vsel %vm2627, %v3967, -inf
      %v4196 = vsel %vm2628, %v3968, -inf
      %v4197 = vsel %vm2629, %v3969, -inf
      %v4198 = vsel %vm2630, %v3970, -inf
      %v4199 = vsel %vm2631, %v3971, -inf
      %v4200 = vsel %vm2632, %v3972, -inf
      %v4201 = vsel %vm2633, %v3973, -inf
      %v4202 = vsel %vm2634, %v3974, -inf
      %v4203 = vsel %vm2635, %v3975, -inf
      %v4204 = vsel %vm2636, %v3976, -inf
      %v4205 = vsel %vm2637, %v3977, -inf
      %v4206 = vsel %vm2638, %v3978, -inf
      %v4207 = vsel %vm2639, %v3979, -inf
      %v4208 = vsel %vm2640, %v3980, -inf
      %v4209 = vsel %vm2641, %v3981, -inf
      %v4210 = vmax.f32 %v4146, %v4178
      %v4211 = vmax.f32 %v4147, %v4179
      %v4212 = vmax.f32 %v4148, %v4180
      %v4213 = vmax.f32 %v4149, %v4181
      %v4214 = vmax.f32 %v4150, %v4182
      %v4215 = vmax.f32 %v4151, %v4183
      %v4216 = vmax.f32 %v4152, %v4184
      %v4217 = vmax.f32 %v4153, %v4185
      %v4218 = vmax.f32 %v4154, %v4186
      %v4219 = vmax.f32 %v4155, %v4187
      %v4220 = vmax.f32 %v4156, %v4188
      %v4221 = vmax.f32 %v4157, %v4189
      %v4222 = vmax.f32 %v4158, %v4190
      %v4223 = vmax.f32 %v4159, %v4191
      %v4224 = vmax.f32 %v4160, %v4192
      %v4225 = vmax.f32 %v4161, %v4193
      %v4226 = vmax.f32 %v4162, %v4194
      %v4227 = vmax.f32 %v4163, %v4195
      %v4228 = vmax.f32 %v4164, %v4196
      %v4229 = vmax.f32 %v4165, %v4197
      %v4230 = vmax.f32 %v4166, %v4198
      %v4231 = vmax.f32 %v4167, %v4199
      %v4232 = vmax.f32 %v4168, %v4200
      %v4233 = vmax.f32 %v4169, %v4201
      %v4234 = vmax.f32 %v4170, %v4202
      %v4235 = vmax.f32 %v4171, %v4203
      %v4236 = vmax.f32 %v4172, %v4204
      %v4237 = vmax.f32 %v4173, %v4205
      %v4238 = vmax.f32 %v4174, %v4206
      %v4239 = vmax.f32 %v4175, %v4207
      %v4240 = vmax.f32 %v4176, %v4208
      %v4241 = vmax.f32 %v4177, %v4209
      %v4242 = vpack.c.bf16 %v878, %v877
      %v4243 = vpack.c.bf16 %v880, %v879
      %v4244 = vpack.c.bf16 %v882, %v881
      %v4245 = vpack.c.bf16 %v884, %v883
      %v4246 = vpack.c.bf16 %v886, %v885
      %v4247 = vpack.c.bf16 %v888, %v887
      %v4248 = vpack.c.bf16 %v890, %v889
      %v4249 = vpack.c.bf16 %v892, %v891
      %v4250 = vpack.c.bf16 %v894, %v893
      %v4251 = vpack.c.bf16 %v896, %v895
      %v4252 = vpack.c.bf16 %v898, %v897
      %v4253 = vpack.c.bf16 %v900, %v899
      %v4254 = vpack.c.bf16 %v902, %v901
      %v4255 = vpack.c.bf16 %v904, %v903
      %v4256 = vpack.c.bf16 %v906, %v905
      %v4257 = vpack.c.bf16 %v908, %v907
      %v4258 = vld [vmem:[%s4] sm:$0x1]
      %vm4259 = vcmask 15360
      %v4261 = vsel %vm4259, %v4242, 0
      %v4264 = vsel %vm4259, %v4243, 0
      %v4267 = vsel %vm4259, %v4244, 0
      %v4270 = vsel %vm4259, %v4245, 0
      %v4273 = vsel %vm4259, %v4246, 0
      %v4276 = vsel %vm4259, %v4247, 0
      %v4279 = vsel %vm4259, %v4248, 0
      %v4282 = vsel %vm4259, %v4249, 0
      %v4285 = vsel %vm4259, %v4250, 0
      %v4288 = vsel %vm4259, %v4251, 0
      %v4291 = vsel %vm4259, %v4252, 0
      %v4294 = vsel %vm4259, %v4253, 0
      %v4297 = vsel %vm4259, %v4254, 0
      %v4300 = vsel %vm4259, %v4255, 0
      %v4303 = vsel %vm4259, %v4256, 0
      %v4306 = vsel %vm4259, %v4257, 0
      %vm4308 = vcmask 1040384
      %v4310 = vsel %vm4308, %v4258, 0
      %4312 = vmatprep.subr.bf16.mxu0 0
      %4313 = vmatpush1.bf16.msra.mxu0 0
      %4314 = vmatprep.subr.bf16.mxu0 0
      %4315 = vmatpush1.bf16.msra.mxu0 0
      %4316 = vmatprep.subr.bf16.mxu0 0
      %4317 = vmatpush1.bf16.msra.mxu0 0
      %4318 = vmatprep.subr.bf16.mxu0 0
      %4319 = vmatpush1.bf16.msra.mxu0 0
      %4320 = vmatprep.subr.bf16.mxu0 0
      %4321 = vmatpush1.bf16.msra.mxu0 0
      %4322 = vmatprep.subr.bf16.mxu0 0
      %4323 = vmatpush1.bf16.msra.mxu0 0
      %4324 = vmatprep.subr.bf16.mxu0 0
      %4325 = vmatpush1.bf16.msra.mxu0 0
      %4326 = vmatprep.subr.bf16.mxu0 0
      %4327 = vmatpush1.bf16.msra.mxu0 %v4310
      %4328 = vmatprep.subr.bf16.mxu0 0
      %4329 = vmatpush2.bf16.msra.mxu0 0
      %4330 = vmatprep.subr.bf16.mxu0 0
      %4331 = vmatpush2.bf16.msra.mxu0 0
      %4332 = vmatprep.subr.bf16.mxu0 0
      %4333 = vmatpush2.bf16.msra.mxu0 0
      %4334 = vmatprep.subr.bf16.mxu0 0
      %4335 = vmatpush2.bf16.msra.mxu0 0
      %4336 = vmatprep.subr.bf16.mxu0 0
      %4337 = vmatpush2.bf16.msra.mxu0 0
      %4338 = vmatprep.subr.bf16.mxu0 0
      %4339 = vmatpush2.bf16.msra.mxu0 0
      %4340 = vmatprep.subr.bf16.mxu0 0
      %4341 = vmatpush2.bf16.msra.mxu0 0
      %4342 = vmatprep.subr.bf16.mxu0 0
      %4343 = vmatpush2.bf16.msra.mxu0 0
      %4344 = vmatprep.mubr.bf16.mxu0 0
      %4345 = vmatmul.mubr.bf16.gmra.mxu0 %v4261
      %v4346 = vpop.f32.mrf.mxu0
      %v4347 = vadd.f32 0.0, %v4346
      %v4348 = vpop.f32.mrf.mxu0
      %v4349 = vpop.f32.mrf.mxu0
      %v4350 = vadd.f32 0.0, %v4349
      %v4351 = vpop.f32.mrf.mxu0
      %4352 = vmatprep.mubr.bf16.mxu0 0
      %4353 = vmatmul.mubr.bf16.gmra.mxu0 %v4264
      %v4354 = vpop.f32.mrf.mxu0
      %v4355 = vadd.f32 0.0, %v4354
      %v4356 = vpop.f32.mrf.mxu0
      %v4357 = vpop.f32.mrf.mxu0
      %v4358 = vadd.f32 0.0, %v4357
      %v4359 = vpop.f32.mrf.mxu0
      %4360 = vmatprep.mubr.bf16.mxu0 0
      %4361 = vmatmul.mubr.bf16.gmra.mxu0 %v4267
      %v4362 = vpop.f32.mrf.mxu0
      %v4363 = vadd.f32 0.0, %v4362
      %v4364 = vpop.f32.mrf.mxu0
      %v4365 = vpop.f32.mrf.mxu0
      %v4366 = vadd.f32 0.0, %v4365
      %v4367 = vpop.f32.mrf.mxu0
      %4368 = vmatprep.mubr.bf16.mxu0 0
      %4369 = vmatmul.mubr.bf16.gmra.mxu0 %v4270
      %v4370 = vpop.f32.mrf.mxu0
      %v4371 = vadd.f32 0.0, %v4370
      %v4372 = vpop.f32.mrf.mxu0
      %v4373 = vpop.f32.mrf.mxu0
      %v4374 = vadd.f32 0.0, %v4373
      %v4375 = vpop.f32.mrf.mxu0
      %4376 = vmatprep.mubr.bf16.mxu0 0
      %4377 = vmatmul.mubr.bf16.gmra.mxu0 %v4273
      %v4378 = vpop.f32.mrf.mxu0
      %v4379 = vadd.f32 0.0, %v4378
      %v4380 = vpop.f32.mrf.mxu0
      %v4381 = vpop.f32.mrf.mxu0
      %v4382 = vadd.f32 0.0, %v4381
      %v4383 = vpop.f32.mrf.mxu0
      %4384 = vmatprep.mubr.bf16.mxu0 0
      %4385 = vmatmul.mubr.bf16.gmra.mxu0 %v4276
      %v4386 = vpop.f32.mrf.mxu0
      %v4387 = vadd.f32 0.0, %v4386
      %v4388 = vpop.f32.mrf.mxu0
      %v4389 = vpop.f32.mrf.mxu0
      %v4390 = vadd.f32 0.0, %v4389
      %v4391 = vpop.f32.mrf.mxu0
      %4392 = vmatprep.mubr.bf16.mxu0 0
      %4393 = vmatmul.mubr.bf16.gmra.mxu0 %v4279
      %v4394 = vpop.f32.mrf.mxu0
      %v4395 = vadd.f32 0.0, %v4394
      %v4396 = vpop.f32.mrf.mxu0
      %v4397 = vpop.f32.mrf.mxu0
      %v4398 = vadd.f32 0.0, %v4397
      %v4399 = vpop.f32.mrf.mxu0
      %4400 = vmatprep.mubr.bf16.mxu0 0
      %4401 = vmatmul.mubr.bf16.gmra.mxu0 %v4282
      %v4402 = vpop.f32.mrf.mxu0
      %v4403 = vadd.f32 0.0, %v4402
      %v4404 = vpop.f32.mrf.mxu0
      %v4405 = vpop.f32.mrf.mxu0
      %v4406 = vadd.f32 0.0, %v4405
      %v4407 = vpop.f32.mrf.mxu0
      %4408 = vmatprep.mubr.bf16.mxu0 0
      %4409 = vmatmul.mubr.bf16.gmra.mxu0 %v4285
      %v4410 = vpop.f32.mrf.mxu0
      %v4411 = vadd.f32 0.0, %v4410
      %v4412 = vpop.f32.mrf.mxu0
      %v4413 = vpop.f32.mrf.mxu0
      %v4414 = vadd.f32 0.0, %v4413
      %v4415 = vpop.f32.mrf.mxu0
      %4416 = vmatprep.mubr.bf16.mxu0 0
      %4417 = vmatmul.mubr.bf16.gmra.mxu0 %v4288
      %v4418 = vpop.f32.mrf.mxu0
      %v4419 = vadd.f32 0.0, %v4418
      %v4420 = vpop.f32.mrf.mxu0
      %v4421 = vpop.f32.mrf.mxu0
      %v4422 = vadd.f32 0.0, %v4421
      %v4423 = vpop.f32.mrf.mxu0
      %4424 = vmatprep.mubr.bf16.mxu0 0
      %4425 = vmatmul.mubr.bf16.gmra.mxu0 %v4291
      %v4426 = vpop.f32.mrf.mxu0
      %v4427 = vadd.f32 0.0, %v4426
      %v4428 = vpop.f32.mrf.mxu0
      %v4429 = vpop.f32.mrf.mxu0
      %v4430 = vadd.f32 0.0, %v4429
      %v4431 = vpop.f32.mrf.mxu0
      %4432 = vmatprep.mubr.bf16.mxu0 0
      %4433 = vmatmul.mubr.bf16.gmra.mxu0 %v4294
      %v4434 = vpop.f32.mrf.mxu0
      %v4435 = vadd.f32 0.0, %v4434
      %v4436 = vpop.f32.mrf.mxu0
      %v4437 = vpop.f32.mrf.mxu0
      %v4438 = vadd.f32 0.0, %v4437
      %v4439 = vpop.f32.mrf.mxu0
      %4440 = vmatprep.mubr.bf16.mxu0 0
      %4441 = vmatmul.mubr.bf16.gmra.mxu0 %v4297
      %v4442 = vpop.f32.mrf.mxu0
      %v4443 = vadd.f32 0.0, %v4442
      %v4444 = vpop.f32.mrf.mxu0
      %v4445 = vpop.f32.mrf.mxu0
      %v4446 = vadd.f32 0.0, %v4445
      %v4447 = vpop.f32.mrf.mxu0
      %4448 = vmatprep.mubr.bf16.mxu0 0
      %4449 = vmatmul.mubr.bf16.gmra.mxu0 %v4300
      %v4450 = vpop.f32.mrf.mxu0
      %v4451 = vadd.f32 0.0, %v4450
      %v4452 = vpop.f32.mrf.mxu0
      %v4453 = vpop.f32.mrf.mxu0
      %v4454 = vadd.f32 0.0, %v4453
      %v4455 = vpop.f32.mrf.mxu0
      %4456 = vmatprep.mubr.bf16.mxu0 0
      %4457 = vmatmul.mubr.bf16.gmra.mxu0 %v4303
      %v4458 = vpop.f32.mrf.mxu0
      %v4459 = vadd.f32 0.0, %v4458
      %v4460 = vpop.f32.mrf.mxu0
      %v4461 = vpop.f32.mrf.mxu0
      %v4462 = vadd.f32 0.0, %v4461
      %v4463 = vpop.f32.mrf.mxu0
      %4464 = vmatprep.mubr.bf16.mxu0 0
      %4465 = vmatmul.mubr.bf16.gmra.mxu0 %v4306
      %v4466 = vpop.f32.mrf.mxu0
      %v4467 = vadd.f32 0.0, %v4466
      %v4468 = vpop.f32.mrf.mxu0
      %v4469 = vpop.f32.mrf.mxu0
      %v4470 = vadd.f32 0.0, %v4469
      %v4471 = vpop.f32.mrf.mxu0
      %4472 = vdwg.mxu0
      %4473 = vst.msk [vmem:[#allocation2] sm:$0xff] %vm393, %v4347
      %4474 = vst.msk [vmem:[#allocation2 + $0x8] sm:$0xff] %vm393, %v4350
      %4475 = vst.msk [vmem:[#allocation2 + $0x10] sm:$0xff] %vm393, %v4355
      %4476 = vst.msk [vmem:[#allocation2 + $0x18] sm:$0xff] %vm393, %v4358
      %4477 = vst.msk [vmem:[#allocation2 + $0x20] sm:$0xff] %vm393, %v4363
      %4478 = vst.msk [vmem:[#allocation2 + $0x28] sm:$0xff] %vm393, %v4366
      %4479 = vst.msk [vmem:[#allocation2 + $0x30] sm:$0xff] %vm393, %v4371
      %4480 = vst.msk [vmem:[#allocation2 + $0x38] sm:$0xff] %vm393, %v4374
      %4481 = vst.msk [vmem:[#allocation2 + $0x40] sm:$0xff] %vm393, %v4379
      %4482 = vst.msk [vmem:[#allocation2 + $0x48] sm:$0xff] %vm393, %v4382
      %4483 = vst.msk [vmem:[#allocation2 + $0x50] sm:$0xff] %vm393, %v4387
      %4484 = vst.msk [vmem:[#allocation2 + $0x58] sm:$0xff] %vm393, %v4390
      %4485 = vst.msk [vmem:[#allocation2 + $0x60] sm:$0xff] %vm393, %v4395
      %4486 = vst.msk [vmem:[#allocation2 + $0x68] sm:$0xff] %vm393, %v4398
      %4487 = vst.msk [vmem:[#allocation2 + $0x70] sm:$0xff] %vm393, %v4403
      %4488 = vst.msk [vmem:[#allocation2 + $0x78] sm:$0xff] %vm393, %v4406
      %4489 = vst.msk [vmem:[#allocation2 + $0x80] sm:$0xff] %vm393, %v4411
      %4490 = vst.msk [vmem:[#allocation2 + $0x88] sm:$0xff] %vm393, %v4414
      %4491 = vst.msk [vmem:[#allocation2 + $0x90] sm:$0xff] %vm393, %v4419
      %4492 = vst.msk [vmem:[#allocation2 + $0x98] sm:$0xff] %vm393, %v4422
      %4493 = vst.msk [vmem:[#allocation2 + $0xa0] sm:$0xff] %vm393, %v4427
      %4494 = vst.msk [vmem:[#allocation2 + $0xa8] sm:$0xff] %vm393, %v4430
      %4495 = vst.msk [vmem:[#allocation2 + $0xb0] sm:$0xff] %vm393, %v4435
      %4496 = vst.msk [vmem:[#allocation2 + $0xb8] sm:$0xff] %vm393, %v4438
      %4497 = vst.msk [vmem:[#allocation2 + $0xc0] sm:$0xff] %vm393, %v4443
      %4498 = vst.msk [vmem:[#allocation2 + $0xc8] sm:$0xff] %vm393, %v4446
      %4499 = vst.msk [vmem:[#allocation2 + $0xd0] sm:$0xff] %vm393, %v4451
      %4500 = vst.msk [vmem:[#allocation2 + $0xd8] sm:$0xff] %vm393, %v4454
      %4501 = vst.msk [vmem:[#allocation2 + $0xe0] sm:$0xff] %vm393, %v4459
      %4502 = vst.msk [vmem:[#allocation2 + $0xe8] sm:$0xff] %vm393, %v4462
      %4503 = vst.msk [vmem:[#allocation2 + $0xf0] sm:$0xff] %vm393, %v4467
      %4504 = vst.msk [vmem:[#allocation2 + $0xf8] sm:$0xff] %vm393, %v4470
      %v4505 = vld [vmem:[#allocation2] sm:$0xff]
      %v4506 = vld [vmem:[#allocation2 + $0x8] sm:$0xff]
      %v4507 = vld [vmem:[#allocation2 + $0x10] sm:$0xff]
      %v4508 = vld [vmem:[#allocation2 + $0x18] sm:$0xff]
      %v4509 = vld [vmem:[#allocation2 + $0x20] sm:$0xff]
      %v4510 = vld [vmem:[#allocation2 + $0x28] sm:$0xff]
      %v4511 = vld [vmem:[#allocation2 + $0x30] sm:$0xff]
      %v4512 = vld [vmem:[#allocation2 + $0x38] sm:$0xff]
      %v4513 = vld [vmem:[#allocation2 + $0x40] sm:$0xff]
      %v4514 = vld [vmem:[#allocation2 + $0x48] sm:$0xff]
      %v4515 = vld [vmem:[#allocation2 + $0x50] sm:$0xff]
      %v4516 = vld [vmem:[#allocation2 + $0x58] sm:$0xff]
      %v4517 = vld [vmem:[#allocation2 + $0x60] sm:$0xff]
      %v4518 = vld [vmem:[#allocation2 + $0x68] sm:$0xff]
      %v4519 = vld [vmem:[#allocation2 + $0x70] sm:$0xff]
      %v4520 = vld [vmem:[#allocation2 + $0x78] sm:$0xff]
      %v4521 = vld [vmem:[#allocation2 + $0x80] sm:$0xff]
      %v4522 = vld [vmem:[#allocation2 + $0x88] sm:$0xff]
      %v4523 = vld [vmem:[#allocation2 + $0x90] sm:$0xff]
      %v4524 = vld [vmem:[#allocation2 + $0x98] sm:$0xff]
      %v4525 = vld [vmem:[#allocation2 + $0xa0] sm:$0xff]
      %v4526 = vld [vmem:[#allocation2 + $0xa8] sm:$0xff]
      %v4527 = vld [vmem:[#allocation2 + $0xb0] sm:$0xff]
      %v4528 = vld [vmem:[#allocation2 + $0xb8] sm:$0xff]
      %v4529 = vld [vmem:[#allocation2 + $0xc0] sm:$0xff]
      %v4530 = vld [vmem:[#allocation2 + $0xc8] sm:$0xff]
      %v4531 = vld [vmem:[#allocation2 + $0xd0] sm:$0xff]
      %v4532 = vld [vmem:[#allocation2 + $0xd8] sm:$0xff]
      %v4533 = vld [vmem:[#allocation2 + $0xe0] sm:$0xff]
      %v4534 = vld [vmem:[#allocation2 + $0xe8] sm:$0xff]
      %v4535 = vld [vmem:[#allocation2 + $0xf0] sm:$0xff]
      %v4536 = vld [vmem:[#allocation2 + $0xf8] sm:$0xff]
      %v4537 = vpack.c.bf16 %v2675, %v2674
      %v4538 = vpack.c.bf16 %v2677, %v2676
      %v4539 = vpack.c.bf16 %v2679, %v2678
      %v4540 = vpack.c.bf16 %v2681, %v2680
      %v4541 = vpack.c.bf16 %v2683, %v2682
      %v4542 = vpack.c.bf16 %v2685, %v2684
      %v4543 = vpack.c.bf16 %v2687, %v2686
      %v4544 = vpack.c.bf16 %v2689, %v2688
      %v4545 = vpack.c.bf16 %v2691, %v2690
      %v4546 = vpack.c.bf16 %v2693, %v2692
      %v4547 = vpack.c.bf16 %v2695, %v2694
      %v4548 = vpack.c.bf16 %v2697, %v2696
      %v4549 = vpack.c.bf16 %v2699, %v2698
      %v4550 = vpack.c.bf16 %v2701, %v2700
      %v4551 = vpack.c.bf16 %v2703, %v2702
      %v4552 = vpack.c.bf16 %v2705, %v2704
      %s4553 = scalar_lea.vmem %s4, 1
      %v4554 = vld [vmem:[%s4553] sm:$0x1]
      %v4556 = vsel %vm4259, %v4537, 0
      %v4559 = vsel %vm4259, %v4538, 0
      %v4562 = vsel %vm4259, %v4539, 0
      %v4565 = vsel %vm4259, %v4540, 0
      %v4568 = vsel %vm4259, %v4541, 0
      %v4571 = vsel %vm4259, %v4542, 0
      %v4574 = vsel %vm4259, %v4543, 0
      %v4577 = vsel %vm4259, %v4544, 0
      %v4580 = vsel %vm4259, %v4545, 0
      %v4583 = vsel %vm4259, %v4546, 0
      %v4586 = vsel %vm4259, %v4547, 0
      %v4589 = vsel %vm4259, %v4548, 0
      %v4592 = vsel %vm4259, %v4549, 0
      %v4595 = vsel %vm4259, %v4550, 0
      %v4598 = vsel %vm4259, %v4551, 0
      %v4601 = vsel %vm4259, %v4552, 0
      %v4604 = vsel %vm4308, %v4554, 0
      %4606 = vmatprep.subr.bf16.mxu0 0
      %4607 = vmatpush1.bf16.msra.mxu0 0
      %4608 = vmatprep.subr.bf16.mxu0 0
      %4609 = vmatpush1.bf16.msra.mxu0 0
      %4610 = vmatprep.subr.bf16.mxu0 0
      %4611 = vmatpush1.bf16.msra.mxu0 0
      %4612 = vmatprep.subr.bf16.mxu0 0
      %4613 = vmatpush1.bf16.msra.mxu0 0
      %4614 = vmatprep.subr.bf16.mxu0 0
      %4615 = vmatpush1.bf16.msra.mxu0 0
      %4616 = vmatprep.subr.bf16.mxu0 0
      %4617 = vmatpush1.bf16.msra.mxu0 0
      %4618 = vmatprep.subr.bf16.mxu0 0
      %4619 = vmatpush1.bf16.msra.mxu0 0
      %4620 = vmatprep.subr.bf16.mxu0 0
      %4621 = vmatpush1.bf16.msra.mxu0 %v4604
      %4622 = vmatprep.subr.bf16.mxu0 0
      %4623 = vmatpush2.bf16.msra.mxu0 0
      %4624 = vmatprep.subr.bf16.mxu0 0
      %4625 = vmatpush2.bf16.msra.mxu0 0
      %4626 = vmatprep.subr.bf16.mxu0 0
      %4627 = vmatpush2.bf16.msra.mxu0 0
      %4628 = vmatprep.subr.bf16.mxu0 0
      %4629 = vmatpush2.bf16.msra.mxu0 0
      %4630 = vmatprep.subr.bf16.mxu0 0
      %4631 = vmatpush2.bf16.msra.mxu0 0
      %4632 = vmatprep.subr.bf16.mxu0 0
      %4633 = vmatpush2.bf16.msra.mxu0 0
      %4634 = vmatprep.subr.bf16.mxu0 0
      %4635 = vmatpush2.bf16.msra.mxu0 0
      %4636 = vmatprep.subr.bf16.mxu0 0
      %4637 = vmatpush2.bf16.msra.mxu0 0
      %4638 = vmatprep.mubr.bf16.mxu0 0
      %4639 = vmatmul.mubr.bf16.gmra.mxu0 %v4556
      %v4640 = vpop.f32.mrf.mxu0
      %v4641 = vadd.f32 0.0, %v4640
      %v4642 = vpop.f32.mrf.mxu0
      %v4643 = vpop.f32.mrf.mxu0
      %v4644 = vadd.f32 0.0, %v4643
      %v4645 = vpop.f32.mrf.mxu0
      %4646 = vmatprep.mubr.bf16.mxu0 0
      %4647 = vmatmul.mubr.bf16.gmra.mxu0 %v4559
      %v4648 = vpop.f32.mrf.mxu0
      %v4649 = vadd.f32 0.0, %v4648
      %v4650 = vpop.f32.mrf.mxu0
      %v4651 = vpop.f32.mrf.mxu0
      %v4652 = vadd.f32 0.0, %v4651
      %v4653 = vpop.f32.mrf.mxu0
      %4654 = vmatprep.mubr.bf16.mxu0 0
      %4655 = vmatmul.mubr.bf16.gmra.mxu0 %v4562
      %v4656 = vpop.f32.mrf.mxu0
      %v4657 = vadd.f32 0.0, %v4656
      %v4658 = vpop.f32.mrf.mxu0
      %v4659 = vpop.f32.mrf.mxu0
      %v4660 = vadd.f32 0.0, %v4659
      %v4661 = vpop.f32.mrf.mxu0
      %4662 = vmatprep.mubr.bf16.mxu0 0
      %4663 = vmatmul.mubr.bf16.gmra.mxu0 %v4565
      %v4664 = vpop.f32.mrf.mxu0
      %v4665 = vadd.f32 0.0, %v4664
      %v4666 = vpop.f32.mrf.mxu0
      %v4667 = vpop.f32.mrf.mxu0
      %v4668 = vadd.f32 0.0, %v4667
      %v4669 = vpop.f32.mrf.mxu0
      %4670 = vmatprep.mubr.bf16.mxu0 0
      %4671 = vmatmul.mubr.bf16.gmra.mxu0 %v4568
      %v4672 = vpop.f32.mrf.mxu0
      %v4673 = vadd.f32 0.0, %v4672
      %v4674 = vpop.f32.mrf.mxu0
      %v4675 = vpop.f32.mrf.mxu0
      %v4676 = vadd.f32 0.0, %v4675
      %v4677 = vpop.f32.mrf.mxu0
      %4678 = vmatprep.mubr.bf16.mxu0 0
      %4679 = vmatmul.mubr.bf16.gmra.mxu0 %v4571
      %v4680 = vpop.f32.mrf.mxu0
      %v4681 = vadd.f32 0.0, %v4680
      %v4682 = vpop.f32.mrf.mxu0
      %v4683 = vpop.f32.mrf.mxu0
      %v4684 = vadd.f32 0.0, %v4683
      %v4685 = vpop.f32.mrf.mxu0
      %4686 = vmatprep.mubr.bf16.mxu0 0
      %4687 = vmatmul.mubr.bf16.gmra.mxu0 %v4574
      %v4688 = vpop.f32.mrf.mxu0
      %v4689 = vadd.f32 0.0, %v4688
      %v4690 = vpop.f32.mrf.mxu0
      %v4691 = vpop.f32.mrf.mxu0
      %v4692 = vadd.f32 0.0, %v4691
      %v4693 = vpop.f32.mrf.mxu0
      %4694 = vmatprep.mubr.bf16.mxu0 0
      %4695 = vmatmul.mubr.bf16.gmra.mxu0 %v4577
      %v4696 = vpop.f32.mrf.mxu0
      %v4697 = vadd.f32 0.0, %v4696
      %v4698 = vpop.f32.mrf.mxu0
      %v4699 = vpop.f32.mrf.mxu0
      %v4700 = vadd.f32 0.0, %v4699
      %v4701 = vpop.f32.mrf.mxu0
      %4702 = vmatprep.mubr.bf16.mxu0 0
      %4703 = vmatmul.mubr.bf16.gmra.mxu0 %v4580
      %v4704 = vpop.f32.mrf.mxu0
      %v4705 = vadd.f32 0.0, %v4704
      %v4706 = vpop.f32.mrf.mxu0
      %v4707 = vpop.f32.mrf.mxu0
      %v4708 = vadd.f32 0.0, %v4707
      %v4709 = vpop.f32.mrf.mxu0
      %4710 = vmatprep.mubr.bf16.mxu0 0
      %4711 = vmatmul.mubr.bf16.gmra.mxu0 %v4583
      %v4712 = vpop.f32.mrf.mxu0
      %v4713 = vadd.f32 0.0, %v4712
      %v4714 = vpop.f32.mrf.mxu0
      %v4715 = vpop.f32.mrf.mxu0
      %v4716 = vadd.f32 0.0, %v4715
      %v4717 = vpop.f32.mrf.mxu0
      %4718 = vmatprep.mubr.bf16.mxu0 0
      %4719 = vmatmul.mubr.bf16.gmra.mxu0 %v4586
      %v4720 = vpop.f32.mrf.mxu0
      %v4721 = vadd.f32 0.0, %v4720
      %v4722 = vpop.f32.mrf.mxu0
      %v4723 = vpop.f32.mrf.mxu0
      %v4724 = vadd.f32 0.0, %v4723
      %v4725 = vpop.f32.mrf.mxu0
      %4726 = vmatprep.mubr.bf16.mxu0 0
      %4727 = vmatmul.mubr.bf16.gmra.mxu0 %v4589
      %v4728 = vpop.f32.mrf.mxu0
      %v4729 = vadd.f32 0.0, %v4728
      %v4730 = vpop.f32.mrf.mxu0
      %v4731 = vpop.f32.mrf.mxu0
      %v4732 = vadd.f32 0.0, %v4731
      %v4733 = vpop.f32.mrf.mxu0
      %4734 = vmatprep.mubr.bf16.mxu0 0
      %4735 = vmatmul.mubr.bf16.gmra.mxu0 %v4592
      %v4736 = vpop.f32.mrf.mxu0
      %v4737 = vadd.f32 0.0, %v4736
      %v4738 = vpop.f32.mrf.mxu0
      %v4739 = vpop.f32.mrf.mxu0
      %v4740 = vadd.f32 0.0, %v4739
      %v4741 = vpop.f32.mrf.mxu0
      %4742 = vmatprep.mubr.bf16.mxu0 0
      %4743 = vmatmul.mubr.bf16.gmra.mxu0 %v4595
      %v4744 = vpop.f32.mrf.mxu0
      %v4745 = vadd.f32 0.0, %v4744
      %v4746 = vpop.f32.mrf.mxu0
      %v4747 = vpop.f32.mrf.mxu0
      %v4748 = vadd.f32 0.0, %v4747
      %v4749 = vpop.f32.mrf.mxu0
      %4750 = vmatprep.mubr.bf16.mxu0 0
      %4751 = vmatmul.mubr.bf16.gmra.mxu0 %v4598
      %v4752 = vpop.f32.mrf.mxu0
      %v4753 = vadd.f32 0.0, %v4752
      %v4754 = vpop.f32.mrf.mxu0
      %v4755 = vpop.f32.mrf.mxu0
      %v4756 = vadd.f32 0.0, %v4755
      %v4757 = vpop.f32.mrf.mxu0
      %4758 = vmatprep.mubr.bf16.mxu0 0
      %4759 = vmatmul.mubr.bf16.gmra.mxu0 %v4601
      %v4760 = vpop.f32.mrf.mxu0
      %v4761 = vadd.f32 0.0, %v4760
      %v4762 = vpop.f32.mrf.mxu0
      %v4763 = vpop.f32.mrf.mxu0
      %v4764 = vadd.f32 0.0, %v4763
      %v4765 = vpop.f32.mrf.mxu0
      %4766 = vdwg.mxu0
      %v4767 = vadd.f32 %v4505, %v4641
      %v4768 = vadd.f32 %v4506, %v4644
      %v4769 = vadd.f32 %v4507, %v4649
      %v4770 = vadd.f32 %v4508, %v4652
      %v4771 = vadd.f32 %v4509, %v4657
      %v4772 = vadd.f32 %v4510, %v4660
      %v4773 = vadd.f32 %v4511, %v4665
      %v4774 = vadd.f32 %v4512, %v4668
      %v4775 = vadd.f32 %v4513, %v4673
      %v4776 = vadd.f32 %v4514, %v4676
      %v4777 = vadd.f32 %v4515, %v4681
      %v4778 = vadd.f32 %v4516, %v4684
      %v4779 = vadd.f32 %v4517, %v4689
      %v4780 = vadd.f32 %v4518, %v4692
      %v4781 = vadd.f32 %v4519, %v4697
      %v4782 = vadd.f32 %v4520, %v4700
      %v4783 = vadd.f32 %v4521, %v4705
      %v4784 = vadd.f32 %v4522, %v4708
      %v4785 = vadd.f32 %v4523, %v4713
      %v4786 = vadd.f32 %v4524, %v4716
      %v4787 = vadd.f32 %v4525, %v4721
      %v4788 = vadd.f32 %v4526, %v4724
      %v4789 = vadd.f32 %v4527, %v4729
      %v4790 = vadd.f32 %v4528, %v4732
      %v4791 = vadd.f32 %v4529, %v4737
      %v4792 = vadd.f32 %v4530, %v4740
      %v4793 = vadd.f32 %v4531, %v4745
      %v4794 = vadd.f32 %v4532, %v4748
      %v4795 = vadd.f32 %v4533, %v4753
      %v4796 = vadd.f32 %v4534, %v4756
      %v4797 = vadd.f32 %v4535, %v4761
      %v4798 = vadd.f32 %v4536, %v4764
      %4799 = vst.msk [vmem:[#allocation2] sm:$0xff] %vm393, %v4767
      %4800 = vst.msk [vmem:[#allocation2 + $0x8] sm:$0xff] %vm393, %v4768
      %4801 = vst.msk [vmem:[#allocation2 + $0x10] sm:$0xff] %vm393, %v4769
      %4802 = vst.msk [vmem:[#allocation2 + $0x18] sm:$0xff] %vm393, %v4770
      %4803 = vst.msk [vmem:[#allocation2 + $0x20] sm:$0xff] %vm393, %v4771
      %4804 = vst.msk [vmem:[#allocation2 + $0x28] sm:$0xff] %vm393, %v4772
      %4805 = vst.msk [vmem:[#allocation2 + $0x30] sm:$0xff] %vm393, %v4773
      %4806 = vst.msk [vmem:[#allocation2 + $0x38] sm:$0xff] %vm393, %v4774
      %4807 = vst.msk [vmem:[#allocation2 + $0x40] sm:$0xff] %vm393, %v4775
      %4808 = vst.msk [vmem:[#allocation2 + $0x48] sm:$0xff] %vm393, %v4776
      %4809 = vst.msk [vmem:[#allocation2 + $0x50] sm:$0xff] %vm393, %v4777
      %4810 = vst.msk [vmem:[#allocation2 + $0x58] sm:$0xff] %vm393, %v4778
      %4811 = vst.msk [vmem:[#allocation2 + $0x60] sm:$0xff] %vm393, %v4779
      %4812 = vst.msk [vmem:[#allocation2 + $0x68] sm:$0xff] %vm393, %v4780
      %4813 = vst.msk [vmem:[#allocation2 + $0x70] sm:$0xff] %vm393, %v4781
      %4814 = vst.msk [vmem:[#allocation2 + $0x78] sm:$0xff] %vm393, %v4782
      %4815 = vst.msk [vmem:[#allocation2 + $0x80] sm:$0xff] %vm393, %v4783
      %4816 = vst.msk [vmem:[#allocation2 + $0x88] sm:$0xff] %vm393, %v4784
      %4817 = vst.msk [vmem:[#allocation2 + $0x90] sm:$0xff] %vm393, %v4785
      %4818 = vst.msk [vmem:[#allocation2 + $0x98] sm:$0xff] %vm393, %v4786
      %4819 = vst.msk [vmem:[#allocation2 + $0xa0] sm:$0xff] %vm393, %v4787
      %4820 = vst.msk [vmem:[#allocation2 + $0xa8] sm:$0xff] %vm393, %v4788
      %4821 = vst.msk [vmem:[#allocation2 + $0xb0] sm:$0xff] %vm393, %v4789
      %4822 = vst.msk [vmem:[#allocation2 + $0xb8] sm:$0xff] %vm393, %v4790
      %4823 = vst.msk [vmem:[#allocation2 + $0xc0] sm:$0xff] %vm393, %v4791
      %4824 = vst.msk [vmem:[#allocation2 + $0xc8] sm:$0xff] %vm393, %v4792
      %4825 = vst.msk [vmem:[#allocation2 + $0xd0] sm:$0xff] %vm393, %v4793
      %4826 = vst.msk [vmem:[#allocation2 + $0xd8] sm:$0xff] %vm393, %v4794
      %4827 = vst.msk [vmem:[#allocation2 + $0xe0] sm:$0xff] %vm393, %v4795
      %4828 = vst.msk [vmem:[#allocation2 + $0xe8] sm:$0xff] %vm393, %v4796
      %4829 = vst.msk [vmem:[#allocation2 + $0xf0] sm:$0xff] %vm393, %v4797
      %4830 = vst.msk [vmem:[#allocation2 + $0xf8] sm:$0xff] %vm393, %v4798
      %v4831 = vld [vmem:[#allocation2] sm:$0xff]
      %v4832 = vld [vmem:[#allocation2 + $0x8] sm:$0xff]
      %v4833 = vld [vmem:[#allocation2 + $0x10] sm:$0xff]
      %v4834 = vld [vmem:[#allocation2 + $0x18] sm:$0xff]
      %v4835 = vld [vmem:[#allocation2 + $0x20] sm:$0xff]
      %v4836 = vld [vmem:[#allocation2 + $0x28] sm:$0xff]
      %v4837 = vld [vmem:[#allocation2 + $0x30] sm:$0xff]
      %v4838 = vld [vmem:[#allocation2 + $0x38] sm:$0xff]
      %v4839 = vld [vmem:[#allocation2 + $0x40] sm:$0xff]
      %v4840 = vld [vmem:[#allocation2 + $0x48] sm:$0xff]
      %v4841 = vld [vmem:[#allocation2 + $0x50] sm:$0xff]
      %v4842 = vld [vmem:[#allocation2 + $0x58] sm:$0xff]
      %v4843 = vld [vmem:[#allocation2 + $0x60] sm:$0xff]
      %v4844 = vld [vmem:[#allocation2 + $0x68] sm:$0xff]
      %v4845 = vld [vmem:[#allocation2 + $0x70] sm:$0xff]
      %v4846 = vld [vmem:[#allocation2 + $0x78] sm:$0xff]
      %v4847 = vld [vmem:[#allocation2 + $0x80] sm:$0xff]
      %v4848 = vld [vmem:[#allocation2 + $0x88] sm:$0xff]
      %v4849 = vld [vmem:[#allocation2 + $0x90] sm:$0xff]
      %v4850 = vld [vmem:[#allocation2 + $0x98] sm:$0xff]
      %v4851 = vld [vmem:[#allocation2 + $0xa0] sm:$0xff]
      %v4852 = vld [vmem:[#allocation2 + $0xa8] sm:$0xff]
      %v4853 = vld [vmem:[#allocation2 + $0xb0] sm:$0xff]
      %v4854 = vld [vmem:[#allocation2 + $0xb8] sm:$0xff]
      %v4855 = vld [vmem:[#allocation2 + $0xc0] sm:$0xff]
      %v4856 = vld [vmem:[#allocation2 + $0xc8] sm:$0xff]
      %v4857 = vld [vmem:[#allocation2 + $0xd0] sm:$0xff]
      %v4858 = vld [vmem:[#allocation2 + $0xd8] sm:$0xff]
      %v4859 = vld [vmem:[#allocation2 + $0xe0] sm:$0xff]
      %v4860 = vld [vmem:[#allocation2 + $0xe8] sm:$0xff]
      %v4861 = vld [vmem:[#allocation2 + $0xf0] sm:$0xff]
      %v4862 = vld [vmem:[#allocation2 + $0xf8] sm:$0xff]
      %v4863 = vpack.c.bf16 %v3443, %v3442
      %v4864 = vpack.c.bf16 %v3445, %v3444
      %v4865 = vpack.c.bf16 %v3447, %v3446
      %v4866 = vpack.c.bf16 %v3449, %v3448
      %v4867 = vpack.c.bf16 %v3451, %v3450
      %v4868 = vpack.c.bf16 %v3453, %v3452
      %v4869 = vpack.c.bf16 %v3455, %v3454
      %v4870 = vpack.c.bf16 %v3457, %v3456
      %v4871 = vpack.c.bf16 %v3459, %v3458
      %v4872 = vpack.c.bf16 %v3461, %v3460
      %v4873 = vpack.c.bf16 %v3463, %v3462
      %v4874 = vpack.c.bf16 %v3465, %v3464
      %v4875 = vpack.c.bf16 %v3467, %v3466
      %v4876 = vpack.c.bf16 %v3469, %v3468
      %v4877 = vpack.c.bf16 %v3471, %v3470
      %v4878 = vpack.c.bf16 %v3473, %v3472
      %s4879 = scalar_lea.vmem %s4, 2
      %v4880 = vld [vmem:[%s4879] sm:$0x1]
      %v4882 = vsel %vm4259, %v4863, 0
      %v4885 = vsel %vm4259, %v4864, 0
      %v4888 = vsel %vm4259, %v4865, 0
      %v4891 = vsel %vm4259, %v4866, 0
      %v4894 = vsel %vm4259, %v4867, 0
      %v4897 = vsel %vm4259, %v4868, 0
      %v4900 = vsel %vm4259, %v4869, 0
      %v4903 = vsel %vm4259, %v4870, 0
      %v4906 = vsel %vm4259, %v4871, 0
      %v4909 = vsel %vm4259, %v4872, 0
      %v4912 = vsel %vm4259, %v4873, 0
      %v4915 = vsel %vm4259, %v4874, 0
      %v4918 = vsel %vm4259, %v4875, 0
      %v4921 = vsel %vm4259, %v4876, 0
      %v4924 = vsel %vm4259, %v4877, 0
      %v4927 = vsel %vm4259, %v4878, 0
      %v4930 = vsel %vm4308, %v4880, 0
      %4932 = vmatprep.subr.bf16.mxu0 0
      %4933 = vmatpush1.bf16.msra.mxu0 0
      %4934 = vmatprep.subr.bf16.mxu0 0
      %4935 = vmatpush1.bf16.msra.mxu0 0
      %4936 = vmatprep.subr.bf16.mxu0 0
      %4937 = vmatpush1.bf16.msra.mxu0 0
      %4938 = vmatprep.subr.bf16.mxu0 0
      %4939 = vmatpush1.bf16.msra.mxu0 0
      %4940 = vmatprep.subr.bf16.mxu0 0
      %4941 = vmatpush1.bf16.msra.mxu0 0
      %4942 = vmatprep.subr.bf16.mxu0 0
      %4943 = vmatpush1.bf16.msra.mxu0 0
      %4944 = vmatprep.subr.bf16.mxu0 0
      %4945 = vmatpush1.bf16.msra.mxu0 0
      %4946 = vmatprep.subr.bf16.mxu0 0
      %4947 = vmatpush1.bf16.msra.mxu0 %v4930
      %4948 = vmatprep.subr.bf16.mxu0 0
      %4949 = vmatpush2.bf16.msra.mxu0 0
      %4950 = vmatprep.subr.bf16.mxu0 0
      %4951 = vmatpush2.bf16.msra.mxu0 0
      %4952 = vmatprep.subr.bf16.mxu0 0
      %4953 = vmatpush2.bf16.msra.mxu0 0
      %4954 = vmatprep.subr.bf16.mxu0 0
      %4955 = vmatpush2.bf16.msra.mxu0 0
      %4956 = vmatprep.subr.bf16.mxu0 0
      %4957 = vmatpush2.bf16.msra.mxu0 0
      %4958 = vmatprep.subr.bf16.mxu0 0
      %4959 = vmatpush2.bf16.msra.mxu0 0
      %4960 = vmatprep.subr.bf16.mxu0 0
      %4961 = vmatpush2.bf16.msra.mxu0 0
      %4962 = vmatprep.subr.bf16.mxu0 0
      %4963 = vmatpush2.bf16.msra.mxu0 0
      %4964 = vmatprep.mubr.bf16.mxu0 0
      %4965 = vmatmul.mubr.bf16.gmra.mxu0 %v4882
      %v4966 = vpop.f32.mrf.mxu0
      %v4967 = vadd.f32 0.0, %v4966
      %v4968 = vpop.f32.mrf.mxu0
      %v4969 = vpop.f32.mrf.mxu0
      %v4970 = vadd.f32 0.0, %v4969
      %v4971 = vpop.f32.mrf.mxu0
      %4972 = vmatprep.mubr.bf16.mxu0 0
      %4973 = vmatmul.mubr.bf16.gmra.mxu0 %v4885
      %v4974 = vpop.f32.mrf.mxu0
      %v4975 = vadd.f32 0.0, %v4974
      %v4976 = vpop.f32.mrf.mxu0
      %v4977 = vpop.f32.mrf.mxu0
      %v4978 = vadd.f32 0.0, %v4977
      %v4979 = vpop.f32.mrf.mxu0
      %4980 = vmatprep.mubr.bf16.mxu0 0
      %4981 = vmatmul.mubr.bf16.gmra.mxu0 %v4888
      %v4982 = vpop.f32.mrf.mxu0
      %v4983 = vadd.f32 0.0, %v4982
      %v4984 = vpop.f32.mrf.mxu0
      %v4985 = vpop.f32.mrf.mxu0
      %v4986 = vadd.f32 0.0, %v4985
      %v4987 = vpop.f32.mrf.mxu0
      %4988 = vmatprep.mubr.bf16.mxu0 0
      %4989 = vmatmul.mubr.bf16.gmra.mxu0 %v4891
      %v4990 = vpop.f32.mrf.mxu0
      %v4991 = vadd.f32 0.0, %v4990
      %v4992 = vpop.f32.mrf.mxu0
      %v4993 = vpop.f32.mrf.mxu0
      %v4994 = vadd.f32 0.0, %v4993
      %v4995 = vpop.f32.mrf.mxu0
      %4996 = vmatprep.mubr.bf16.mxu0 0
      %4997 = vmatmul.mubr.bf16.gmra.mxu0 %v4894
      %v4998 = vpop.f32.mrf.mxu0
      %v4999 = vadd.f32 0.0, %v4998
      %v5000 = vpop.f32.mrf.mxu0
      %v5001 = vpop.f32.mrf.mxu0
      %v5002 = vadd.f32 0.0, %v5001
      %v5003 = vpop.f32.mrf.mxu0
      %5004 = vmatprep.mubr.bf16.mxu0 0
      %5005 = vmatmul.mubr.bf16.gmra.mxu0 %v4897
      %v5006 = vpop.f32.mrf.mxu0
      %v5007 = vadd.f32 0.0, %v5006
      %v5008 = vpop.f32.mrf.mxu0
      %v5009 = vpop.f32.mrf.mxu0
      %v5010 = vadd.f32 0.0, %v5009
      %v5011 = vpop.f32.mrf.mxu0
      %5012 = vmatprep.mubr.bf16.mxu0 0
      %5013 = vmatmul.mubr.bf16.gmra.mxu0 %v4900
      %v5014 = vpop.f32.mrf.mxu0
      %v5015 = vadd.f32 0.0, %v5014
      %v5016 = vpop.f32.mrf.mxu0
      %v5017 = vpop.f32.mrf.mxu0
      %v5018 = vadd.f32 0.0, %v5017
      %v5019 = vpop.f32.mrf.mxu0
      %5020 = vmatprep.mubr.bf16.mxu0 0
      %5021 = vmatmul.mubr.bf16.gmra.mxu0 %v4903
      %v5022 = vpop.f32.mrf.mxu0
      %v5023 = vadd.f32 0.0, %v5022
      %v5024 = vpop.f32.mrf.mxu0
      %v5025 = vpop.f32.mrf.mxu0
      %v5026 = vadd.f32 0.0, %v5025
      %v5027 = vpop.f32.mrf.mxu0
      %5028 = vmatprep.mubr.bf16.mxu0 0
      %5029 = vmatmul.mubr.bf16.gmra.mxu0 %v4906
      %v5030 = vpop.f32.mrf.mxu0
      %v5031 = vadd.f32 0.0, %v5030
      %v5032 = vpop.f32.mrf.mxu0
      %v5033 = vpop.f32.mrf.mxu0
      %v5034 = vadd.f32 0.0, %v5033
      %v5035 = vpop.f32.mrf.mxu0
      %5036 = vmatprep.mubr.bf16.mxu0 0
      %5037 = vmatmul.mubr.bf16.gmra.mxu0 %v4909
      %v5038 = vpop.f32.mrf.mxu0
      %v5039 = vadd.f32 0.0, %v5038
      %v5040 = vpop.f32.mrf.mxu0
      %v5041 = vpop.f32.mrf.mxu0
      %v5042 = vadd.f32 0.0, %v5041
      %v5043 = vpop.f32.mrf.mxu0
      %5044 = vmatprep.mubr.bf16.mxu0 0
      %5045 = vmatmul.mubr.bf16.gmra.mxu0 %v4912
      %v5046 = vpop.f32.mrf.mxu0
      %v5047 = vadd.f32 0.0, %v5046
      %v5048 = vpop.f32.mrf.mxu0
      %v5049 = vpop.f32.mrf.mxu0
      %v5050 = vadd.f32 0.0, %v5049
      %v5051 = vpop.f32.mrf.mxu0
      %5052 = vmatprep.mubr.bf16.mxu0 0
      %5053 = vmatmul.mubr.bf16.gmra.mxu0 %v4915
      %v5054 = vpop.f32.mrf.mxu0
      %v5055 = vadd.f32 0.0, %v5054
      %v5056 = vpop.f32.mrf.mxu0
      %v5057 = vpop.f32.mrf.mxu0
      %v5058 = vadd.f32 0.0, %v5057
      %v5059 = vpop.f32.mrf.mxu0
      %5060 = vmatprep.mubr.bf16.mxu0 0
      %5061 = vmatmul.mubr.bf16.gmra.mxu0 %v4918
      %v5062 = vpop.f32.mrf.mxu0
      %v5063 = vadd.f32 0.0, %v5062
      %v5064 = vpop.f32.mrf.mxu0
      %v5065 = vpop.f32.mrf.mxu0
      %v5066 = vadd.f32 0.0, %v5065
      %v5067 = vpop.f32.mrf.mxu0
      %5068 = vmatprep.mubr.bf16.mxu0 0
      %5069 = vmatmul.mubr.bf16.gmra.mxu0 %v4921
      %v5070 = vpop.f32.mrf.mxu0
      %v5071 = vadd.f32 0.0, %v5070
      %v5072 = vpop.f32.mrf.mxu0
      %v5073 = vpop.f32.mrf.mxu0
      %v5074 = vadd.f32 0.0, %v5073
      %v5075 = vpop.f32.mrf.mxu0
      %5076 = vmatprep.mubr.bf16.mxu0 0
      %5077 = vmatmul.mubr.bf16.gmra.mxu0 %v4924
      %v5078 = vpop.f32.mrf.mxu0
      %v5079 = vadd.f32 0.0, %v5078
      %v5080 = vpop.f32.mrf.mxu0
      %v5081 = vpop.f32.mrf.mxu0
      %v5082 = vadd.f32 0.0, %v5081
      %v5083 = vpop.f32.mrf.mxu0
      %5084 = vmatprep.mubr.bf16.mxu0 0
      %5085 = vmatmul.mubr.bf16.gmra.mxu0 %v4927
      %v5086 = vpop.f32.mrf.mxu0
      %v5087 = vadd.f32 0.0, %v5086
      %v5088 = vpop.f32.mrf.mxu0
      %v5089 = vpop.f32.mrf.mxu0
      %v5090 = vadd.f32 0.0, %v5089
      %v5091 = vpop.f32.mrf.mxu0
      %5092 = vdwg.mxu0
      %v5093 = vadd.f32 %v4831, %v4967
      %v5094 = vadd.f32 %v4832, %v4970
      %v5095 = vadd.f32 %v4833, %v4975
      %v5096 = vadd.f32 %v4834, %v4978
      %v5097 = vadd.f32 %v4835, %v4983
      %v5098 = vadd.f32 %v4836, %v4986
      %v5099 = vadd.f32 %v4837, %v4991
      %v5100 = vadd.f32 %v4838, %v4994
      %v5101 = vadd.f32 %v4839, %v4999
      %v5102 = vadd.f32 %v4840, %v5002
      %v5103 = vadd.f32 %v4841, %v5007
      %v5104 = vadd.f32 %v4842, %v5010
      %v5105 = vadd.f32 %v4843, %v5015
      %v5106 = vadd.f32 %v4844, %v5018
      %v5107 = vadd.f32 %v4845, %v5023
      %v5108 = vadd.f32 %v4846, %v5026
      %v5109 = vadd.f32 %v4847, %v5031
      %v5110 = vadd.f32 %v4848, %v5034
      %v5111 = vadd.f32 %v4849, %v5039
      %v5112 = vadd.f32 %v4850, %v5042
      %v5113 = vadd.f32 %v4851, %v5047
      %v5114 = vadd.f32 %v4852, %v5050
      %v5115 = vadd.f32 %v4853, %v5055
      %v5116 = vadd.f32 %v4854, %v5058
      %v5117 = vadd.f32 %v4855, %v5063
      %v5118 = vadd.f32 %v4856, %v5066
      %v5119 = vadd.f32 %v4857, %v5071
      %v5120 = vadd.f32 %v4858, %v5074
      %v5121 = vadd.f32 %v4859, %v5079
      %v5122 = vadd.f32 %v4860, %v5082
      %v5123 = vadd.f32 %v4861, %v5087
      %v5124 = vadd.f32 %v4862, %v5090
      %5125 = vst.msk [vmem:[#allocation2] sm:$0xff] %vm393, %v5093
      %5126 = vst.msk [vmem:[#allocation2 + $0x8] sm:$0xff] %vm393, %v5094
      %5127 = vst.msk [vmem:[#allocation2 + $0x10] sm:$0xff] %vm393, %v5095
      %5128 = vst.msk [vmem:[#allocation2 + $0x18] sm:$0xff] %vm393, %v5096
      %5129 = vst.msk [vmem:[#allocation2 + $0x20] sm:$0xff] %vm393, %v5097
      %5130 = vst.msk [vmem:[#allocation2 + $0x28] sm:$0xff] %vm393, %v5098
      %5131 = vst.msk [vmem:[#allocation2 + $0x30] sm:$0xff] %vm393, %v5099
      %5132 = vst.msk [vmem:[#allocation2 + $0x38] sm:$0xff] %vm393, %v5100
      %5133 = vst.msk [vmem:[#allocation2 + $0x40] sm:$0xff] %vm393, %v5101
      %5134 = vst.msk [vmem:[#allocation2 + $0x48] sm:$0xff] %vm393, %v5102
      %5135 = vst.msk [vmem:[#allocation2 + $0x50] sm:$0xff] %vm393, %v5103
      %5136 = vst.msk [vmem:[#allocation2 + $0x58] sm:$0xff] %vm393, %v5104
      %5137 = vst.msk [vmem:[#allocation2 + $0x60] sm:$0xff] %vm393, %v5105
      %5138 = vst.msk [vmem:[#allocation2 + $0x68] sm:$0xff] %vm393, %v5106
      %5139 = vst.msk [vmem:[#allocation2 + $0x70] sm:$0xff] %vm393, %v5107
      %5140 = vst.msk [vmem:[#allocation2 + $0x78] sm:$0xff] %vm393, %v5108
      %5141 = vst.msk [vmem:[#allocation2 + $0x80] sm:$0xff] %vm393, %v5109
      %5142 = vst.msk [vmem:[#allocation2 + $0x88] sm:$0xff] %vm393, %v5110
      %5143 = vst.msk [vmem:[#allocation2 + $0x90] sm:$0xff] %vm393, %v5111
      %5144 = vst.msk [vmem:[#allocation2 + $0x98] sm:$0xff] %vm393, %v5112
      %5145 = vst.msk [vmem:[#allocation2 + $0xa0] sm:$0xff] %vm393, %v5113
      %5146 = vst.msk [vmem:[#allocation2 + $0xa8] sm:$0xff] %vm393, %v5114
      %5147 = vst.msk [vmem:[#allocation2 + $0xb0] sm:$0xff] %vm393, %v5115
      %5148 = vst.msk [vmem:[#allocation2 + $0xb8] sm:$0xff] %vm393, %v5116
      %5149 = vst.msk [vmem:[#allocation2 + $0xc0] sm:$0xff] %vm393, %v5117
      %5150 = vst.msk [vmem:[#allocation2 + $0xc8] sm:$0xff] %vm393, %v5118
      %5151 = vst.msk [vmem:[#allocation2 + $0xd0] sm:$0xff] %vm393, %v5119
      %5152 = vst.msk [vmem:[#allocation2 + $0xd8] sm:$0xff] %vm393, %v5120
      %5153 = vst.msk [vmem:[#allocation2 + $0xe0] sm:$0xff] %vm393, %v5121
      %5154 = vst.msk [vmem:[#allocation2 + $0xe8] sm:$0xff] %vm393, %v5122
      %5155 = vst.msk [vmem:[#allocation2 + $0xf0] sm:$0xff] %vm393, %v5123
      %5156 = vst.msk [vmem:[#allocation2 + $0xf8] sm:$0xff] %vm393, %v5124
      %v5157 = vld [vmem:[#allocation2] sm:$0xff]
      %v5158 = vld [vmem:[#allocation2 + $0x8] sm:$0xff]
      %v5159 = vld [vmem:[#allocation2 + $0x10] sm:$0xff]
      %v5160 = vld [vmem:[#allocation2 + $0x18] sm:$0xff]
      %v5161 = vld [vmem:[#allocation2 + $0x20] sm:$0xff]
      %v5162 = vld [vmem:[#allocation2 + $0x28] sm:$0xff]
      %v5163 = vld [vmem:[#allocation2 + $0x30] sm:$0xff]
      %v5164 = vld [vmem:[#allocation2 + $0x38] sm:$0xff]
      %v5165 = vld [vmem:[#allocation2 + $0x40] sm:$0xff]
      %v5166 = vld [vmem:[#allocation2 + $0x48] sm:$0xff]
      %v5167 = vld [vmem:[#allocation2 + $0x50] sm:$0xff]
      %v5168 = vld [vmem:[#allocation2 + $0x58] sm:$0xff]
      %v5169 = vld [vmem:[#allocation2 + $0x60] sm:$0xff]
      %v5170 = vld [vmem:[#allocation2 + $0x68] sm:$0xff]
      %v5171 = vld [vmem:[#allocation2 + $0x70] sm:$0xff]
      %v5172 = vld [vmem:[#allocation2 + $0x78] sm:$0xff]
      %v5173 = vld [vmem:[#allocation2 + $0x80] sm:$0xff]
      %v5174 = vld [vmem:[#allocation2 + $0x88] sm:$0xff]
      %v5175 = vld [vmem:[#allocation2 + $0x90] sm:$0xff]
      %v5176 = vld [vmem:[#allocation2 + $0x98] sm:$0xff]
      %v5177 = vld [vmem:[#allocation2 + $0xa0] sm:$0xff]
      %v5178 = vld [vmem:[#allocation2 + $0xa8] sm:$0xff]
      %v5179 = vld [vmem:[#allocation2 + $0xb0] sm:$0xff]
      %v5180 = vld [vmem:[#allocation2 + $0xb8] sm:$0xff]
      %v5181 = vld [vmem:[#allocation2 + $0xc0] sm:$0xff]
      %v5182 = vld [vmem:[#allocation2 + $0xc8] sm:$0xff]
      %v5183 = vld [vmem:[#allocation2 + $0xd0] sm:$0xff]
      %v5184 = vld [vmem:[#allocation2 + $0xd8] sm:$0xff]
      %v5185 = vld [vmem:[#allocation2 + $0xe0] sm:$0xff]
      %v5186 = vld [vmem:[#allocation2 + $0xe8] sm:$0xff]
      %v5187 = vld [vmem:[#allocation2 + $0xf0] sm:$0xff]
      %v5188 = vld [vmem:[#allocation2 + $0xf8] sm:$0xff]
      %v5189 = vpack.c.bf16 %v4211, %v4210
      %v5190 = vpack.c.bf16 %v4213, %v4212
      %v5191 = vpack.c.bf16 %v4215, %v4214
      %v5192 = vpack.c.bf16 %v4217, %v4216
      %v5193 = vpack.c.bf16 %v4219, %v4218
      %v5194 = vpack.c.bf16 %v4221, %v4220
      %v5195 = vpack.c.bf16 %v4223, %v4222
      %v5196 = vpack.c.bf16 %v4225, %v4224
      %v5197 = vpack.c.bf16 %v4227, %v4226
      %v5198 = vpack.c.bf16 %v4229, %v4228
      %v5199 = vpack.c.bf16 %v4231, %v4230
      %v5200 = vpack.c.bf16 %v4233, %v4232
      %v5201 = vpack.c.bf16 %v4235, %v4234
      %v5202 = vpack.c.bf16 %v4237, %v4236
      %v5203 = vpack.c.bf16 %v4239, %v4238
      %v5204 = vpack.c.bf16 %v4241, %v4240
      %s5205 = scalar_lea.vmem %s4, 3
      %v5206 = vld [vmem:[%s5205] sm:$0x1]
      %v5208 = vsel %vm4259, %v5189, 0
      %v5211 = vsel %vm4259, %v5190, 0
      %v5214 = vsel %vm4259, %v5191, 0
      %v5217 = vsel %vm4259, %v5192, 0
      %v5220 = vsel %vm4259, %v5193, 0
      %v5223 = vsel %vm4259, %v5194, 0
      %v5226 = vsel %vm4259, %v5195, 0
      %v5229 = vsel %vm4259, %v5196, 0
      %v5232 = vsel %vm4259, %v5197, 0
      %v5235 = vsel %vm4259, %v5198, 0
      %v5238 = vsel %vm4259, %v5199, 0
      %v5241 = vsel %vm4259, %v5200, 0
      %v5244 = vsel %vm4259, %v5201, 0
      %v5247 = vsel %vm4259, %v5202, 0
      %v5250 = vsel %vm4259, %v5203, 0
      %v5253 = vsel %vm4259, %v5204, 0
      %v5256 = vsel %vm4308, %v5206, 0
      %5258 = vmatprep.subr.bf16.mxu0 0
      %5259 = vmatpush1.bf16.msra.mxu0 0
      %5260 = vmatprep.subr.bf16.mxu0 0
      %5261 = vmatpush1.bf16.msra.mxu0 0
      %5262 = vmatprep.subr.bf16.mxu0 0
      %5263 = vmatpush1.bf16.msra.mxu0 0
      %5264 = vmatprep.subr.bf16.mxu0 0
      %5265 = vmatpush1.bf16.msra.mxu0 0
      %5266 = vmatprep.subr.bf16.mxu0 0
      %5267 = vmatpush1.bf16.msra.mxu0 0
      %5268 = vmatprep.subr.bf16.mxu0 0
      %5269 = vmatpush1.bf16.msra.mxu0 0
      %5270 = vmatprep.subr.bf16.mxu0 0
      %5271 = vmatpush1.bf16.msra.mxu0 0
      %5272 = vmatprep.subr.bf16.mxu0 0
      %5273 = vmatpush1.bf16.msra.mxu0 %v5256
      %5274 = vmatprep.subr.bf16.mxu0 0
      %5275 = vmatpush2.bf16.msra.mxu0 0
      %5276 = vmatprep.subr.bf16.mxu0 0
      %5277 = vmatpush2.bf16.msra.mxu0 0
      %5278 = vmatprep.subr.bf16.mxu0 0
      %5279 = vmatpush2.bf16.msra.mxu0 0
      %5280 = vmatprep.subr.bf16.mxu0 0
      %5281 = vmatpush2.bf16.msra.mxu0 0
      %5282 = vmatprep.subr.bf16.mxu0 0
      %5283 = vmatpush2.bf16.msra.mxu0 0
      %5284 = vmatprep.subr.bf16.mxu0 0
      %5285 = vmatpush2.bf16.msra.mxu0 0
      %5286 = vmatprep.subr.bf16.mxu0 0
      %5287 = vmatpush2.bf16.msra.mxu0 0
      %5288 = vmatprep.subr.bf16.mxu0 0
      %5289 = vmatpush2.bf16.msra.mxu0 0
      %5290 = vmatprep.mubr.bf16.mxu0 0
      %5291 = vmatmul.mubr.bf16.gmra.mxu0 %v5208
      %v5292 = vpop.f32.mrf.mxu0
      %v5293 = vadd.f32 0.0, %v5292
      %v5294 = vpop.f32.mrf.mxu0
      %v5295 = vpop.f32.mrf.mxu0
      %v5296 = vadd.f32 0.0, %v5295
      %v5297 = vpop.f32.mrf.mxu0
      %5298 = vmatprep.mubr.bf16.mxu0 0
      %5299 = vmatmul.mubr.bf16.gmra.mxu0 %v5211
      %v5300 = vpop.f32.mrf.mxu0
      %v5301 = vadd.f32 0.0, %v5300
      %v5302 = vpop.f32.mrf.mxu0
      %v5303 = vpop.f32.mrf.mxu0
      %v5304 = vadd.f32 0.0, %v5303
      %v5305 = vpop.f32.mrf.mxu0
      %5306 = vmatprep.mubr.bf16.mxu0 0
      %5307 = vmatmul.mubr.bf16.gmra.mxu0 %v5214
      %v5308 = vpop.f32.mrf.mxu0
      %v5309 = vadd.f32 0.0, %v5308
      %v5310 = vpop.f32.mrf.mxu0
      %v5311 = vpop.f32.mrf.mxu0
      %v5312 = vadd.f32 0.0, %v5311
      %v5313 = vpop.f32.mrf.mxu0
      %5314 = vmatprep.mubr.bf16.mxu0 0
      %5315 = vmatmul.mubr.bf16.gmra.mxu0 %v5217
      %v5316 = vpop.f32.mrf.mxu0
      %v5317 = vadd.f32 0.0, %v5316
      %v5318 = vpop.f32.mrf.mxu0
      %v5319 = vpop.f32.mrf.mxu0
      %v5320 = vadd.f32 0.0, %v5319
      %v5321 = vpop.f32.mrf.mxu0
      %5322 = vmatprep.mubr.bf16.mxu0 0
      %5323 = vmatmul.mubr.bf16.gmra.mxu0 %v5220
      %v5324 = vpop.f32.mrf.mxu0
      %v5325 = vadd.f32 0.0, %v5324
      %v5326 = vpop.f32.mrf.mxu0
      %v5327 = vpop.f32.mrf.mxu0
      %v5328 = vadd.f32 0.0, %v5327
      %v5329 = vpop.f32.mrf.mxu0
      %5330 = vmatprep.mubr.bf16.mxu0 0
      %5331 = vmatmul.mubr.bf16.gmra.mxu0 %v5223
      %v5332 = vpop.f32.mrf.mxu0
      %v5333 = vadd.f32 0.0, %v5332
      %v5334 = vpop.f32.mrf.mxu0
      %v5335 = vpop.f32.mrf.mxu0
      %v5336 = vadd.f32 0.0, %v5335
      %v5337 = vpop.f32.mrf.mxu0
      %5338 = vmatprep.mubr.bf16.mxu0 0
      %5339 = vmatmul.mubr.bf16.gmra.mxu0 %v5226
      %v5340 = vpop.f32.mrf.mxu0
      %v5341 = vadd.f32 0.0, %v5340
      %v5342 = vpop.f32.mrf.mxu0
      %v5343 = vpop.f32.mrf.mxu0
      %v5344 = vadd.f32 0.0, %v5343
      %v5345 = vpop.f32.mrf.mxu0
      %5346 = vmatprep.mubr.bf16.mxu0 0
      %5347 = vmatmul.mubr.bf16.gmra.mxu0 %v5229
      %v5348 = vpop.f32.mrf.mxu0
      %v5349 = vadd.f32 0.0, %v5348
      %v5350 = vpop.f32.mrf.mxu0
      %v5351 = vpop.f32.mrf.mxu0
      %v5352 = vadd.f32 0.0, %v5351
      %v5353 = vpop.f32.mrf.mxu0
      %5354 = vmatprep.mubr.bf16.mxu0 0
      %5355 = vmatmul.mubr.bf16.gmra.mxu0 %v5232
      %v5356 = vpop.f32.mrf.mxu0
      %v5357 = vadd.f32 0.0, %v5356
      %v5358 = vpop.f32.mrf.mxu0
      %v5359 = vpop.f32.mrf.mxu0
      %v5360 = vadd.f32 0.0, %v5359
      %v5361 = vpop.f32.mrf.mxu0
      %5362 = vmatprep.mubr.bf16.mxu0 0
      %5363 = vmatmul.mubr.bf16.gmra.mxu0 %v5235
      %v5364 = vpop.f32.mrf.mxu0
      %v5365 = vadd.f32 0.0, %v5364
      %v5366 = vpop.f32.mrf.mxu0
      %v5367 = vpop.f32.mrf.mxu0
      %v5368 = vadd.f32 0.0, %v5367
      %v5369 = vpop.f32.mrf.mxu0
      %5370 = vmatprep.mubr.bf16.mxu0 0
      %5371 = vmatmul.mubr.bf16.gmra.mxu0 %v5238
      %v5372 = vpop.f32.mrf.mxu0
      %v5373 = vadd.f32 0.0, %v5372
      %v5374 = vpop.f32.mrf.mxu0
      %v5375 = vpop.f32.mrf.mxu0
      %v5376 = vadd.f32 0.0, %v5375
      %v5377 = vpop.f32.mrf.mxu0
      %5378 = vmatprep.mubr.bf16.mxu0 0
      %5379 = vmatmul.mubr.bf16.gmra.mxu0 %v5241
      %v5380 = vpop.f32.mrf.mxu0
      %v5381 = vadd.f32 0.0, %v5380
      %v5382 = vpop.f32.mrf.mxu0
      %v5383 = vpop.f32.mrf.mxu0
      %v5384 = vadd.f32 0.0, %v5383
      %v5385 = vpop.f32.mrf.mxu0
      %5386 = vmatprep.mubr.bf16.mxu0 0
      %5387 = vmatmul.mubr.bf16.gmra.mxu0 %v5244
      %v5388 = vpop.f32.mrf.mxu0
      %v5389 = vadd.f32 0.0, %v5388
      %v5390 = vpop.f32.mrf.mxu0
      %v5391 = vpop.f32.mrf.mxu0
      %v5392 = vadd.f32 0.0, %v5391
      %v5393 = vpop.f32.mrf.mxu0
      %5394 = vmatprep.mubr.bf16.mxu0 0
      %5395 = vmatmul.mubr.bf16.gmra.mxu0 %v5247
      %v5396 = vpop.f32.mrf.mxu0
      %v5397 = vadd.f32 0.0, %v5396
      %v5398 = vpop.f32.mrf.mxu0
      %v5399 = vpop.f32.mrf.mxu0
      %v5400 = vadd.f32 0.0, %v5399
      %v5401 = vpop.f32.mrf.mxu0
      %5402 = vmatprep.mubr.bf16.mxu0 0
      %5403 = vmatmul.mubr.bf16.gmra.mxu0 %v5250
      %v5404 = vpop.f32.mrf.mxu0
      %v5405 = vadd.f32 0.0, %v5404
      %v5406 = vpop.f32.mrf.mxu0
      %v5407 = vpop.f32.mrf.mxu0
      %v5408 = vadd.f32 0.0, %v5407
      %v5409 = vpop.f32.mrf.mxu0
      %5410 = vmatprep.mubr.bf16.mxu0 0
      %5411 = vmatmul.mubr.bf16.gmra.mxu0 %v5253
      %v5412 = vpop.f32.mrf.mxu0
      %v5413 = vadd.f32 0.0, %v5412
      %v5414 = vpop.f32.mrf.mxu0
      %v5415 = vpop.f32.mrf.mxu0
      %v5416 = vadd.f32 0.0, %v5415
      %v5417 = vpop.f32.mrf.mxu0
      %5418 = vdwg.mxu0
      %v5419 = vadd.f32 %v5157, %v5293
      %v5420 = vadd.f32 %v5158, %v5296
      %v5421 = vadd.f32 %v5159, %v5301
      %v5422 = vadd.f32 %v5160, %v5304
      %v5423 = vadd.f32 %v5161, %v5309
      %v5424 = vadd.f32 %v5162, %v5312
      %v5425 = vadd.f32 %v5163, %v5317
      %v5426 = vadd.f32 %v5164, %v5320
      %v5427 = vadd.f32 %v5165, %v5325
      %v5428 = vadd.f32 %v5166, %v5328
      %v5429 = vadd.f32 %v5167, %v5333
      %v5430 = vadd.f32 %v5168, %v5336
      %v5431 = vadd.f32 %v5169, %v5341
      %v5432 = vadd.f32 %v5170, %v5344
      %v5433 = vadd.f32 %v5171, %v5349
      %v5434 = vadd.f32 %v5172, %v5352
      %v5435 = vadd.f32 %v5173, %v5357
      %v5436 = vadd.f32 %v5174, %v5360
      %v5437 = vadd.f32 %v5175, %v5365
      %v5438 = vadd.f32 %v5176, %v5368
      %v5439 = vadd.f32 %v5177, %v5373
      %v5440 = vadd.f32 %v5178, %v5376
      %v5441 = vadd.f32 %v5179, %v5381
      %v5442 = vadd.f32 %v5180, %v5384
      %v5443 = vadd.f32 %v5181, %v5389
      %v5444 = vadd.f32 %v5182, %v5392
      %v5445 = vadd.f32 %v5183, %v5397
      %v5446 = vadd.f32 %v5184, %v5400
      %v5447 = vadd.f32 %v5185, %v5405
      %v5448 = vadd.f32 %v5186, %v5408
      %v5449 = vadd.f32 %v5187, %v5413
      %v5450 = vadd.f32 %v5188, %v5416
      %5451 = vst.msk [vmem:[#allocation2] sm:$0xff] %vm393, %v5419
      %5452 = vst.msk [vmem:[#allocation2 + $0x8] sm:$0xff] %vm393, %v5420
      %5453 = vst.msk [vmem:[#allocation2 + $0x10] sm:$0xff] %vm393, %v5421
      %5454 = vst.msk [vmem:[#allocation2 + $0x18] sm:$0xff] %vm393, %v5422
      %5455 = vst.msk [vmem:[#allocation2 + $0x20] sm:$0xff] %vm393, %v5423
      %5456 = vst.msk [vmem:[#allocation2 + $0x28] sm:$0xff] %vm393, %v5424
      %5457 = vst.msk [vmem:[#allocation2 + $0x30] sm:$0xff] %vm393, %v5425
      %5458 = vst.msk [vmem:[#allocation2 + $0x38] sm:$0xff] %vm393, %v5426
      %5459 = vst.msk [vmem:[#allocation2 + $0x40] sm:$0xff] %vm393, %v5427
      %5460 = vst.msk [vmem:[#allocation2 + $0x48] sm:$0xff] %vm393, %v5428
      %5461 = vst.msk [vmem:[#allocation2 + $0x50] sm:$0xff] %vm393, %v5429
      %5462 = vst.msk [vmem:[#allocation2 + $0x58] sm:$0xff] %vm393, %v5430
      %5463 = vst.msk [vmem:[#allocation2 + $0x60] sm:$0xff] %vm393, %v5431
      %5464 = vst.msk [vmem:[#allocation2 + $0x68] sm:$0xff] %vm393, %v5432
      %5465 = vst.msk [vmem:[#allocation2 + $0x70] sm:$0xff] %vm393, %v5433
      %5466 = vst.msk [vmem:[#allocation2 + $0x78] sm:$0xff] %vm393, %v5434
      %5467 = vst.msk [vmem:[#allocation2 + $0x80] sm:$0xff] %vm393, %v5435
      %5468 = vst.msk [vmem:[#allocation2 + $0x88] sm:$0xff] %vm393, %v5436
      %5469 = vst.msk [vmem:[#allocation2 + $0x90] sm:$0xff] %vm393, %v5437
      %5470 = vst.msk [vmem:[#allocation2 + $0x98] sm:$0xff] %vm393, %v5438
      %5471 = vst.msk [vmem:[#allocation2 + $0xa0] sm:$0xff] %vm393, %v5439
      %5472 = vst.msk [vmem:[#allocation2 + $0xa8] sm:$0xff] %vm393, %v5440
      %5473 = vst.msk [vmem:[#allocation2 + $0xb0] sm:$0xff] %vm393, %v5441
      %5474 = vst.msk [vmem:[#allocation2 + $0xb8] sm:$0xff] %vm393, %v5442
      %5475 = vst.msk [vmem:[#allocation2 + $0xc0] sm:$0xff] %vm393, %v5443
      %5476 = vst.msk [vmem:[#allocation2 + $0xc8] sm:$0xff] %vm393, %v5444
      %5477 = vst.msk [vmem:[#allocation2 + $0xd0] sm:$0xff] %vm393, %v5445
      %5478 = vst.msk [vmem:[#allocation2 + $0xd8] sm:$0xff] %vm393, %v5446
      %5479 = vst.msk [vmem:[#allocation2 + $0xe0] sm:$0xff] %vm393, %v5447
      %5480 = vst.msk [vmem:[#allocation2 + $0xe8] sm:$0xff] %vm393, %v5448
      %5481 = vst.msk [vmem:[#allocation2 + $0xf0] sm:$0xff] %vm393, %v5449
      %5482 = vst.msk [vmem:[#allocation2 + $0xf8] sm:$0xff] %vm393, %v5450
      %v5483 = vld [vmem:[#allocation2] sm:$0xff]
      %v5484 = vld [vmem:[#allocation2 + $0x8] sm:$0xff]
      %v5485 = vld [vmem:[#allocation2 + $0x10] sm:$0xff]
      %v5486 = vld [vmem:[#allocation2 + $0x18] sm:$0xff]
      %v5487 = vld [vmem:[#allocation2 + $0x20] sm:$0xff]
      %v5488 = vld [vmem:[#allocation2 + $0x28] sm:$0xff]
      %v5489 = vld [vmem:[#allocation2 + $0x30] sm:$0xff]
      %v5490 = vld [vmem:[#allocation2 + $0x38] sm:$0xff]
      %v5491 = vld [vmem:[#allocation2 + $0x40] sm:$0xff]
      %v5492 = vld [vmem:[#allocation2 + $0x48] sm:$0xff]
      %v5493 = vld [vmem:[#allocation2 + $0x50] sm:$0xff]
      %v5494 = vld [vmem:[#allocation2 + $0x58] sm:$0xff]
      %v5495 = vld [vmem:[#allocation2 + $0x60] sm:$0xff]
      %v5496 = vld [vmem:[#allocation2 + $0x68] sm:$0xff]
      %v5497 = vld [vmem:[#allocation2 + $0x70] sm:$0xff]
      %v5498 = vld [vmem:[#allocation2 + $0x78] sm:$0xff]
      %v5499 = vld [vmem:[#allocation2 + $0x80] sm:$0xff]
      %v5500 = vld [vmem:[#allocation2 + $0x88] sm:$0xff]
      %v5501 = vld [vmem:[#allocation2 + $0x90] sm:$0xff]
      %v5502 = vld [vmem:[#allocation2 + $0x98] sm:$0xff]
      %v5503 = vld [vmem:[#allocation2 + $0xa0] sm:$0xff]
      %v5504 = vld [vmem:[#allocation2 + $0xa8] sm:$0xff]
      %v5505 = vld [vmem:[#allocation2 + $0xb0] sm:$0xff]
      %v5506 = vld [vmem:[#allocation2 + $0xb8] sm:$0xff]
      %v5507 = vld [vmem:[#allocation2 + $0xc0] sm:$0xff]
      %v5508 = vld [vmem:[#allocation2 + $0xc8] sm:$0xff]
      %v5509 = vld [vmem:[#allocation2 + $0xd0] sm:$0xff]
      %v5510 = vld [vmem:[#allocation2 + $0xd8] sm:$0xff]
      %v5511 = vld [vmem:[#allocation2 + $0xe0] sm:$0xff]
      %v5512 = vld [vmem:[#allocation2 + $0xe8] sm:$0xff]
      %v5513 = vld [vmem:[#allocation2 + $0xf0] sm:$0xff]
      %v5514 = vld [vmem:[#allocation2 + $0xf8] sm:$0xff]
      %v5515 = vld [vmem:[%s5] sm:$0x1]
      %v5517 = vlaneseq
      %v5518 = vshrl.u32 %v5517, 7
      %v5519 = vsub.s32 0, %v5518
      %v5520 = vrot.slane %v5515, %v5519
      %v5522 = vmul.f32 %v5483, %v5520
      %v5523 = vmul.f32 %v5484, %v5520
      %v5524 = vmul.f32 %v5485, %v5520
      %v5525 = vmul.f32 %v5486, %v5520
      %v5526 = vmul.f32 %v5487, %v5520
      %v5527 = vmul.f32 %v5488, %v5520
      %v5528 = vmul.f32 %v5489, %v5520
      %v5529 = vmul.f32 %v5490, %v5520
      %v5530 = vmul.f32 %v5491, %v5520
      %v5531 = vmul.f32 %v5492, %v5520
      %v5532 = vmul.f32 %v5493, %v5520
      %v5533 = vmul.f32 %v5494, %v5520
      %v5534 = vmul.f32 %v5495, %v5520
      %v5535 = vmul.f32 %v5496, %v5520
      %v5536 = vmul.f32 %v5497, %v5520
      %v5537 = vmul.f32 %v5498, %v5520
      %v5538 = vmul.f32 %v5499, %v5520
      %v5539 = vmul.f32 %v5500, %v5520
      %v5540 = vmul.f32 %v5501, %v5520
      %v5541 = vmul.f32 %v5502, %v5520
      %v5542 = vmul.f32 %v5503, %v5520
      %v5543 = vmul.f32 %v5504, %v5520
      %v5544 = vmul.f32 %v5505, %v5520
      %v5545 = vmul.f32 %v5506, %v5520
      %v5546 = vmul.f32 %v5507, %v5520
      %v5547 = vmul.f32 %v5508, %v5520
      %v5548 = vmul.f32 %v5509, %v5520
      %v5549 = vmul.f32 %v5510, %v5520
      %v5550 = vmul.f32 %v5511, %v5520
      %v5551 = vmul.f32 %v5512, %v5520
      %v5552 = vmul.f32 %v5513, %v5520
      %v5553 = vmul.f32 %v5514, %v5520
      %v5554 = vld [vmem:[%s6] sm:$0x1]
      %v5556 = vlaneseq
      %v5557 = vshrl.u32 %v5556, 7
      %v5558 = vsub.s32 0, %v5557
      %v5559 = vrot.slane %v5554, %v5558
      %v5561 = vadd.f32 %v5522, %v5559
      %v5562 = vadd.f32 %v5523, %v5559
      %v5563 = vadd.f32 %v5524, %v5559
      %v5564 = vadd.f32 %v5525, %v5559
      %v5565 = vadd.f32 %v5526, %v5559
      %v5566 = vadd.f32 %v5527, %v5559
      %v5567 = vadd.f32 %v5528, %v5559
      %v5568 = vadd.f32 %v5529, %v5559
      %v5569 = vadd.f32 %v5530, %v5559
      %v5570 = vadd.f32 %v5531, %v5559
      %v5571 = vadd.f32 %v5532, %v5559
      %v5572 = vadd.f32 %v5533, %v5559
      %v5573 = vadd.f32 %v5534, %v5559
      %v5574 = vadd.f32 %v5535, %v5559
      %v5575 = vadd.f32 %v5536, %v5559
      %v5576 = vadd.f32 %v5537, %v5559
      %v5577 = vadd.f32 %v5538, %v5559
      %v5578 = vadd.f32 %v5539, %v5559
      %v5579 = vadd.f32 %v5540, %v5559
      %v5580 = vadd.f32 %v5541, %v5559
      %v5581 = vadd.f32 %v5542, %v5559
      %v5582 = vadd.f32 %v5543, %v5559
      %v5583 = vadd.f32 %v5544, %v5559
      %v5584 = vadd.f32 %v5545, %v5559
      %v5585 = vadd.f32 %v5546, %v5559
      %v5586 = vadd.f32 %v5547, %v5559
      %v5587 = vadd.f32 %v5548, %v5559
      %v5588 = vadd.f32 %v5549, %v5559
      %v5589 = vadd.f32 %v5550, %v5559
      %v5590 = vadd.f32 %v5551, %v5559
      %v5591 = vadd.f32 %v5552, %v5559
      %v5592 = vadd.f32 %v5553, %v5559
      %v5593 = vxor.u32 %v5561, 2147483648
      %v5594 = vxor.u32 %v5562, 2147483648
      %v5595 = vxor.u32 %v5563, 2147483648
      %v5596 = vxor.u32 %v5564, 2147483648
      %v5597 = vxor.u32 %v5565, 2147483648
      %v5598 = vxor.u32 %v5566, 2147483648
      %v5599 = vxor.u32 %v5567, 2147483648
      %v5600 = vxor.u32 %v5568, 2147483648
      %v5601 = vxor.u32 %v5569, 2147483648
      %v5602 = vxor.u32 %v5570, 2147483648
      %v5603 = vxor.u32 %v5571, 2147483648
      %v5604 = vxor.u32 %v5572, 2147483648
      %v5605 = vxor.u32 %v5573, 2147483648
      %v5606 = vxor.u32 %v5574, 2147483648
      %v5607 = vxor.u32 %v5575, 2147483648
      %v5608 = vxor.u32 %v5576, 2147483648
      %v5609 = vxor.u32 %v5577, 2147483648
      %v5610 = vxor.u32 %v5578, 2147483648
      %v5611 = vxor.u32 %v5579, 2147483648
      %v5612 = vxor.u32 %v5580, 2147483648
      %v5613 = vxor.u32 %v5581, 2147483648
      %v5614 = vxor.u32 %v5582, 2147483648
      %v5615 = vxor.u32 %v5583, 2147483648
      %v5616 = vxor.u32 %v5584, 2147483648
      %v5617 = vxor.u32 %v5585, 2147483648
      %v5618 = vxor.u32 %v5586, 2147483648
      %v5619 = vxor.u32 %v5587, 2147483648
      %v5620 = vxor.u32 %v5588, 2147483648
      %v5621 = vxor.u32 %v5589, 2147483648
      %v5622 = vxor.u32 %v5590, 2147483648
      %v5623 = vxor.u32 %v5591, 2147483648
      %v5624 = vxor.u32 %v5592, 2147483648
      %v5625 = vmul.f32 %v5593, 1.442695
      %v5626 = vpow.pop %v5625
      %v5627 = vmul.f32 %v5594, 1.442695
      %v5628 = vpow.pop %v5627
      %v5629 = vmul.f32 %v5595, 1.442695
      %v5630 = vpow.pop %v5629
      %v5631 = vmul.f32 %v5596, 1.442695
      %v5632 = vpow.pop %v5631
      %v5633 = vmul.f32 %v5597, 1.442695
      %v5634 = vpow.pop %v5633
      %v5635 = vmul.f32 %v5598, 1.442695
      %v5636 = vpow.pop %v5635
      %v5637 = vmul.f32 %v5599, 1.442695
      %v5638 = vpow.pop %v5637
      %v5639 = vmul.f32 %v5600, 1.442695
      %v5640 = vpow.pop %v5639
      %v5641 = vmul.f32 %v5601, 1.442695
      %v5642 = vpow.pop %v5641
      %v5643 = vmul.f32 %v5602, 1.442695
      %v5644 = vpow.pop %v5643
      %v5645 = vmul.f32 %v5603, 1.442695
      %v5646 = vpow.pop %v5645
      %v5647 = vmul.f32 %v5604, 1.442695
      %v5648 = vpow.pop %v5647
      %v5649 = vmul.f32 %v5605, 1.442695
      %v5650 = vpow.pop %v5649
      %v5651 = vmul.f32 %v5606, 1.442695
      %v5652 = vpow.pop %v5651
      %v5653 = vmul.f32 %v5607, 1.442695
      %v5654 = vpow.pop %v5653
      %v5655 = vmul.f32 %v5608, 1.442695
      %v5656 = vpow.pop %v5655
      %v5657 = vmul.f32 %v5609, 1.442695
      %v5658 = vpow.pop %v5657
      %v5659 = vmul.f32 %v5610, 1.442695
      %v5660 = vpow.pop %v5659
      %v5661 = vmul.f32 %v5611, 1.442695
      %v5662 = vpow.pop %v5661
      %v5663 = vmul.f32 %v5612, 1.442695
      %v5664 = vpow.pop %v5663
      %v5665 = vmul.f32 %v5613, 1.442695
      %v5666 = vpow.pop %v5665
      %v5667 = vmul.f32 %v5614, 1.442695
      %v5668 = vpow.pop %v5667
      %v5669 = vmul.f32 %v5615, 1.442695
      %v5670 = vpow.pop %v5669
      %v5671 = vmul.f32 %v5616, 1.442695
      %v5672 = vpow.pop %v5671
      %v5673 = vmul.f32 %v5617, 1.442695
      %v5674 = vpow.pop %v5673
      %v5675 = vmul.f32 %v5618, 1.442695
      %v5676 = vpow.pop %v5675
      %v5677 = vmul.f32 %v5619, 1.442695
      %v5678 = vpow.pop %v5677
      %v5679 = vmul.f32 %v5620, 1.442695
      %v5680 = vpow.pop %v5679
      %v5681 = vmul.f32 %v5621, 1.442695
      %v5682 = vpow.pop %v5681
      %v5683 = vmul.f32 %v5622, 1.442695
      %v5684 = vpow.pop %v5683
      %v5685 = vmul.f32 %v5623, 1.442695
      %v5686 = vpow.pop %v5685
      %v5687 = vmul.f32 %v5624, 1.442695
      %v5688 = vpow.pop %v5687
      %v5689 = vadd.f32 %v5626, 1.0
      %v5690 = vadd.f32 %v5628, 1.0
      %v5691 = vadd.f32 %v5630, 1.0
      %v5692 = vadd.f32 %v5632, 1.0
      %v5693 = vadd.f32 %v5634, 1.0
      %v5694 = vadd.f32 %v5636, 1.0
      %v5695 = vadd.f32 %v5638, 1.0
      %v5696 = vadd.f32 %v5640, 1.0
      %v5697 = vadd.f32 %v5642, 1.0
      %v5698 = vadd.f32 %v5644, 1.0
      %v5699 = vadd.f32 %v5646, 1.0
      %v5700 = vadd.f32 %v5648, 1.0
      %v5701 = vadd.f32 %v5650, 1.0
      %v5702 = vadd.f32 %v5652, 1.0
      %v5703 = vadd.f32 %v5654, 1.0
      %v5704 = vadd.f32 %v5656, 1.0
      %v5705 = vadd.f32 %v5658, 1.0
      %v5706 = vadd.f32 %v5660, 1.0
      %v5707 = vadd.f32 %v5662, 1.0
      %v5708 = vadd.f32 %v5664, 1.0
      %v5709 = vadd.f32 %v5666, 1.0
      %v5710 = vadd.f32 %v5668, 1.0
      %v5711 = vadd.f32 %v5670, 1.0
      %v5712 = vadd.f32 %v5672, 1.0
      %v5713 = vadd.f32 %v5674, 1.0
      %v5714 = vadd.f32 %v5676, 1.0
      %v5715 = vadd.f32 %v5678, 1.0
      %v5716 = vadd.f32 %v5680, 1.0
      %v5717 = vadd.f32 %v5682, 1.0
      %v5718 = vadd.f32 %v5684, 1.0
      %v5719 = vadd.f32 %v5686, 1.0
      %v5720 = vadd.f32 %v5688, 1.0
      %v5721 = vrcp.pop %v5689
      %v5722 = vmul.f32 1.0, %v5721
      %v5723 = vrcp.pop %v5690
      %v5724 = vmul.f32 1.0, %v5723
      %v5725 = vrcp.pop %v5691
      %v5726 = vmul.f32 1.0, %v5725
      %v5727 = vrcp.pop %v5692
      %v5728 = vmul.f32 1.0, %v5727
      %v5729 = vrcp.pop %v5693
      %v5730 = vmul.f32 1.0, %v5729
      %v5731 = vrcp.pop %v5694
      %v5732 = vmul.f32 1.0, %v5731
      %v5733 = vrcp.pop %v5695
      %v5734 = vmul.f32 1.0, %v5733
      %v5735 = vrcp.pop %v5696
      %v5736 = vmul.f32 1.0, %v5735
      %v5737 = vrcp.pop %v5697
      %v5738 = vmul.f32 1.0, %v5737
      %v5739 = vrcp.pop %v5698
      %v5740 = vmul.f32 1.0, %v5739
      %v5741 = vrcp.pop %v5699
      %v5742 = vmul.f32 1.0, %v5741
      %v5743 = vrcp.pop %v5700
      %v5744 = vmul.f32 1.0, %v5743
      %v5745 = vrcp.pop %v5701
      %v5746 = vmul.f32 1.0, %v5745
      %v5747 = vrcp.pop %v5702
      %v5748 = vmul.f32 1.0, %v5747
      %v5749 = vrcp.pop %v5703
      %v5750 = vmul.f32 1.0, %v5749
      %v5751 = vrcp.pop %v5704
      %v5752 = vmul.f32 1.0, %v5751
      %v5753 = vrcp.pop %v5705
      %v5754 = vmul.f32 1.0, %v5753
      %v5755 = vrcp.pop %v5706
      %v5756 = vmul.f32 1.0, %v5755
      %v5757 = vrcp.pop %v5707
      %v5758 = vmul.f32 1.0, %v5757
      %v5759 = vrcp.pop %v5708
      %v5760 = vmul.f32 1.0, %v5759
      %v5761 = vrcp.pop %v5709
      %v5762 = vmul.f32 1.0, %v5761
      %v5763 = vrcp.pop %v5710
      %v5764 = vmul.f32 1.0, %v5763
      %v5765 = vrcp.pop %v5711
      %v5766 = vmul.f32 1.0, %v5765
      %v5767 = vrcp.pop %v5712
      %v5768 = vmul.f32 1.0, %v5767
      %v5769 = vrcp.pop %v5713
      %v5770 = vmul.f32 1.0, %v5769
      %v5771 = vrcp.pop %v5714
      %v5772 = vmul.f32 1.0, %v5771
      %v5773 = vrcp.pop %v5715
      %v5774 = vmul.f32 1.0, %v5773
      %v5775 = vrcp.pop %v5716
      %v5776 = vmul.f32 1.0, %v5775
      %v5777 = vrcp.pop %v5717
      %v5778 = vmul.f32 1.0, %v5777
      %v5779 = vrcp.pop %v5718
      %v5780 = vmul.f32 1.0, %v5779
      %v5781 = vrcp.pop %v5719
      %v5782 = vmul.f32 1.0, %v5781
      %v5783 = vrcp.pop %v5720
      %v5784 = vmul.f32 1.0, %v5783
      %v5785 = vmul.f32 %v5561, %v5722
      %v5786 = vmul.f32 %v5562, %v5724
      %v5787 = vmul.f32 %v5563, %v5726
      %v5788 = vmul.f32 %v5564, %v5728
      %v5789 = vmul.f32 %v5565, %v5730
      %v5790 = vmul.f32 %v5566, %v5732
      %v5791 = vmul.f32 %v5567, %v5734
      %v5792 = vmul.f32 %v5568, %v5736
      %v5793 = vmul.f32 %v5569, %v5738
      %v5794 = vmul.f32 %v5570, %v5740
      %v5795 = vmul.f32 %v5571, %v5742
      %v5796 = vmul.f32 %v5572, %v5744
      %v5797 = vmul.f32 %v5573, %v5746
      %v5798 = vmul.f32 %v5574, %v5748
      %v5799 = vmul.f32 %v5575, %v5750
      %v5800 = vmul.f32 %v5576, %v5752
      %v5801 = vmul.f32 %v5577, %v5754
      %v5802 = vmul.f32 %v5578, %v5756
      %v5803 = vmul.f32 %v5579, %v5758
      %v5804 = vmul.f32 %v5580, %v5760
      %v5805 = vmul.f32 %v5581, %v5762
      %v5806 = vmul.f32 %v5582, %v5764
      %v5807 = vmul.f32 %v5583, %v5766
      %v5808 = vmul.f32 %v5584, %v5768
      %v5809 = vmul.f32 %v5585, %v5770
      %v5810 = vmul.f32 %v5586, %v5772
      %v5811 = vmul.f32 %v5587, %v5774
      %v5812 = vmul.f32 %v5588, %v5776
      %v5813 = vmul.f32 %v5589, %v5778
      %v5814 = vmul.f32 %v5590, %v5780
      %v5815 = vmul.f32 %v5591, %v5782
      %v5816 = vmul.f32 %v5592, %v5784
      %v5817 = vpack.c.bf16 %v5786, %v5785
      %v5818 = vpack.c.bf16 %v5788, %v5787
      %v5819 = vpack.c.bf16 %v5790, %v5789
      %v5820 = vpack.c.bf16 %v5792, %v5791
      %v5821 = vpack.c.bf16 %v5794, %v5793
      %v5822 = vpack.c.bf16 %v5796, %v5795
      %v5823 = vpack.c.bf16 %v5798, %v5797
      %v5824 = vpack.c.bf16 %v5800, %v5799
      %v5825 = vpack.c.bf16 %v5802, %v5801
      %v5826 = vpack.c.bf16 %v5804, %v5803
      %v5827 = vpack.c.bf16 %v5806, %v5805
      %v5828 = vpack.c.bf16 %v5808, %v5807
      %v5829 = vpack.c.bf16 %v5810, %v5809
      %v5830 = vpack.c.bf16 %v5812, %v5811
      %v5831 = vpack.c.bf16 %v5814, %v5813
      %v5832 = vpack.c.bf16 %v5816, %v5815
      %v5849 = vunpack.c.l.b16 %v5817
      %v5850 = vunpack.c.h.b16 %v5817
      %v5851 = vunpack.c.l.b16 %v5818
      %v5852 = vunpack.c.h.b16 %v5818
      %v5853 = vunpack.c.l.b16 %v5819
      %v5854 = vunpack.c.h.b16 %v5819
      %v5855 = vunpack.c.l.b16 %v5820
      %v5856 = vunpack.c.h.b16 %v5820
      %v5857 = vunpack.c.l.b16 %v5821
      %v5858 = vunpack.c.h.b16 %v5821
      %v5859 = vunpack.c.l.b16 %v5822
      %v5860 = vunpack.c.h.b16 %v5822
      %v5861 = vunpack.c.l.b16 %v5823
      %v5862 = vunpack.c.h.b16 %v5823
      %v5863 = vunpack.c.l.b16 %v5824
      %v5864 = vunpack.c.h.b16 %v5824
      %v5865 = vunpack.c.l.b16 %v5825
      %v5866 = vunpack.c.h.b16 %v5825
      %v5867 = vunpack.c.l.b16 %v5826
      %v5868 = vunpack.c.h.b16 %v5826
      %v5869 = vunpack.c.l.b16 %v5827
      %v5870 = vunpack.c.h.b16 %v5827
      %v5871 = vunpack.c.l.b16 %v5828
      %v5872 = vunpack.c.h.b16 %v5828
      %v5873 = vunpack.c.l.b16 %v5829
      %v5874 = vunpack.c.h.b16 %v5829
      %v5875 = vunpack.c.l.b16 %v5830
      %v5876 = vunpack.c.h.b16 %v5830
      %v5877 = vunpack.c.l.b16 %v5831
      %v5878 = vunpack.c.h.b16 %v5831
      %v5879 = vunpack.c.l.b16 %v5832
      %v5880 = vunpack.c.h.b16 %v5832
      %v5881 = vpack.c.b16 %v5849, %v5849
      %v5882 = vpack.c.b16 %v5850, %v5850
      %v5883 = vpack.c.b16 %v5851, %v5851
      %v5884 = vpack.c.b16 %v5852, %v5852
      %v5885 = vpack.c.b16 %v5853, %v5853
      %v5886 = vpack.c.b16 %v5854, %v5854
      %v5887 = vpack.c.b16 %v5855, %v5855
      %v5888 = vpack.c.b16 %v5856, %v5856
      %v5889 = vpack.c.b16 %v5857, %v5857
      %v5890 = vpack.c.b16 %v5858, %v5858
      %v5891 = vpack.c.b16 %v5859, %v5859
      %v5892 = vpack.c.b16 %v5860, %v5860
      %v5893 = vpack.c.b16 %v5861, %v5861
      %v5894 = vpack.c.b16 %v5862, %v5862
      %v5895 = vpack.c.b16 %v5863, %v5863
      %v5896 = vpack.c.b16 %v5864, %v5864
      %v5897 = vpack.c.b16 %v5865, %v5865
      %v5898 = vpack.c.b16 %v5866, %v5866
      %v5899 = vpack.c.b16 %v5867, %v5867
      %v5900 = vpack.c.b16 %v5868, %v5868
      %v5901 = vpack.c.b16 %v5869, %v5869
      %v5902 = vpack.c.b16 %v5870, %v5870
      %v5903 = vpack.c.b16 %v5871, %v5871
      %v5904 = vpack.c.b16 %v5872, %v5872
      %v5905 = vpack.c.b16 %v5873, %v5873
      %v5906 = vpack.c.b16 %v5874, %v5874
      %v5907 = vpack.c.b16 %v5875, %v5875
      %v5908 = vpack.c.b16 %v5876, %v5876
      %v5909 = vpack.c.b16 %v5877, %v5877
      %v5910 = vpack.c.b16 %v5878, %v5878
      %v5911 = vpack.c.b16 %v5879, %v5879
      %v5912 = vpack.c.b16 %v5880, %v5880
      %vm5945 = vcmask 27648
      %5946 = vst.msk [vmem:[%s278] sm:$0xf] %vm5945, %v5881
      %5947 = vst.msk [vmem:[%s278 + $0x4] sm:$0xf] %vm5945, %v5882
      %5948 = vst.msk [vmem:[%s278 + $0x8] sm:$0xf] %vm5945, %v5883
      %5949 = vst.msk [vmem:[%s278 + $0xc] sm:$0xf] %vm5945, %v5884
      %5950 = vst.msk [vmem:[%s278 + $0x10] sm:$0xf] %vm5945, %v5885
      %5951 = vst.msk [vmem:[%s278 + $0x14] sm:$0xf] %vm5945, %v5886
      %5952 = vst.msk [vmem:[%s278 + $0x18] sm:$0xf] %vm5945, %v5887
      %5953 = vst.msk [vmem:[%s278 + $0x1c] sm:$0xf] %vm5945, %v5888
      %5954 = vst.msk [vmem:[%s278 + $0x20] sm:$0xf] %vm5945, %v5889
      %5955 = vst.msk [vmem:[%s278 + $0x24] sm:$0xf] %vm5945, %v5890
      %5956 = vst.msk [vmem:[%s278 + $0x28] sm:$0xf] %vm5945, %v5891
      %5957 = vst.msk [vmem:[%s278 + $0x2c] sm:$0xf] %vm5945, %v5892
      %5958 = vst.msk [vmem:[%s278 + $0x30] sm:$0xf] %vm5945, %v5893
      %5959 = vst.msk [vmem:[%s278 + $0x34] sm:$0xf] %vm5945, %v5894
      %5960 = vst.msk [vmem:[%s278 + $0x38] sm:$0xf] %vm5945, %v5895
      %5961 = vst.msk [vmem:[%s278 + $0x3c] sm:$0xf] %vm5945, %v5896
      %5962 = vst.msk [vmem:[%s278 + $0x40] sm:$0xf] %vm5945, %v5897
      %5963 = vst.msk [vmem:[%s278 + $0x44] sm:$0xf] %vm5945, %v5898
      %5964 = vst.msk [vmem:[%s278 + $0x48] sm:$0xf] %vm5945, %v5899
      %5965 = vst.msk [vmem:[%s278 + $0x4c] sm:$0xf] %vm5945, %v5900
      %5966 = vst.msk [vmem:[%s278 + $0x50] sm:$0xf] %vm5945, %v5901
      %5967 = vst.msk [vmem:[%s278 + $0x54] sm:$0xf] %vm5945, %v5902
      %5968 = vst.msk [vmem:[%s278 + $0x58] sm:$0xf] %vm5945, %v5903
      %5969 = vst.msk [vmem:[%s278 + $0x5c] sm:$0xf] %vm5945, %v5904
      %5970 = vst.msk [vmem:[%s278 + $0x60] sm:$0xf] %vm5945, %v5905
      %5971 = vst.msk [vmem:[%s278 + $0x64] sm:$0xf] %vm5945, %v5906
      %5972 = vst.msk [vmem:[%s278 + $0x68] sm:$0xf] %vm5945, %v5907
      %5973 = vst.msk [vmem:[%s278 + $0x6c] sm:$0xf] %vm5945, %v5908
      %5974 = vst.msk [vmem:[%s278 + $0x70] sm:$0xf] %vm5945, %v5909
      %5975 = vst.msk [vmem:[%s278 + $0x74] sm:$0xf] %vm5945, %v5910
      %5976 = vst.msk [vmem:[%s278 + $0x78] sm:$0xf] %vm5945, %v5911
      %5977 = vst.msk [vmem:[%s278 + $0x7c] sm:$0xf] %vm5945, %v5912
      %p5978 = scmp.lt.s32.totalorder %s18, 1
      %s5979 = scalar_select %p5978, %s18, 1
      %s5980 = smul.addr %s5979, 32
      %s5981 = smul.addr %s5980, 4
      %s5982 = scalar_lea.vmem %s7, %s5981
      // Predicated region
      $region49: #{tpu_custom_call.1} parent=47 // pred_check
        %p5983 = pneg %p188
      $region50: #{tpu_custom_call.1} parent=47 // pred_check_branch
        %5985 = sbr.rel (%p5983) target = $region52
      $region51: #{tpu_custom_call.1} parent=47 // pred_region
        _
      $region52: #{tpu_custom_call.1} parent=47 // pred_fallthru
        _
    $region48: #{tpu_custom_call.1} parent=5 // pred_fallthru
      _
    %p5986 = scmp.le.s32.totalorder 2, %s13
    // Predicated region
    $region53: #{tpu_custom_call.1} parent=5 // pred_check
      %p5987 = pneg %p5986
    $region54: #{tpu_custom_call.1} parent=5 // pred_check_branch
      %5989 = sbr.rel (%p5987) target = $region56
    $region55: #{tpu_custom_call.1} parent=5 // pred_region
      %s5990 = ssub.s32 %s13, 2
      // Predicated region
      $region57: #{tpu_custom_call.1} parent=55 // pred_check
        %p5991 = pneg %p194
      $region58: #{tpu_custom_call.1} parent=55 // pred_check_branch
        %5993 = sbr.rel (%p5991) target = $region60
      $region59: #{tpu_custom_call.1} parent=55 // pred_region
        %p5994 = scmp.lt.s32.totalorder %s19, 1
        %s5995 = scalar_select %p5994, %s19, 1
        %s5996 = smul.addr %s5995, 32
        %s5997 = smul.addr %s5996, 4
        %s5998 = scalar_lea.vmem %s7, %s5997
      $region60: #{tpu_custom_call.1} parent=55 // pred_fallthru
        _
    $region56: #{tpu_custom_call.1} parent=5 // pred_fallthru
      _
  $region6: #{tpu_custom_call.1} parent=0 // loop_footer
    %s17 = sadd.s32 1, %s13
  $region7: #{tpu_custom_call.1} parent=0 // loop_footer_branch
    %12 = sbr.rel target = $region3
  $region8: #{tpu_custom_call.1} parent=0 // loop_exit
    _

</llo_original>
